<compile_context>
chip_gen: v7x
topology: tpu7x:2x2x1
jax: 0.10.0
libtpu: 0.0.40
codegen_flags: <defaults>
</compile_context>

<pallas_src>
import numpy as np

import jax
import jax.numpy as jnp
from jax import lax
from jax.experimental import pallas as pl
from jax.experimental.pallas import tpu as pltpu


# ---------------------------------------------------------------------------
# Config (matches the PyTorch CombinedLoss defaults)
# ---------------------------------------------------------------------------
FFT_SIZES = [512, 1024, 2048]
HOP_SIZES = [50, 120, 240]
WIN_LENGTHS = [240, 600, 1200]
FACTOR_SC = 1.0
FACTOR_MAG = 1.0

TILE_K = 128                       # bins per frequency tile ([cos|sin] -> 256 lanes)
_EPS = float(np.float32(1e-7))

# MXU operand dtype.  bf16 operands (f32 accumulation) give 3-8x MXU throughput
# and halve frame/basis HBM + VMEM bytes; set to jnp.float32 for bit-closer
# parity with the PyTorch reference.
MATMUL_DTYPE = jnp.bfloat16


def _round_up(x, m):
    return (x + m - 1) // m * m


def _cdiv(a, b):
    return (a + b - 1) // b


def _vmem_plan():
    """(accounted-bytes budget, vmem_limit_bytes) per TPU generation.
    Conservative default is v7x-safe (64 MiB physical VMEM per TensorCore)."""
    try:
        kind = jax.devices()[0].device_kind.lower()
    except Exception:
        kind = ""
    if ("v5" in kind) or ("v6" in kind):           # 128 MiB physical VMEM
        return 80 * 1024 * 1024, 96 * 1024 * 1024
    return 40 * 1024 * 1024, 48 * 1024 * 1024      # v7x / unknown


# ---------------------------------------------------------------------------
# Pallas kernels
# ---------------------------------------------------------------------------
def _stft_tile_kernel(fr_ref, basis_ref, out_ref, d_acc, y_acc, m_acc):
    """Grid = (row_tiles, k_tiles).
    fr_ref:    (2, R, n_fft) bf16, [pred; target] frames, resident across k.
    basis_ref: (n_k_tiles, n_fft, 2*TILE_K) bf16 fused [cos|sin] basis, resident.
    Accumulates [sum (|Y|-|X|)^2, sum |Y|^2, sum |log y2 - log x2|] elementwise
    in VMEM scratch and reduces to scalars once per row tile."""
    k = pl.program_id(1)

    @pl.when(k == 0)
    def _init():
        d_acc[...] = jnp.zeros_like(d_acc)
        y_acc[...] = jnp.zeros_like(y_acc)
        m_acc[...] = jnp.zeros_like(m_acc)

    basis = basis_ref[k]                                      # (n_fft, 2*TILE_K)
    xs = jnp.dot(fr_ref[0], basis, preferred_element_type=jnp.float32)
    ys = jnp.dot(fr_ref[1], basis, preferred_element_type=jnp.float32)
    xr, xi = xs[:, :TILE_K], xs[:, TILE_K:]
    yr, yi = ys[:, :TILE_K], ys[:, TILE_K:]
    x2 = jnp.maximum(xr * xr + xi * xi, _EPS)
    y2 = jnp.maximum(yr * yr + yi * yi, _EPS)

    # (|Y|-|X|)^2 = x2 + y2 - 2*sqrt(x2*y2)            (one sqrt instead of two)
    d_acc[...] += (x2 + y2) - 2.0 * jnp.sqrt(x2 * y2)
    y_acc[...] += y2
    # |log|Y| - log|X|| = 0.5 * |log(y2/x2)|           (one log + approx recip)
    m_acc[...] += jnp.abs(jnp.log(y2 * pl.reciprocal(x2, approx=True)))

    @pl.when(k == pl.num_programs(1) - 1)
    def _flush():
        lane = lax.broadcasted_iota(jnp.int32, out_ref.shape, 2)
        s_d = jnp.sum(d_acc[...])
        s_y = jnp.sum(y_acc[...])
        s_m = 0.5 * jnp.sum(m_acc[...])
        out_ref[...] = jnp.where(
            lane == 0, s_d,
            jnp.where(lane == 1, s_y,
                      jnp.where(lane == 2, s_m, 0.0)))


def _l1_kernel(p_ref, t_ref, out_ref):
    # One lane-dense partial-sum block per grid step ("parallel" axis).
    out_ref[...] = jnp.zeros_like(out_ref) + jnp.sum(jnp.abs(p_ref[...] - t_ref[...]))


# ---------------------------------------------------------------------------
# Host-precomputed fused DFT bases (hoisted out of jit)
# ---------------------------------------------------------------------------
def _fused_basis_np(n_fft, win_length, tile_k):
    """Windowed one-sided real-DFT basis for bins 0..n_fft/2-1 as exact
    (n_k_tiles, n_fft, [cos|sin]) tiles, plus the (windowed, alternating-sign)
    Nyquist column handled outside the kernel."""
    n_main = n_fft // 2
    n_k = n_main // tile_k
    n = np.arange(win_length, dtype=np.float64)
    win = 0.5 - 0.5 * np.cos(2.0 * np.pi * n / win_length)    # periodic Hann
    win_full = np.zeros(n_fft, dtype=np.float64)
    lpad = (n_fft - win_length) // 2
    win_full[lpad:lpad + win_length] = win
    nn = np.arange(n_fft, dtype=np.float64)[:, None]
    kk = np.arange(n_main, dtype=np.float64)[None, :]
    ang = 2.0 * np.pi * nn * kk / n_fft
    cos_m = win_full[:, None] * np.cos(ang)
    sin_m = -win_full[:, None] * np.sin(ang)
    fused = np.empty((n_k, n_fft, 2 * tile_k), dtype=np.float32)
    for t in range(n_k):
        fused[t, :, :tile_k] = cos_m[:, t * tile_k:(t + 1) * tile_k]
        fused[t, :, tile_k:] = sin_m[:, t * tile_k:(t + 1) * tile_k]
    nyq_col = (win_full * np.cos(np.pi * np.arange(n_fft))).astype(np.float32)
    return fused, nyq_col


_BASES_CACHE = None


def _get_bases():
    global _BASES_CACHE
    if _BASES_CACHE is None:
        bases = []
        for fs, wl in zip(FFT_SIZES, WIN_LENGTHS):
            fused, nyq = _fused_basis_np(fs, wl, TILE_K)
            bases.append((jnp.asarray(fused, dtype=MATMUL_DTYPE),
                          jnp.asarray(nyq, dtype=jnp.float32)))
        _BASES_CACHE = tuple(bases)
    return _BASES_CACHE


# ---------------------------------------------------------------------------
# Wrappers
# ---------------------------------------------------------------------------
def _frames_from_padded(xp, n_fft, hop, n_frames):
    """torch.stft(center=True) framing from the already-padded signal via
    shift-and-concat slices of the hop-reshaped signal (no gather)."""
    B, tp = xp.shape
    n_chunks = _cdiv(n_fft, hop)
    n_rows = n_frames + n_chunks - 1
    need = n_rows * hop
    if need > tp:
        xp = jnp.pad(xp, ((0, 0), (0, need - tp)))
    else:
        xp = xp[:, :need]
    s = xp.reshape(B, n_rows, hop)
    fr = jnp.concatenate([s[:, a:a + n_frames, :] for a in range(n_chunks)], axis=2)
    return fr[:, :, :n_fft].reshape(B * n_frames, n_fft)


def _stft_res_sums(sig2, batch, n_fft, hop, basis, nyq_col, vmem_budget, vmem_limit):
    """sig2: (2*B, T) f32 with rows [pred_0..pred_{B-1}, tgt_0..tgt_{B-1}].
    Returns (sum (|Y|-|X|)^2, sum |Y|^2, sum |log|Y|-log|X||, n_elements)."""
    _, T = sig2.shape
    n_bins = n_fft // 2 + 1
    n_k_tiles = (n_fft // 2) // TILE_K
    n_frames = 1 + T // hop
    pad = n_fft // 2

    xp = jnp.pad(sig2, ((0, 0), (pad, pad)), mode="reflect")           # f32

    # Nyquist bin (purely real): tiny strided correlation in XLA — avoids a
    # ~99%-padded extra k tile in the kernel and any frame re-read.
    nyq = lax.conv_general_dilated(
        xp[:, None, :], nyq_col[None, None, :], window_strides=(hop,),
        padding="VALID", dimension_numbers=("NCH", "OIH", "NCH"))[:, 0, :n_frames]
    nx, ny = nyq[:batch], nyq[batch:]
    x2n = jnp.maximum(nx * nx, _EPS)
    y2n = jnp.maximum(ny * ny, _EPS)
    ssd = jnp.sum((x2n + y2n) - 2.0 * jnp.sqrt(x2n * y2n))
    ssy = jnp.sum(y2n)
    sabs = 0.5 * jnp.sum(jnp.abs(jnp.log(y2n) - jnp.log(x2n)))

    # Frames for bins 0..n_fft/2-1, built directly in the matmul dtype so the
    # XLA concat write and the kernel read are half-size.
    fr = _frames_from_padded(xp.astype(MATMUL_DTYPE), n_fft, hop, n_frames)
    N = batch * n_frames
    fr = fr.reshape(2, N, n_fft)                  # [pred frames ; target frames]

    # Row-tile sizing from the per-generation VMEM budget (double-buffered
    # frames + resident double-buffered basis + scratch + temp allowance).
    basis_bytes = 2 * basis.size * basis.dtype.itemsize
    per_row = 8 * n_fft + 3 * TILE_K * 4 + 6144
    r_cap = max(8, (vmem_budget - basis_bytes) // per_row // 8 * 8)
    # Keep >= 2 row tiles when possible so the "parallel" axis can shard
    # across v7x's two TensorCores.
    R = max(8, min(r_cap, _round_up(max(_cdiv(N, 2), 8), 8)))
    n_row_tiles = _cdiv(N, R)
    N_pad = n_row_tiles * R
    if N_pad > N:
        fr = jnp.pad(fr, ((0, 0), (0, N_pad - N), (0, 0)))

    partials = pl.pallas_call(
        _stft_tile_kernel,
        out_shape=jax.ShapeDtypeStruct((n_row_tiles, 8, 128), jnp.float32),
        grid=(n_row_tiles, n_k_tiles),
        in_specs=[
            # stacked pred+target frames for the current row tile
            pl.BlockSpec((2, R, n_fft), lambda r, k: (0, r, 0)),
            # full fused basis, fetched once (constant index_map)
            pl.BlockSpec((n_k_tiles, n_fft, 2 * TILE_K), lambda r, k: (0, 0, 0)),
        ],
        out_specs=pl.BlockSpec((1, 8, 128), lambda r, k: (r, 0, 0)),
        scratch_shapes=[pltpu.VMEM((R, TILE_K), jnp.float32)] * 3,
        compiler_params=pltpu.CompilerParams(
            dimension_semantics=("parallel", "arbitrary"),
            vmem_limit_bytes=vmem_limit),
    )(fr, basis)

    ssd = ssd + jnp.sum(partials[:, 0, 0])
    ssy = ssy + jnp.sum(partials[:, 0, 1])
    sabs = sabs + jnp.sum(partials[:, 0, 2])

    # Invariant: padded (all-zero) frame rows give x2 = y2 = _EPS exactly, so
    # they add exactly eps per bin to sum|Y|^2 and ~0 to the other two sums.
    # Subtract that constant instead of masking inside the kernel.
    ssy = ssy - (N_pad - N) * (n_fft // 2) * _EPS

    n_elems = N * n_bins
    return ssd, ssy, sabs, n_elems


def _l1_mean(pred, target, vmem_limit):
    B = pred.shape[0]
    p2 = pred.reshape(B, -1)
    t2 = target.reshape(B, -1)
    T = p2.shape[1]
    Bp = _round_up(B, 8)
    # ~4 MiB f32 per input block (memory-bound; big tiles amortize step overhead).
    tt_cap = max(128, (4 * 1024 * 1024) // (4 * Bp) // 128 * 128)
    TT = min(_round_up(T, 128), tt_cap)
    Tp = _round_up(T, TT)
    p2 = jnp.pad(p2, ((0, Bp - B), (0, Tp - T)))
    t2 = jnp.pad(t2, ((0, Bp - B), (0, Tp - T)))
    n_tiles = Tp // TT

    partials = pl.pallas_call(
        _l1_kernel,
        out_shape=jax.ShapeDtypeStruct((n_tiles, 8, 128), jnp.float32),
        grid=(n_tiles,),
        in_specs=[
            pl.BlockSpec((Bp, TT), lambda j: (0, j)),
            pl.BlockSpec((Bp, TT), lambda j: (0, j)),
        ],
        out_specs=pl.BlockSpec((1, 8, 128), lambda j: (j, 0, 0)),
        compiler_params=pltpu.CompilerParams(
            dimension_semantics=("parallel",),
            vmem_limit_bytes=vmem_limit),
    )(p2, t2)
    return jnp.sum(partials[:, 0, 0]) / pred.size


# ---------------------------------------------------------------------------
# CombinedLoss forward
# ---------------------------------------------------------------------------
def _combined_loss_impl(pred, target, bases, vmem_budget, vmem_limit):
    B = pred.shape[0]
    sig2 = jnp.concatenate([pred[:, 0, :], target[:, 0, :]], axis=0)   # (2B, T)

    l1_term = _l1_mean(pred, target, vmem_limit)

    sc_total = 0.0
    mag_total = 0.0
    for (basis, nyq_col), n_fft, hop in zip(bases, FFT_SIZES, HOP_SIZES):
        ssd, ssy, sabs, n_elems = _stft_res_sums(
            sig2, B, n_fft, hop, basis, nyq_col, vmem_budget, vmem_limit)
        sc_total = sc_total + jnp.sqrt(jnp.maximum(ssd, 0.0)) / jnp.sqrt(ssy)
        mag_total = mag_total + sabs / n_elems
    n_res = len(FFT_SIZES)
    sc_loss = FACTOR_SC * (sc_total / n_res)
    mag_loss = FACTOR_MAG * (mag_total / n_res)
    return l1_term + sc_loss + mag_loss


_combined_loss_jit = jax.jit(_combined_loss_impl, static_argnums=(3, 4))


def combined_loss(pred, target):
    """pred, target: (B, 1, T) float32 -> scalar loss (matches PyTorch CombinedLoss)."""
    budget, limit = _vmem_plan()
    return _combined_loss_jit(pred, target, _get_bases(), budget, limit)


# ---------------------------------------------------------------------------
# Pure-JAX (FFT-based) reference for validation
# ---------------------------------------------------------------------------
def _reference_combined_loss(pred, target):
    p2 = pred[:, 0, :]
    t2 = target[:, 0, :]
    l1 = jnp.mean(jnp.abs(pred - target))
    sc_total = 0.0
    mag_total = 0.0
    for n_fft, hop, wl in zip(FFT_SIZES, HOP_SIZES, WIN_LENGTHS):
        def mags(sig):
            pad = n_fft // 2
            xp = jnp.pad(sig, ((0, 0), (pad, pad)), mode="reflect")
            nf = 1 + sig.shape[1] // hop
            idx = jnp.arange(nf)[:, None] * hop + jnp.arange(n_fft)[None, :]
            fr = xp[:, idx]
            n = jnp.arange(wl, dtype=jnp.float32)
            win = 0.5 - 0.5 * jnp.cos(2.0 * jnp.pi * n / wl)
            lp = (n_fft - wl) // 2
            winf = jnp.pad(win, (lp, n_fft - wl - lp))
            spec = jnp.fft.rfft(fr * winf, axis=-1)
            p = jnp.real(spec) ** 2 + jnp.imag(spec) ** 2
            return jnp.sqrt(jnp.maximum(p, 1e-7))
        xm = mags(p2)
        ym = mags(t2)
        sc_total += jnp.linalg.norm(ym - xm) / jnp.linalg.norm(ym)
        mag_total += jnp.mean(jnp.abs(jnp.log(ym) - jnp.log(xm)))
    n_res = len(FFT_SIZES)
    return l1 + sc_total / n_res + mag_total / n_res


if __name__ == "__main__":
    key = jax.random.PRNGKey(0)
    k1, k2 = jax.random.split(key)
    B, T = 2, 2400                    # T > largest n_fft//2 so 'reflect' pad is valid
    pred = jax.random.normal(k1, (B, 1, T), dtype=jnp.float32)
    target = jax.random.normal(k2, (B, 1, T), dtype=jnp.float32)

    loss = combined_loss(pred, target)
    jax.block_until_ready(loss)
    assert loss.shape == () and bool(jnp.isfinite(loss))

    ref = _reference_combined_loss(pred, target)
    rel = abs(float(loss) - float(ref)) / max(abs(float(ref)), 1e-6)
    # 3e-2 tolerance accounts for bf16 MXU operands (set MATMUL_DTYPE=f32 for parity).
    assert rel < 3e-2, f"mismatch: pallas={float(loss)} ref={float(ref)} rel={rel}"

    print("KERNEL_OK")
</pallas_src>

<mosaic_0001>
module attributes {stable_mosaic.version = 11 : i64} {
  func.func @_l1_kernel(%arg0: i32, %arg1: memref<8x2432xf32, #tpu.memory_space<vmem>>, %arg2: memref<8x2432xf32, #tpu.memory_space<vmem>>, %arg3: memref<1x8x128xf32, #tpu.memory_space<vmem>>) attributes {dimension_semantics = [#tpu.dimension_semantics<parallel>], iteration_bounds = array<i64: 1>, scalar_prefetch = 0 : i64, scratch_operands = 0 : i64, tpu.core_type = #tpu.core_type<tc>, window_params = [{transform_indices = @transform_0, window_bounds = array<i64: 8, 2432>}, {transform_indices = @transform_1, window_bounds = array<i64: 8, 2432>}, {transform_indices = @transform_2, window_bounds = array<i64: 1, 8, 128>}]} {
    %cst = arith.constant 0.000000e+00 : f32
    %0 = vector.broadcast %cst : f32 to vector<1x8x128xf32>
    %c0 = arith.constant 0 : index
    %c0_0 = arith.constant 0 : index
    %1 = vector.load %arg1[%c0, %c0_0] : memref<8x2432xf32, #tpu.memory_space<vmem>>, vector<8x2432xf32>
    %c0_1 = arith.constant 0 : index
    %c0_2 = arith.constant 0 : index
    %2 = vector.load %arg2[%c0_1, %c0_2] : memref<8x2432xf32, #tpu.memory_space<vmem>>, vector<8x2432xf32>
    %3 = arith.subf %1, %2 : vector<8x2432xf32>
    %4 = math.absf %3 : vector<8x2432xf32>
    %5 = vector.shape_cast %4 : vector<8x2432xf32> to vector<1x8x2432xf32>
    %cst_3 = arith.constant dense<0.000000e+00> : vector<1xf32>
    %6 = vector.multi_reduction <add>, %5, %cst_3 [1, 2] : vector<1x8x2432xf32> to vector<1xf32>
    %7 = vector.shape_cast %6 : vector<1xf32> to vector<1x1x1xf32>
    %8 = vector.extract %7[0, 0, 0] : f32 from vector<1x1x1xf32>
    %9 = vector.broadcast %8 : f32 to vector<1x8x128xf32>
    %10 = arith.addf %0, %9 : vector<1x8x128xf32>
    %c0_4 = arith.constant 0 : index
    %c0_5 = arith.constant 0 : index
    %c0_6 = arith.constant 0 : index
    %11 = vector.load %arg3[%c0_4, %c0_5, %c0_6] : memref<1x8x128xf32, #tpu.memory_space<vmem>>, vector<1x8x128xf32>
    tpu.vector_store %arg3[%c0_4, %c0_5, %c0_6], %10 {strides = array<i32>} : memref<1x8x128xf32, #tpu.memory_space<vmem>>, vector<1x8x128xf32>,
    return
  }
  func.func @transform_0(%arg0: i32) -> (i32, i32) {
    %c0_i32 = arith.constant 0 : i32
    %c0_i32_0 = arith.constant 0 : i32
    return %c0_i32, %arg0 : i32, i32
  }
  func.func @transform_1(%arg0: i32) -> (i32, i32) {
    %c0_i32 = arith.constant 0 : i32
    %c0_i32_0 = arith.constant 0 : i32
    return %c0_i32, %arg0 : i32, i32
  }
  func.func @transform_2(%arg0: i32) -> (i32, i32, i32) {
    %c0_i32 = arith.constant 0 : i32
    %c0_i32_0 = arith.constant 0 : i32
    %c0_i32_1 = arith.constant 0 : i32
    return %arg0, %c0_i32, %c0_i32_0 : i32, i32, i32
  }
}

module attributes {stable_mosaic.version = 11 : i64} {
  func.func @_stft_tile_kernel(%arg0: i32, %arg1: i32, %arg2: memref<2x56x512xbf16, #tpu.memory_space<vmem>>, %arg3: memref<2x512x256xbf16, #tpu.memory_space<vmem>>, %arg4: memref<1x8x128xf32, #tpu.memory_space<vmem>>, %arg5: memref<56x128xf32, #tpu.memory_space<vmem>>, %arg6: memref<56x128xf32, #tpu.memory_space<vmem>>, %arg7: memref<56x128xf32, #tpu.memory_space<vmem>>) attributes {dimension_semantics = [#tpu.dimension_semantics<parallel>, #tpu.dimension_semantics<arbitrary>], iteration_bounds = array<i64: 2, 2>, scalar_prefetch = 0 : i64, scratch_operands = 3 : i64, tpu.core_type = #tpu.core_type<tc>, window_params = [{transform_indices = @transform_0, window_bounds = array<i64: 2, 56, 512>}, {pipeline_mode = #tpu.pipeline_mode<synchronous>, transform_indices = @transform_1, window_bounds = array<i64: 2, 512, 256>}, {transform_indices = @transform_2, window_bounds = array<i64: 1, 8, 128>}]} {
    %c0_i32 = arith.constant 0 : i32
    %0 = arith.cmpi eq, %arg1, %c0_i32 : i32
    %1 = arith.extui %0 : i1 to i32
    %c0_i32_0 = arith.constant 0 : i32
    %2 = arith.cmpi ne, %1, %c0_i32_0 : i32
    scf.if %2 {
      %cst_24 = arith.constant 0.000000e+00 : f32
      %48 = vector.broadcast %cst_24 : f32 to vector<56x128xf32>
      %c0_25 = arith.constant 0 : index
      %c0_26 = arith.constant 0 : index
      %49 = vector.load %arg5[%c0_25, %c0_26] : memref<56x128xf32, #tpu.memory_space<vmem>>, vector<56x128xf32>
      tpu.vector_store %arg5[%c0_25, %c0_26], %48 {strides = array<i32>} : memref<56x128xf32, #tpu.memory_space<vmem>>, vector<56x128xf32>,
      %cst_27 = arith.constant 0.000000e+00 : f32
      %50 = vector.broadcast %cst_27 : f32 to vector<56x128xf32>
      %c0_28 = arith.constant 0 : index
      %c0_29 = arith.constant 0 : index
      %51 = vector.load %arg6[%c0_28, %c0_29] : memref<56x128xf32, #tpu.memory_space<vmem>>, vector<56x128xf32>
      tpu.vector_store %arg6[%c0_28, %c0_29], %50 {strides = array<i32>} : memref<56x128xf32, #tpu.memory_space<vmem>>, vector<56x128xf32>,
      %cst_30 = arith.constant 0.000000e+00 : f32
      %52 = vector.broadcast %cst_30 : f32 to vector<56x128xf32>
      %c0_31 = arith.constant 0 : index
      %c0_32 = arith.constant 0 : index
      %53 = vector.load %arg7[%c0_31, %c0_32] : memref<56x128xf32, #tpu.memory_space<vmem>>, vector<56x128xf32>
      tpu.vector_store %arg7[%c0_31, %c0_32], %52 {strides = array<i32>} : memref<56x128xf32, #tpu.memory_space<vmem>>, vector<56x128xf32>,
    } else {
    }
    %3 = arith.index_cast %arg1 : i32 to index
    %c0 = arith.constant 0 : index
    %c0_1 = arith.constant 0 : index
    %4 = vector.load %arg3[%3, %c0, %c0_1] : memref<2x512x256xbf16, #tpu.memory_space<vmem>>, vector<1x512x256xbf16>
    %5 = vector.shape_cast %4 : vector<1x512x256xbf16> to vector<512x256xbf16>
    %c0_2 = arith.constant 0 : index
    %c0_3 = arith.constant 0 : index
    %c0_4 = arith.constant 0 : index
    %6 = vector.load %arg2[%c0_2, %c0_3, %c0_4] : memref<2x56x512xbf16, #tpu.memory_space<vmem>>, vector<1x56x512xbf16>
    %7 = vector.shape_cast %6 : vector<1x56x512xbf16> to vector<56x512xbf16>
    %cst = arith.constant dense<0.000000e+00> : vector<56x256xf32>
    %8 = tpu.matmul %7, %5, %cst {dimension_numbers = #tpu.dot_dimension_numbers<[1], [0], [0], [1], [0, 0, 1, 1], [], []>} : vector<56x512xbf16>, vector<512x256xbf16>, vector<56x256xf32> -> vector<56x256xf32>
    %c1 = arith.constant 1 : index
    %c0_5 = arith.constant 0 : index
    %c0_6 = arith.constant 0 : index
    %9 = vector.load %arg2[%c1, %c0_5, %c0_6] : memref<2x56x512xbf16, #tpu.memory_space<vmem>>, vector<1x56x512xbf16>
    %10 = vector.shape_cast %9 : vector<1x56x512xbf16> to vector<56x512xbf16>
    %cst_7 = arith.constant dense<0.000000e+00> : vector<56x256xf32>
    %11 = tpu.matmul %10, %5, %cst_7 {dimension_numbers = #tpu.dot_dimension_numbers<[1], [0], [0], [1], [0, 0, 1, 1], [], []>} : vector<56x512xbf16>, vector<512x256xbf16>, vector<56x256xf32> -> vector<56x256xf32>
    %12 = vector.extract_strided_slice %8 {offsets = [0, 0], sizes = [56, 128], strides = [1, 1]} : vector<56x256xf32> to vector<56x128xf32>
    %13 = vector.extract_strided_slice %8 {offsets = [0, 128], sizes = [56, 128], strides = [1, 1]} : vector<56x256xf32> to vector<56x128xf32>
    %14 = vector.extract_strided_slice %11 {offsets = [0, 0], sizes = [56, 128], strides = [1, 1]} : vector<56x256xf32> to vector<56x128xf32>
    %15 = vector.extract_strided_slice %11 {offsets = [0, 128], sizes = [56, 128], strides = [1, 1]} : vector<56x256xf32> to vector<56x128xf32>
    %16 = arith.mulf %12, %12 : vector<56x128xf32>
    %17 = arith.mulf %13, %13 : vector<56x128xf32>
    %18 = arith.addf %16, %17 : vector<56x128xf32>
    %cst_8 = arith.constant 1.000000e-07 : f32
    %19 = vector.broadcast %cst_8 : f32 to vector<56x128xf32>
    %20 = arith.maximumf %18, %19 : vector<56x128xf32>
    %21 = arith.mulf %14, %14 : vector<56x128xf32>
    %22 = arith.mulf %15, %15 : vector<56x128xf32>
    %23 = arith.addf %21, %22 : vector<56x128xf32>
    %cst_9 = arith.constant 1.000000e-07 : f32
    %24 = vector.broadcast %cst_9 : f32 to vector<56x128xf32>
    %25 = arith.maximumf %23, %24 : vector<56x128xf32>
    %c0_10 = arith.constant 0 : index
    %c0_11 = arith.constant 0 : index
    %26 = vector.load %arg5[%c0_10, %c0_11] : memref<56x128xf32, #tpu.memory_space<vmem>>, vector<56x128xf32>
    %27 = arith.addf %20, %25 : vector<56x128xf32>
    %28 = arith.mulf %20, %25 : vector<56x128xf32>
    %29 = math.sqrt %28 : vector<56x128xf32>
    %cst_12 = arith.constant 2.000000e+00 : f32
    %30 = vector.broadcast %cst_12 : f32 to vector<56x128xf32>
    %31 = arith.mulf %30, %29 : vector<56x128xf32>
    %32 = arith.subf %27, %31 : vector<56x128xf32>
    %33 = arith.addf %26, %32 : vector<56x128xf32>
    %c0_13 = arith.constant 0 : index
    %c0_14 = arith.constant 0 : index
    %34 = vector.load %arg5[%c0_13, %c0_14] : memref<56x128xf32, #tpu.memory_space<vmem>>, vector<56x128xf32>
    tpu.vector_store %arg5[%c0_13, %c0_14], %33 {strides = array<i32>} : memref<56x128xf32, #tpu.memory_space<vmem>>, vector<56x128xf32>,
    %c0_15 = arith.constant 0 : index
    %c0_16 = arith.constant 0 : index
    %35 = vector.load %arg6[%c0_15, %c0_16] : memref<56x128xf32, #tpu.memory_space<vmem>>, vector<56x128xf32>
    %36 = arith.addf %35, %25 : vector<56x128xf32>
    %c0_17 = arith.constant 0 : index
    %c0_18 = arith.constant 0 : index
    %37 = vector.load %arg6[%c0_17, %c0_18] : memref<56x128xf32, #tpu.memory_space<vmem>>, vector<56x128xf32>
    tpu.vector_store %arg6[%c0_17, %c0_18], %36 {strides = array<i32>} : memref<56x128xf32, #tpu.memory_space<vmem>>, vector<56x128xf32>,
    %c0_19 = arith.constant 0 : index
    %c0_20 = arith.constant 0 : index
    %38 = vector.load %arg7[%c0_19, %c0_20] : memref<56x128xf32, #tpu.memory_space<vmem>>, vector<56x128xf32>
    %39 = tpu.reciprocal %20 {approx = true} : vector<56x128xf32> -> vector<56x128xf32>
    %40 = arith.mulf %25, %39 : vector<56x128xf32>
    %41 = math.log %40 : vector<56x128xf32>
    %42 = math.absf %41 : vector<56x128xf32>
    %43 = arith.addf %38, %42 : vector<56x128xf32>
    %c0_21 = arith.constant 0 : index
    %c0_22 = arith.constant 0 : index
    %44 = vector.load %arg7[%c0_21, %c0_22] : memref<56x128xf32, #tpu.memory_space<vmem>>, vector<56x128xf32>
    tpu.vector_store %arg7[%c0_21, %c0_22], %43 {strides = array<i32>} : memref<56x128xf32, #tpu.memory_space<vmem>>, vector<56x128xf32>,
    %c1_i32 = arith.constant 1 : i32
    %45 = arith.cmpi eq, %arg1, %c1_i32 : i32
    %46 = arith.extui %45 : i1 to i32
    %c0_i32_23 = arith.constant 0 : i32
    %47 = arith.cmpi ne, %46, %c0_i32_23 : i32
    scf.if %47 {
      %48 = tpu.iota {dimensions = array<i32: 2>} : vector<1x8x128xi32>
      %c0_24 = arith.constant 0 : index
      %c0_25 = arith.constant 0 : index
      %49 = vector.load %arg5[%c0_24, %c0_25] : memref<56x128xf32, #tpu.memory_space<vmem>>, vector<56x128xf32>
      %50 = vector.shape_cast %49 : vector<56x128xf32> to vector<1x56x128xf32>
      %cst_26 = arith.constant dense<0.000000e+00> : vector<1xf32>
      %51 = vector.multi_reduction <add>, %50, %cst_26 [1, 2] : vector<1x56x128xf32> to vector<1xf32>
      %52 = vector.shape_cast %51 : vector<1xf32> to vector<1x1x1xf32>
      %53 = vector.extract %52[0, 0, 0] : f32 from vector<1x1x1xf32>
      %c0_27 = arith.constant 0 : index
      %c0_28 = arith.constant 0 : index
      %54 = vector.load %arg6[%c0_27, %c0_28] : memref<56x128xf32, #tpu.memory_space<vmem>>, vector<56x128xf32>
      %55 = vector.shape_cast %54 : vector<56x128xf32> to vector<1x56x128xf32>
      %cst_29 = arith.constant dense<0.000000e+00> : vector<1xf32>
      %56 = vector.multi_reduction <add>, %55, %cst_29 [1, 2] : vector<1x56x128xf32> to vector<1xf32>
      %57 = vector.shape_cast %56 : vector<1xf32> to vector<1x1x1xf32>
      %58 = vector.extract %57[0, 0, 0] : f32 from vector<1x1x1xf32>
      %c0_30 = arith.constant 0 : index
      %c0_31 = arith.constant 0 : index
      %59 = vector.load %arg7[%c0_30, %c0_31] : memref<56x128xf32, #tpu.memory_space<vmem>>, vector<56x128xf32>
      %60 = vector.shape_cast %59 : vector<56x128xf32> to vector<1x56x128xf32>
      %cst_32 = arith.constant dense<0.000000e+00> : vector<1xf32>
      %61 = vector.multi_reduction <add>, %60, %cst_32 [1, 2] : vector<1x56x128xf32> to vector<1xf32>
      %62 = vector.shape_cast %61 : vector<1xf32> to vector<1x1x1xf32>
      %63 = vector.extract %62[0, 0, 0] : f32 from vector<1x1x1xf32>
      %cst_33 = arith.constant 5.000000e-01 : f32
      %64 = arith.mulf %cst_33, %63 : f32
      %c0_i32_34 = arith.constant 0 : i32
      %65 = vector.broadcast %c0_i32_34 : i32 to vector<1x8x128xi32>
      %66 = arith.cmpi eq, %48, %65 : vector<1x8x128xi32>
      %c1_i32_35 = arith.constant 1 : i32
      %67 = vector.broadcast %c1_i32_35 : i32 to vector<1x8x128xi32>
      %68 = arith.cmpi eq, %48, %67 : vector<1x8x128xi32>
      %c2_i32 = arith.constant 2 : i32
      %69 = vector.broadcast %c2_i32 : i32 to vector<1x8x128xi32>
      %70 = arith.cmpi eq, %48, %69 : vector<1x8x128xi32>
      %cst_36 = arith.constant 0.000000e+00 : f32
      %71 = vector.broadcast %64 : f32 to vector<1x8x128xf32>
      %72 = vector.broadcast %cst_36 : f32 to vector<1x8x128xf32>
      %73 = arith.select %70, %71, %72 : vector<1x8x128xi1>, vector<1x8x128xf32>
      %74 = vector.broadcast %58 : f32 to vector<1x8x128xf32>
      %75 = arith.select %68, %74, %73 : vector<1x8x128xi1>, vector<1x8x128xf32>
      %76 = vector.broadcast %53 : f32 to vector<1x8x128xf32>
      %77 = arith.select %66, %76, %75 : vector<1x8x128xi1>, vector<1x8x128xf32>
      %c0_37 = arith.constant 0 : index
      %c0_38 = arith.constant 0 : index
      %c0_39 = arith.constant 0 : index
      %78 = vector.load %arg4[%c0_37, %c0_38, %c0_39] : memref<1x8x128xf32, #tpu.memory_space<vmem>>, vector<1x8x128xf32>
      tpu.vector_store %arg4[%c0_37, %c0_38, %c0_39], %77 {strides = array<i32>} : memref<1x8x128xf32, #tpu.memory_space<vmem>>, vector<1x8x128xf32>,
    } else {
    }
    return
  }
  func.func @transform_0(%arg0: i32, %arg1: i32) -> (i32, i32, i32) {
    %c0_i32 = arith.constant 0 : i32
    %c0_i32_0 = arith.constant 0 : i32
    %c0_i32_1 = arith.constant 0 : i32
    return %c0_i32, %arg0, %c0_i32_0 : i32, i32, i32
  }
  func.func @transform_1(%arg0: i32, %arg1: i32) -> (i32, i32, i32) {
    %c0_i32 = arith.constant 0 : i32
    %c0_i32_0 = arith.constant 0 : i32
    %c0_i32_1 = arith.constant 0 : i32
    %c0_i32_2 = arith.constant 0 : i32
    return %c0_i32, %c0_i32_0, %c0_i32_1 : i32, i32, i32
  }
  func.func @transform_2(%arg0: i32, %arg1: i32) -> (i32, i32, i32) {
    %c0_i32 = arith.constant 0 : i32
    %c0_i32_0 = arith.constant 0 : i32
    %c0_i32_1 = arith.constant 0 : i32
    return %arg0, %c0_i32, %c0_i32_0 : i32, i32, i32
  }
}

module attributes {stable_mosaic.version = 11 : i64} {
  func.func @_stft_tile_kernel(%arg0: i32, %arg1: i32, %arg2: memref<2x24x1024xbf16, #tpu.memory_space<vmem>>, %arg3: memref<4x1024x256xbf16, #tpu.memory_space<vmem>>, %arg4: memref<1x8x128xf32, #tpu.memory_space<vmem>>, %arg5: memref<24x128xf32, #tpu.memory_space<vmem>>, %arg6: memref<24x128xf32, #tpu.memory_space<vmem>>, %arg7: memref<24x128xf32, #tpu.memory_space<vmem>>) attributes {dimension_semantics = [#tpu.dimension_semantics<parallel>, #tpu.dimension_semantics<arbitrary>], iteration_bounds = array<i64: 2, 4>, scalar_prefetch = 0 : i64, scratch_operands = 3 : i64, tpu.core_type = #tpu.core_type<tc>, window_params = [{transform_indices = @transform_0, window_bounds = array<i64: 2, 24, 1024>}, {pipeline_mode = #tpu.pipeline_mode<synchronous>, transform_indices = @transform_1, window_bounds = array<i64: 4, 1024, 256>}, {transform_indices = @transform_2, window_bounds = array<i64: 1, 8, 128>}]} {
    %c0_i32 = arith.constant 0 : i32
    %0 = arith.cmpi eq, %arg1, %c0_i32 : i32
    %1 = arith.extui %0 : i1 to i32
    %c0_i32_0 = arith.constant 0 : i32
    %2 = arith.cmpi ne, %1, %c0_i32_0 : i32
    scf.if %2 {
      %cst_24 = arith.constant 0.000000e+00 : f32
      %48 = vector.broadcast %cst_24 : f32 to vector<24x128xf32>
      %c0_25 = arith.constant 0 : index
      %c0_26 = arith.constant 0 : index
      %49 = vector.load %arg5[%c0_25, %c0_26] : memref<24x128xf32, #tpu.memory_space<vmem>>, vector<24x128xf32>
      tpu.vector_store %arg5[%c0_25, %c0_26], %48 {strides = array<i32>} : memref<24x128xf32, #tpu.memory_space<vmem>>, vector<24x128xf32>,
      %cst_27 = arith.constant 0.000000e+00 : f32
      %50 = vector.broadcast %cst_27 : f32 to vector<24x128xf32>
      %c0_28 = arith.constant 0 : index
      %c0_29 = arith.constant 0 : index
      %51 = vector.load %arg6[%c0_28, %c0_29] : memref<24x128xf32, #tpu.memory_space<vmem>>, vector<24x128xf32>
      tpu.vector_store %arg6[%c0_28, %c0_29], %50 {strides = array<i32>} : memref<24x128xf32, #tpu.memory_space<vmem>>, vector<24x128xf32>,
      %cst_30 = arith.constant 0.000000e+00 : f32
      %52 = vector.broadcast %cst_30 : f32 to vector<24x128xf32>
      %c0_31 = arith.constant 0 : index
      %c0_32 = arith.constant 0 : index
      %53 = vector.load %arg7[%c0_31, %c0_32] : memref<24x128xf32, #tpu.memory_space<vmem>>, vector<24x128xf32>
      tpu.vector_store %arg7[%c0_31, %c0_32], %52 {strides = array<i32>} : memref<24x128xf32, #tpu.memory_space<vmem>>, vector<24x128xf32>,
    } else {
    }
    %3 = arith.index_cast %arg1 : i32 to index
    %c0 = arith.constant 0 : index
    %c0_1 = arith.constant 0 : index
    %4 = vector.load %arg3[%3, %c0, %c0_1] : memref<4x1024x256xbf16, #tpu.memory_space<vmem>>, vector<1x1024x256xbf16>
    %5 = vector.shape_cast %4 : vector<1x1024x256xbf16> to vector<1024x256xbf16>
    %c0_2 = arith.constant 0 : index
    %c0_3 = arith.constant 0 : index
    %c0_4 = arith.constant 0 : index
    %6 = vector.load %arg2[%c0_2, %c0_3, %c0_4] : memref<2x24x1024xbf16, #tpu.memory_space<vmem>>, vector<1x24x1024xbf16>
    %7 = vector.shape_cast %6 : vector<1x24x1024xbf16> to vector<24x1024xbf16>
    %cst = arith.constant dense<0.000000e+00> : vector<24x256xf32>
    %8 = tpu.matmul %7, %5, %cst {dimension_numbers = #tpu.dot_dimension_numbers<[1], [0], [0], [1], [0, 0, 1, 1], [], []>} : vector<24x1024xbf16>, vector<1024x256xbf16>, vector<24x256xf32> -> vector<24x256xf32>
    %c1 = arith.constant 1 : index
    %c0_5 = arith.constant 0 : index
    %c0_6 = arith.constant 0 : index
    %9 = vector.load %arg2[%c1, %c0_5, %c0_6] : memref<2x24x1024xbf16, #tpu.memory_space<vmem>>, vector<1x24x1024xbf16>
    %10 = vector.shape_cast %9 : vector<1x24x1024xbf16> to vector<24x1024xbf16>
    %cst_7 = arith.constant dense<0.000000e+00> : vector<24x256xf32>
    %11 = tpu.matmul %10, %5, %cst_7 {dimension_numbers = #tpu.dot_dimension_numbers<[1], [0], [0], [1], [0, 0, 1, 1], [], []>} : vector<24x1024xbf16>, vector<1024x256xbf16>, vector<24x256xf32> -> vector<24x256xf32>
    %12 = vector.extract_strided_slice %8 {offsets = [0, 0], sizes = [24, 128], strides = [1, 1]} : vector<24x256xf32> to vector<24x128xf32>
    %13 = vector.extract_strided_slice %8 {offsets = [0, 128], sizes = [24, 128], strides = [1, 1]} : vector<24x256xf32> to vector<24x128xf32>
    %14 = vector.extract_strided_slice %11 {offsets = [0, 0], sizes = [24, 128], strides = [1, 1]} : vector<24x256xf32> to vector<24x128xf32>
    %15 = vector.extract_strided_slice %11 {offsets = [0, 128], sizes = [24, 128], strides = [1, 1]} : vector<24x256xf32> to vector<24x128xf32>
    %16 = arith.mulf %12, %12 : vector<24x128xf32>
    %17 = arith.mulf %13, %13 : vector<24x128xf32>
    %18 = arith.addf %16, %17 : vector<24x128xf32>
    %cst_8 = arith.constant 1.000000e-07 : f32
    %19 = vector.broadcast %cst_8 : f32 to vector<24x128xf32>
    %20 = arith.maximumf %18, %19 : vector<24x128xf32>
    %21 = arith.mulf %14, %14 : vector<24x128xf32>
    %22 = arith.mulf %15, %15 : vector<24x128xf32>
    %23 = arith.addf %21, %22 : vector<24x128xf32>
    %cst_9 = arith.constant 1.000000e-07 : f32
    %24 = vector.broadcast %cst_9 : f32 to vector<24x128xf32>
    %25 = arith.maximumf %23, %24 : vector<24x128xf32>
    %c0_10 = arith.constant 0 : index
    %c0_11 = arith.constant 0 : index
    %26 = vector.load %arg5[%c0_10, %c0_11] : memref<24x128xf32, #tpu.memory_space<vmem>>, vector<24x128xf32>
    %27 = arith.addf %20, %25 : vector<24x128xf32>
    %28 = arith.mulf %20, %25 : vector<24x128xf32>
    %29 = math.sqrt %28 : vector<24x128xf32>
    %cst_12 = arith.constant 2.000000e+00 : f32
    %30 = vector.broadcast %cst_12 : f32 to vector<24x128xf32>
    %31 = arith.mulf %30, %29 : vector<24x128xf32>
    %32 = arith.subf %27, %31 : vector<24x128xf32>
    %33 = arith.addf %26, %32 : vector<24x128xf32>
    %c0_13 = arith.constant 0 : index
    %c0_14 = arith.constant 0 : index
    %34 = vector.load %arg5[%c0_13, %c0_14] : memref<24x128xf32, #tpu.memory_space<vmem>>, vector<24x128xf32>
    tpu.vector_store %arg5[%c0_13, %c0_14], %33 {strides = array<i32>} : memref<24x128xf32, #tpu.memory_space<vmem>>, vector<24x128xf32>,
    %c0_15 = arith.constant 0 : index
    %c0_16 = arith.constant 0 : index
    %35 = vector.load %arg6[%c0_15, %c0_16] : memref<24x128xf32, #tpu.memory_space<vmem>>, vector<24x128xf32>
    %36 = arith.addf %35, %25 : vector<24x128xf32>
    %c0_17 = arith.constant 0 : index
    %c0_18 = arith.constant 0 : index
    %37 = vector.load %arg6[%c0_17, %c0_18] : memref<24x128xf32, #tpu.memory_space<vmem>>, vector<24x128xf32>
    tpu.vector_store %arg6[%c0_17, %c0_18], %36 {strides = array<i32>} : memref<24x128xf32, #tpu.memory_space<vmem>>, vector<24x128xf32>,
    %c0_19 = arith.constant 0 : index
    %c0_20 = arith.constant 0 : index
    %38 = vector.load %arg7[%c0_19, %c0_20] : memref<24x128xf32, #tpu.memory_space<vmem>>, vector<24x128xf32>
    %39 = tpu.reciprocal %20 {approx = true} : vector<24x128xf32> -> vector<24x128xf32>
    %40 = arith.mulf %25, %39 : vector<24x128xf32>
    %41 = math.log %40 : vector<24x128xf32>
    %42 = math.absf %41 : vector<24x128xf32>
    %43 = arith.addf %38, %42 : vector<24x128xf32>
    %c0_21 = arith.constant 0 : index
    %c0_22 = arith.constant 0 : index
    %44 = vector.load %arg7[%c0_21, %c0_22] : memref<24x128xf32, #tpu.memory_space<vmem>>, vector<24x128xf32>
    tpu.vector_store %arg7[%c0_21, %c0_22], %43 {strides = array<i32>} : memref<24x128xf32, #tpu.memory_space<vmem>>, vector<24x128xf32>,
    %c3_i32 = arith.constant 3 : i32
    %45 = arith.cmpi eq, %arg1, %c3_i32 : i32
    %46 = arith.extui %45 : i1 to i32
    %c0_i32_23 = arith.constant 0 : i32
    %47 = arith.cmpi ne, %46, %c0_i32_23 : i32
    scf.if %47 {
      %48 = tpu.iota {dimensions = array<i32: 2>} : vector<1x8x128xi32>
      %c0_24 = arith.constant 0 : index
      %c0_25 = arith.constant 0 : index
      %49 = vector.load %arg5[%c0_24, %c0_25] : memref<24x128xf32, #tpu.memory_space<vmem>>, vector<24x128xf32>
      %50 = vector.shape_cast %49 : vector<24x128xf32> to vector<1x24x128xf32>
      %cst_26 = arith.constant dense<0.000000e+00> : vector<1xf32>
      %51 = vector.multi_reduction <add>, %50, %cst_26 [1, 2] : vector<1x24x128xf32> to vector<1xf32>
      %52 = vector.shape_cast %51 : vector<1xf32> to vector<1x1x1xf32>
      %53 = vector.extract %52[0, 0, 0] : f32 from vector<1x1x1xf32>
      %c0_27 = arith.constant 0 : index
      %c0_28 = arith.constant 0 : index
      %54 = vector.load %arg6[%c0_27, %c0_28] : memref<24x128xf32, #tpu.memory_space<vmem>>, vector<24x128xf32>
      %55 = vector.shape_cast %54 : vector<24x128xf32> to vector<1x24x128xf32>
      %cst_29 = arith.constant dense<0.000000e+00> : vector<1xf32>
      %56 = vector.multi_reduction <add>, %55, %cst_29 [1, 2] : vector<1x24x128xf32> to vector<1xf32>
      %57 = vector.shape_cast %56 : vector<1xf32> to vector<1x1x1xf32>
      %58 = vector.extract %57[0, 0, 0] : f32 from vector<1x1x1xf32>
      %c0_30 = arith.constant 0 : index
      %c0_31 = arith.constant 0 : index
      %59 = vector.load %arg7[%c0_30, %c0_31] : memref<24x128xf32, #tpu.memory_space<vmem>>, vector<24x128xf32>
      %60 = vector.shape_cast %59 : vector<24x128xf32> to vector<1x24x128xf32>
      %cst_32 = arith.constant dense<0.000000e+00> : vector<1xf32>
      %61 = vector.multi_reduction <add>, %60, %cst_32 [1, 2] : vector<1x24x128xf32> to vector<1xf32>
      %62 = vector.shape_cast %61 : vector<1xf32> to vector<1x1x1xf32>
      %63 = vector.extract %62[0, 0, 0] : f32 from vector<1x1x1xf32>
      %cst_33 = arith.constant 5.000000e-01 : f32
      %64 = arith.mulf %cst_33, %63 : f32
      %c0_i32_34 = arith.constant 0 : i32
      %65 = vector.broadcast %c0_i32_34 : i32 to vector<1x8x128xi32>
      %66 = arith.cmpi eq, %48, %65 : vector<1x8x128xi32>
      %c1_i32 = arith.constant 1 : i32
      %67 = vector.broadcast %c1_i32 : i32 to vector<1x8x128xi32>
      %68 = arith.cmpi eq, %48, %67 : vector<1x8x128xi32>
      %c2_i32 = arith.constant 2 : i32
      %69 = vector.broadcast %c2_i32 : i32 to vector<1x8x128xi32>
      %70 = arith.cmpi eq, %48, %69 : vector<1x8x128xi32>
      %cst_35 = arith.constant 0.000000e+00 : f32
      %71 = vector.broadcast %64 : f32 to vector<1x8x128xf32>
      %72 = vector.broadcast %cst_35 : f32 to vector<1x8x128xf32>
      %73 = arith.select %70, %71, %72 : vector<1x8x128xi1>, vector<1x8x128xf32>
      %74 = vector.broadcast %58 : f32 to vector<1x8x128xf32>
      %75 = arith.select %68, %74, %73 : vector<1x8x128xi1>, vector<1x8x128xf32>
      %76 = vector.broadcast %53 : f32 to vector<1x8x128xf32>
      %77 = arith.select %66, %76, %75 : vector<1x8x128xi1>, vector<1x8x128xf32>
      %c0_36 = arith.constant 0 : index
      %c0_37 = arith.constant 0 : index
      %c0_38 = arith.constant 0 : index
      %78 = vector.load %arg4[%c0_36, %c0_37, %c0_38] : memref<1x8x128xf32, #tpu.memory_space<vmem>>, vector<1x8x128xf32>
      tpu.vector_store %arg4[%c0_36, %c0_37, %c0_38], %77 {strides = array<i32>} : memref<1x8x128xf32, #tpu.memory_space<vmem>>, vector<1x8x128xf32>,
    } else {
    }
    return
  }
  func.func @transform_0(%arg0: i32, %arg1: i32) -> (i32, i32, i32) {
    %c0_i32 = arith.constant 0 : i32
    %c0_i32_0 = arith.constant 0 : i32
    %c0_i32_1 = arith.constant 0 : i32
    return %c0_i32, %arg0, %c0_i32_0 : i32, i32, i32
  }
  func.func @transform_1(%arg0: i32, %arg1: i32) -> (i32, i32, i32) {
    %c0_i32 = arith.constant 0 : i32
    %c0_i32_0 = arith.constant 0 : i32
    %c0_i32_1 = arith.constant 0 : i32
    %c0_i32_2 = arith.constant 0 : i32
    return %c0_i32, %c0_i32_0, %c0_i32_1 : i32, i32, i32
  }
  func.func @transform_2(%arg0: i32, %arg1: i32) -> (i32, i32, i32) {
    %c0_i32 = arith.constant 0 : i32
    %c0_i32_0 = arith.constant 0 : i32
    %c0_i32_1 = arith.constant 0 : i32
    return %arg0, %c0_i32, %c0_i32_0 : i32, i32, i32
  }
}

module attributes {stable_mosaic.version = 11 : i64} {
  func.func @_stft_tile_kernel(%arg0: i32, %arg1: i32, %arg2: memref<2x16x2048xbf16, #tpu.memory_space<vmem>>, %arg3: memref<8x2048x256xbf16, #tpu.memory_space<vmem>>, %arg4: memref<1x8x128xf32, #tpu.memory_space<vmem>>, %arg5: memref<16x128xf32, #tpu.memory_space<vmem>>, %arg6: memref<16x128xf32, #tpu.memory_space<vmem>>, %arg7: memref<16x128xf32, #tpu.memory_space<vmem>>) attributes {dimension_semantics = [#tpu.dimension_semantics<parallel>, #tpu.dimension_semantics<arbitrary>], iteration_bounds = array<i64: 2, 8>, scalar_prefetch = 0 : i64, scratch_operands = 3 : i64, tpu.core_type = #tpu.core_type<tc>, window_params = [{transform_indices = @transform_0, window_bounds = array<i64: 2, 16, 2048>}, {pipeline_mode = #tpu.pipeline_mode<synchronous>, transform_indices = @transform_1, window_bounds = array<i64: 8, 2048, 256>}, {transform_indices = @transform_2, window_bounds = array<i64: 1, 8, 128>}]} {
    %c0_i32 = arith.constant 0 : i32
    %0 = arith.cmpi eq, %arg1, %c0_i32 : i32
    %1 = arith.extui %0 : i1 to i32
    %c0_i32_0 = arith.constant 0 : i32
    %2 = arith.cmpi ne, %1, %c0_i32_0 : i32
    scf.if %2 {
      %cst_24 = arith.constant 0.000000e+00 : f32
      %48 = vector.broadcast %cst_24 : f32 to vector<16x128xf32>
      %c0_25 = arith.constant 0 : index
      %c0_26 = arith.constant 0 : index
      %49 = vector.load %arg5[%c0_25, %c0_26] : memref<16x128xf32, #tpu.memory_space<vmem>>, vector<16x128xf32>
      tpu.vector_store %arg5[%c0_25, %c0_26], %48 {strides = array<i32>} : memref<16x128xf32, #tpu.memory_space<vmem>>, vector<16x128xf32>,
      %cst_27 = arith.constant 0.000000e+00 : f32
      %50 = vector.broadcast %cst_27 : f32 to vector<16x128xf32>
      %c0_28 = arith.constant 0 : index
      %c0_29 = arith.constant 0 : index
      %51 = vector.load %arg6[%c0_28, %c0_29] : memref<16x128xf32, #tpu.memory_space<vmem>>, vector<16x128xf32>
      tpu.vector_store %arg6[%c0_28, %c0_29], %50 {strides = array<i32>} : memref<16x128xf32, #tpu.memory_space<vmem>>, vector<16x128xf32>,
      %cst_30 = arith.constant 0.000000e+00 : f32
      %52 = vector.broadcast %cst_30 : f32 to vector<16x128xf32>
      %c0_31 = arith.constant 0 : index
      %c0_32 = arith.constant 0 : index
      %53 = vector.load %arg7[%c0_31, %c0_32] : memref<16x128xf32, #tpu.memory_space<vmem>>, vector<16x128xf32>
      tpu.vector_store %arg7[%c0_31, %c0_32], %52 {strides = array<i32>} : memref<16x128xf32, #tpu.memory_space<vmem>>, vector<16x128xf32>,
    } else {
    }
    %3 = arith.index_cast %arg1 : i32 to index
    %c0 = arith.constant 0 : index
    %c0_1 = arith.constant 0 : index
    %4 = vector.load %arg3[%3, %c0, %c0_1] : memref<8x2048x256xbf16, #tpu.memory_space<vmem>>, vector<1x2048x256xbf16>
    %5 = vector.shape_cast %4 : vector<1x2048x256xbf16> to vector<2048x256xbf16>
    %c0_2 = arith.constant 0 : index
    %c0_3 = arith.constant 0 : index
    %c0_4 = arith.constant 0 : index
    %6 = vector.load %arg2[%c0_2, %c0_3, %c0_4] : memref<2x16x2048xbf16, #tpu.memory_space<vmem>>, vector<1x16x2048xbf16>
    %7 = vector.shape_cast %6 : vector<1x16x2048xbf16> to vector<16x2048xbf16>
    %cst = arith.constant dense<0.000000e+00> : vector<16x256xf32>
    %8 = tpu.matmul %7, %5, %cst {dimension_numbers = #tpu.dot_dimension_numbers<[1], [0], [0], [1], [0, 0, 1, 1], [], []>} : vector<16x2048xbf16>, vector<2048x256xbf16>, vector<16x256xf32> -> vector<16x256xf32>
    %c1 = arith.constant 1 : index
    %c0_5 = arith.constant 0 : index
    %c0_6 = arith.constant 0 : index
    %9 = vector.load %arg2[%c1, %c0_5, %c0_6] : memref<2x16x2048xbf16, #tpu.memory_space<vmem>>, vector<1x16x2048xbf16>
    %10 = vector.shape_cast %9 : vector<1x16x2048xbf16> to vector<16x2048xbf16>
    %cst_7 = arith.constant dense<0.000000e+00> : vector<16x256xf32>
    %11 = tpu.matmul %10, %5, %cst_7 {dimension_numbers = #tpu.dot_dimension_numbers<[1], [0], [0], [1], [0, 0, 1, 1], [], []>} : vector<16x2048xbf16>, vector<2048x256xbf16>, vector<16x256xf32> -> vector<16x256xf32>
    %12 = vector.extract_strided_slice %8 {offsets = [0, 0], sizes = [16, 128], strides = [1, 1]} : vector<16x256xf32> to vector<16x128xf32>
    %13 = vector.extract_strided_slice %8 {offsets = [0, 128], sizes = [16, 128], strides = [1, 1]} : vector<16x256xf32> to vector<16x128xf32>
    %14 = vector.extract_strided_slice %11 {offsets = [0, 0], sizes = [16, 128], strides = [1, 1]} : vector<16x256xf32> to vector<16x128xf32>
    %15 = vector.extract_strided_slice %11 {offsets = [0, 128], sizes = [16, 128], strides = [1, 1]} : vector<16x256xf32> to vector<16x128xf32>
    %16 = arith.mulf %12, %12 : vector<16x128xf32>
    %17 = arith.mulf %13, %13 : vector<16x128xf32>
    %18 = arith.addf %16, %17 : vector<16x128xf32>
    %cst_8 = arith.constant 1.000000e-07 : f32
    %19 = vector.broadcast %cst_8 : f32 to vector<16x128xf32>
    %20 = arith.maximumf %18, %19 : vector<16x128xf32>
    %21 = arith.mulf %14, %14 : vector<16x128xf32>
    %22 = arith.mulf %15, %15 : vector<16x128xf32>
    %23 = arith.addf %21, %22 : vector<16x128xf32>
    %cst_9 = arith.constant 1.000000e-07 : f32
    %24 = vector.broadcast %cst_9 : f32 to vector<16x128xf32>
    %25 = arith.maximumf %23, %24 : vector<16x128xf32>
    %c0_10 = arith.constant 0 : index
    %c0_11 = arith.constant 0 : index
    %26 = vector.load %arg5[%c0_10, %c0_11] : memref<16x128xf32, #tpu.memory_space<vmem>>, vector<16x128xf32>
    %27 = arith.addf %20, %25 : vector<16x128xf32>
    %28 = arith.mulf %20, %25 : vector<16x128xf32>
    %29 = math.sqrt %28 : vector<16x128xf32>
    %cst_12 = arith.constant 2.000000e+00 : f32
    %30 = vector.broadcast %cst_12 : f32 to vector<16x128xf32>
    %31 = arith.mulf %30, %29 : vector<16x128xf32>
    %32 = arith.subf %27, %31 : vector<16x128xf32>
    %33 = arith.addf %26, %32 : vector<16x128xf32>
    %c0_13 = arith.constant 0 : index
    %c0_14 = arith.constant 0 : index
    %34 = vector.load %arg5[%c0_13, %c0_14] : memref<16x128xf32, #tpu.memory_space<vmem>>, vector<16x128xf32>
    tpu.vector_store %arg5[%c0_13, %c0_14], %33 {strides = array<i32>} : memref<16x128xf32, #tpu.memory_space<vmem>>, vector<16x128xf32>,
    %c0_15 = arith.constant 0 : index
    %c0_16 = arith.constant 0 : index
    %35 = vector.load %arg6[%c0_15, %c0_16] : memref<16x128xf32, #tpu.memory_space<vmem>>, vector<16x128xf32>
    %36 = arith.addf %35, %25 : vector<16x128xf32>
    %c0_17 = arith.constant 0 : index
    %c0_18 = arith.constant 0 : index
    %37 = vector.load %arg6[%c0_17, %c0_18] : memref<16x128xf32, #tpu.memory_space<vmem>>, vector<16x128xf32>
    tpu.vector_store %arg6[%c0_17, %c0_18], %36 {strides = array<i32>} : memref<16x128xf32, #tpu.memory_space<vmem>>, vector<16x128xf32>,
    %c0_19 = arith.constant 0 : index
    %c0_20 = arith.constant 0 : index
    %38 = vector.load %arg7[%c0_19, %c0_20] : memref<16x128xf32, #tpu.memory_space<vmem>>, vector<16x128xf32>
    %39 = tpu.reciprocal %20 {approx = true} : vector<16x128xf32> -> vector<16x128xf32>
    %40 = arith.mulf %25, %39 : vector<16x128xf32>
    %41 = math.log %40 : vector<16x128xf32>
    %42 = math.absf %41 : vector<16x128xf32>
    %43 = arith.addf %38, %42 : vector<16x128xf32>
    %c0_21 = arith.constant 0 : index
    %c0_22 = arith.constant 0 : index
    %44 = vector.load %arg7[%c0_21, %c0_22] : memref<16x128xf32, #tpu.memory_space<vmem>>, vector<16x128xf32>
    tpu.vector_store %arg7[%c0_21, %c0_22], %43 {strides = array<i32>} : memref<16x128xf32, #tpu.memory_space<vmem>>, vector<16x128xf32>,
    %c7_i32 = arith.constant 7 : i32
    %45 = arith.cmpi eq, %arg1, %c7_i32 : i32
    %46 = arith.extui %45 : i1 to i32
    %c0_i32_23 = arith.constant 0 : i32
    %47 = arith.cmpi ne, %46, %c0_i32_23 : i32
    scf.if %47 {
      %48 = tpu.iota {dimensions = array<i32: 2>} : vector<1x8x128xi32>
      %c0_24 = arith.constant 0 : index
      %c0_25 = arith.constant 0 : index
      %49 = vector.load %arg5[%c0_24, %c0_25] : memref<16x128xf32, #tpu.memory_space<vmem>>, vector<16x128xf32>
      %50 = vector.shape_cast %49 : vector<16x128xf32> to vector<1x16x128xf32>
      %cst_26 = arith.constant dense<0.000000e+00> : vector<1xf32>
      %51 = vector.multi_reduction <add>, %50, %cst_26 [1, 2] : vector<1x16x128xf32> to vector<1xf32>
      %52 = vector.shape_cast %51 : vector<1xf32> to vector<1x1x1xf32>
      %53 = vector.extract %52[0, 0, 0] : f32 from vector<1x1x1xf32>
      %c0_27 = arith.constant 0 : index
      %c0_28 = arith.constant 0 : index
      %54 = vector.load %arg6[%c0_27, %c0_28] : memref<16x128xf32, #tpu.memory_space<vmem>>, vector<16x128xf32>
      %55 = vector.shape_cast %54 : vector<16x128xf32> to vector<1x16x128xf32>
      %cst_29 = arith.constant dense<0.000000e+00> : vector<1xf32>
      %56 = vector.multi_reduction <add>, %55, %cst_29 [1, 2] : vector<1x16x128xf32> to vector<1xf32>
      %57 = vector.shape_cast %56 : vector<1xf32> to vector<1x1x1xf32>
      %58 = vector.extract %57[0, 0, 0] : f32 from vector<1x1x1xf32>
      %c0_30 = arith.constant 0 : index
      %c0_31 = arith.constant 0 : index
      %59 = vector.load %arg7[%c0_30, %c0_31] : memref<16x128xf32, #tpu.memory_space<vmem>>, vector<16x128xf32>
      %60 = vector.shape_cast %59 : vector<16x128xf32> to vector<1x16x128xf32>
      %cst_32 = arith.constant dense<0.000000e+00> : vector<1xf32>
      %61 = vector.multi_reduction <add>, %60, %cst_32 [1, 2] : vector<1x16x128xf32> to vector<1xf32>
      %62 = vector.shape_cast %61 : vector<1xf32> to vector<1x1x1xf32>
      %63 = vector.extract %62[0, 0, 0] : f32 from vector<1x1x1xf32>
      %cst_33 = arith.constant 5.000000e-01 : f32
      %64 = arith.mulf %cst_33, %63 : f32
      %c0_i32_34 = arith.constant 0 : i32
      %65 = vector.broadcast %c0_i32_34 : i32 to vector<1x8x128xi32>
      %66 = arith.cmpi eq, %48, %65 : vector<1x8x128xi32>
      %c1_i32 = arith.constant 1 : i32
      %67 = vector.broadcast %c1_i32 : i32 to vector<1x8x128xi32>
      %68 = arith.cmpi eq, %48, %67 : vector<1x8x128xi32>
      %c2_i32 = arith.constant 2 : i32
      %69 = vector.broadcast %c2_i32 : i32 to vector<1x8x128xi32>
      %70 = arith.cmpi eq, %48, %69 : vector<1x8x128xi32>
      %cst_35 = arith.constant 0.000000e+00 : f32
      %71 = vector.broadcast %64 : f32 to vector<1x8x128xf32>
      %72 = vector.broadcast %cst_35 : f32 to vector<1x8x128xf32>
      %73 = arith.select %70, %71, %72 : vector<1x8x128xi1>, vector<1x8x128xf32>
      %74 = vector.broadcast %58 : f32 to vector<1x8x128xf32>
      %75 = arith.select %68, %74, %73 : vector<1x8x128xi1>, vector<1x8x128xf32>
      %76 = vector.broadcast %53 : f32 to vector<1x8x128xf32>
      %77 = arith.select %66, %76, %75 : vector<1x8x128xi1>, vector<1x8x128xf32>
      %c0_36 = arith.constant 0 : index
      %c0_37 = arith.constant 0 : index
      %c0_38 = arith.constant 0 : index
      %78 = vector.load %arg4[%c0_36, %c0_37, %c0_38] : memref<1x8x128xf32, #tpu.memory_space<vmem>>, vector<1x8x128xf32>
      tpu.vector_store %arg4[%c0_36, %c0_37, %c0_38], %77 {strides = array<i32>} : memref<1x8x128xf32, #tpu.memory_space<vmem>>, vector<1x8x128xf32>,
    } else {
    }
    return
  }
  func.func @transform_0(%arg0: i32, %arg1: i32) -> (i32, i32, i32) {
    %c0_i32 = arith.constant 0 : i32
    %c0_i32_0 = arith.constant 0 : i32
    %c0_i32_1 = arith.constant 0 : i32
    return %c0_i32, %arg0, %c0_i32_0 : i32, i32, i32
  }
  func.func @transform_1(%arg0: i32, %arg1: i32) -> (i32, i32, i32) {
    %c0_i32 = arith.constant 0 : i32
    %c0_i32_0 = arith.constant 0 : i32
    %c0_i32_1 = arith.constant 0 : i32
    %c0_i32_2 = arith.constant 0 : i32
    return %c0_i32, %c0_i32_0, %c0_i32_1 : i32, i32, i32
  }
  func.func @transform_2(%arg0: i32, %arg1: i32) -> (i32, i32, i32) {
    %c0_i32 = arith.constant 0 : i32
    %c0_i32_0 = arith.constant 0 : i32
    %c0_i32_1 = arith.constant 0 : i32
    return %arg0, %c0_i32, %c0_i32_0 : i32, i32, i32
  }
}

</mosaic_0001>

<llo_original>
// kernel: _combined_loss_impl.4
$region0: #{_combined_loss_impl.4}
  #allocation0 [shape = 'u32[]', space=smem, size = 0x4, offset = 0x4, fixed_abs, tag = 'smem constant byte address 0x4 - core index']
  #allocation1 [shape = 'u32[144,128]{1,0:T(1,128)}', space=vmem, size = 0x12000, scoped, tag = 'internal scratch']
  %s0 = inlined_call_operand.vmem [shape: f32[8,2432], index: 0, kind: input, shape index: {}]
  %s1 = inlined_call_operand.vmem [shape: f32[8,2432], index: 1, kind: input, shape index: {}]
  %s2 = inlined_call_operand.vmem [shape: f32[1,8,128], index: 2, kind: output, shape index: {}]
  %s3 = sld [smem:[#allocation0]]
  $region18: #{_combined_loss_impl.4} parent=0
    _
  %s5 = ssub.s32 1, %s3
  %s6 = scalar_select 0, %s5, %s3
  // Predicated region
  $region2: #{_combined_loss_impl.4} parent=0 // pred_check
    _
  $region3: #{_combined_loss_impl.4} parent=0 // pred_check_branch
    %8 = sbr.rel (0) target = $region5
  $region4: #{_combined_loss_impl.4} parent=0 // pred_region
    _
  $region5: #{_combined_loss_impl.4} parent=0 // pred_fallthru
    _
  // Predicated region
  $region6: #{_combined_loss_impl.4} parent=0 // pred_check
    _
  $region7: #{_combined_loss_impl.4} parent=0 // pred_check_branch
    %10 = sbr.rel (0) target = $region9
  $region8: #{_combined_loss_impl.4} parent=0 // pred_region
    _
  $region9: #{_combined_loss_impl.4} parent=0 // pred_fallthru
    _
  %v11 = vld [vmem:[%s0] sm:$0xff]
  %v12 = vld [vmem:[%s0 + $0x8] sm:$0xff]
  %v13 = vld [vmem:[%s0 + $0x10] sm:$0xff]
  %v14 = vld [vmem:[%s0 + $0x18] sm:$0xff]
  %v15 = vld [vmem:[%s0 + $0x20] sm:$0xff]
  %v16 = vld [vmem:[%s0 + $0x28] sm:$0xff]
  %v17 = vld [vmem:[%s0 + $0x30] sm:$0xff]
  %v18 = vld [vmem:[%s0 + $0x38] sm:$0xff]
  %v19 = vld [vmem:[%s0 + $0x40] sm:$0xff]
  %v20 = vld [vmem:[%s0 + $0x48] sm:$0xff]
  %v21 = vld [vmem:[%s0 + $0x50] sm:$0xff]
  %v22 = vld [vmem:[%s0 + $0x58] sm:$0xff]
  %v23 = vld [vmem:[%s0 + $0x60] sm:$0xff]
  %v24 = vld [vmem:[%s0 + $0x68] sm:$0xff]
  %v25 = vld [vmem:[%s0 + $0x70] sm:$0xff]
  %v26 = vld [vmem:[%s0 + $0x78] sm:$0xff]
  %v27 = vld [vmem:[%s0 + $0x80] sm:$0xff]
  %v28 = vld [vmem:[%s0 + $0x88] sm:$0xff]
  %v29 = vld [vmem:[%s0 + $0x90] sm:$0xff]
  %v30 = vld [vmem:[%s1] sm:$0xff]
  %v31 = vld [vmem:[%s1 + $0x8] sm:$0xff]
  %v32 = vld [vmem:[%s1 + $0x10] sm:$0xff]
  %v33 = vld [vmem:[%s1 + $0x18] sm:$0xff]
  %v34 = vld [vmem:[%s1 + $0x20] sm:$0xff]
  %v35 = vld [vmem:[%s1 + $0x28] sm:$0xff]
  %v36 = vld [vmem:[%s1 + $0x30] sm:$0xff]
  %v37 = vld [vmem:[%s1 + $0x38] sm:$0xff]
  %v38 = vld [vmem:[%s1 + $0x40] sm:$0xff]
  %v39 = vld [vmem:[%s1 + $0x48] sm:$0xff]
  %v40 = vld [vmem:[%s1 + $0x50] sm:$0xff]
  %v41 = vld [vmem:[%s1 + $0x58] sm:$0xff]
  %v42 = vld [vmem:[%s1 + $0x60] sm:$0xff]
  %v43 = vld [vmem:[%s1 + $0x68] sm:$0xff]
  %v44 = vld [vmem:[%s1 + $0x70] sm:$0xff]
  %v45 = vld [vmem:[%s1 + $0x78] sm:$0xff]
  %v46 = vld [vmem:[%s1 + $0x80] sm:$0xff]
  %v47 = vld [vmem:[%s1 + $0x88] sm:$0xff]
  %v48 = vld [vmem:[%s1 + $0x90] sm:$0xff]
  %v49 = vsub.f32 %v11, %v30
  %v50 = vsub.f32 %v12, %v31
  %v51 = vsub.f32 %v13, %v32
  %v52 = vsub.f32 %v14, %v33
  %v53 = vsub.f32 %v15, %v34
  %v54 = vsub.f32 %v16, %v35
  %v55 = vsub.f32 %v17, %v36
  %v56 = vsub.f32 %v18, %v37
  %v57 = vsub.f32 %v19, %v38
  %v58 = vsub.f32 %v20, %v39
  %v59 = vsub.f32 %v21, %v40
  %v60 = vsub.f32 %v22, %v41
  %v61 = vsub.f32 %v23, %v42
  %v62 = vsub.f32 %v24, %v43
  %v63 = vsub.f32 %v25, %v44
  %v64 = vsub.f32 %v26, %v45
  %v65 = vsub.f32 %v27, %v46
  %v66 = vsub.f32 %v28, %v47
  %v67 = vsub.f32 %v29, %v48
  %v68 = vand.u32 2147483647, %v49
  %v69 = vand.u32 2147483647, %v50
  %v70 = vand.u32 2147483647, %v51
  %v71 = vand.u32 2147483647, %v52
  %v72 = vand.u32 2147483647, %v53
  %v73 = vand.u32 2147483647, %v54
  %v74 = vand.u32 2147483647, %v55
  %v75 = vand.u32 2147483647, %v56
  %v76 = vand.u32 2147483647, %v57
  %v77 = vand.u32 2147483647, %v58
  %v78 = vand.u32 2147483647, %v59
  %v79 = vand.u32 2147483647, %v60
  %v80 = vand.u32 2147483647, %v61
  %v81 = vand.u32 2147483647, %v62
  %v82 = vand.u32 2147483647, %v63
  %v83 = vand.u32 2147483647, %v64
  %v84 = vand.u32 2147483647, %v65
  %v85 = vand.u32 2147483647, %v66
  %v86 = vand.u32 2147483647, %v67
  %v87 = vadd.f32 %v68, %v69
  %v88 = vadd.f32 %v87, %v70
  %v89 = vadd.f32 %v88, %v71
  %v90 = vadd.f32 %v89, %v72
  %v91 = vadd.f32 %v90, %v73
  %v92 = vadd.f32 %v91, %v74
  %v93 = vadd.f32 %v92, %v75
  %v94 = vadd.f32 %v93, %v76
  %v95 = vadd.f32 %v94, %v77
  %v96 = vadd.f32 %v95, %v78
  %v97 = vadd.f32 %v96, %v79
  %v98 = vadd.f32 %v97, %v80
  %v99 = vadd.f32 %v98, %v81
  %v100 = vadd.f32 %v99, %v82
  %v101 = vadd.f32 %v100, %v83
  %v102 = vadd.f32 %v101, %v84
  %v103 = vadd.f32 %v102, %v85
  %v104 = vadd.f32 %v103, %v86
  %105 = vadd.xlane.f32.xlu0 %v104
  %v106 = vpop.xlane.xlu0 %105
  %v107 = vrot.slane %v106, 4
  %v108 = vadd.f32 %v106, %v107
  %v109 = vrot.slane %v108, 2
  %v110 = vadd.f32 %v108, %v109
  %v111 = vrot.slane %v110, 1
  %v112 = vadd.f32 %v110, %v111
  %s113 = vtos %v112
  %v114 = vstv %s113
  %v115 = vadd.f32 %v114, 0.0
  %116 = vst [vmem:[%s2] sm:$0xff] %v115
  // Predicated region
  $region10: #{_combined_loss_impl.4} parent=0 // pred_check
    _
  $region11: #{_combined_loss_impl.4} parent=0 // pred_check_branch
    %118 = sbr.rel (0) target = $region13
  $region12: #{_combined_loss_impl.4} parent=0 // pred_region
    _
  $region13: #{_combined_loss_impl.4} parent=0 // pred_fallthru
    _
  // Predicated region
  $region14: #{_combined_loss_impl.4} parent=0 // pred_check
    _
  $region15: #{_combined_loss_impl.4} parent=0 // pred_check_branch
    %120 = sbr.rel (0) target = $region17
  $region16: #{_combined_loss_impl.4} parent=0 // pred_region
    _
  $region17: #{_combined_loss_impl.4} parent=0 // pred_fallthru
    _

// kernel: _combined_loss_impl.5
$region0: #{_combined_loss_impl.5}
  #allocation0 [shape = 'u32[]', space=smem, size = 0x4, offset = 0x4, fixed_abs, tag = 'smem constant byte address 0x4 - core index']
  #allocation1 [shape = 'u32[144,128]{1,0:T(1,128)}', space=vmem, size = 0x12000, scoped, tag = 'internal scratch']
  #allocation2 [shape = 'f32[56,128]{1,0:T(8,128)}', space=vmem, size = 0x7000, scoped, tag = 'scratch operand']
  #allocation3 [shape = 'f32[56,128]{1,0:T(8,128)}', space=vmem, size = 0x7000, scoped, tag = 'scratch operand']
  #allocation4 [shape = 'f32[56,128]{1,0:T(8,128)}', space=vmem, size = 0x7000, scoped, tag = 'scratch operand']
  %s0 = inlined_call_operand.vmem [shape: bf16[2,112,512], index: 0, kind: input, shape index: {}]
  %s1 = inlined_call_operand.vmem [shape: bf16[2,512,256], index: 1, kind: input, shape index: {}]
  %s2 = inlined_call_operand.vmem [shape: f32[2,8,128], index: 2, kind: output, shape index: {}]
  %s3 = sld [smem:[#allocation0]]
  $region72: #{_combined_loss_impl.5} parent=0
    _
  %s5 = ssub.s32 1, %s3
  %s6 = scalar_select 0, %s5, %s3
  $region1: #{_combined_loss_impl.5} parent=0
    #allocation5 [shape = 'u8[229376]{0}', space=vmem, size = 0x38000, scoped, tag = 'input window, operand 0']
    loop: start=0, step=1, limit=6
    $region2: #{_combined_loss_impl.5} parent=1 // loop_pre_header
      _
    $region3: #{_combined_loss_impl.5} parent=1 // loop_header
      %s8 = sphi 0, %s12
      %p9 = scmp.ge.s32.totalorder %s8, 6
      %s15 = sphi 0, %s27
      %s16 = sphi 0, %s23
      %s17 = sphi 0, %s15
      %s18 = sphi 0, %s16
      %s19 = sphi 0, %s17
      %s20 = sphi 0, %s18
      %s30 = sphi 0, %s32
      %s33 = sphi 0, %s30
      %s34 = sphi 0, %s33
      %s50 = sphi 0, %s34
      %s54 = sphi 0, %s54
      %s56 = sphi 0, %s54
      %s57 = sphi 0, %s56
      %s71 = sphi 0, %s57
      %s77 = sphi 0, %s79
      %s80 = sphi 0, %s77
      %s81 = sphi 0, %s80
      %s97 = sphi 0, %s81
    $region4: #{_combined_loss_impl.5} parent=1 // loop_header_branch
      %11 = sbr.rel (%p9) target = $region8
    $region5: #{_combined_loss_impl.5} parent=1 // loop_body
      %s13 = ssub.s32 %s8, 1
      %s14 = ssub.s32 %s8, 2
      %s21 = sadd.s32 1, %s16
      %p22 = scmp.ge.s32.totalorder %s21, 2
      %s23 = scalar_select %p22, 0, %s21
      %s24 = sadd.s32 1, %s15
      %s25 = scalar_select %p22, %s24, %s15
      %p26 = scmp.ge.s32.totalorder %s25, 2
      %s27 = scalar_select %p26, 0, %s25
      %s28 = ssub.s32 %s15, %s27
      %p29 = scmp.eq.s32.totalorder %s28, 0
      %s31 = sadd.s32 %s30, 1
      %s32 = scalar_select %p29, %s30, %s31
      %p35 = pneg %p29
      %p36 = scmp.eq.s32.totalorder %s8, 3
      %p37 = por %p35, %p36
      %p38 = scmp.ne.s32.totalorder %s30, %s33
      %p39 = scmp.eq.s32.totalorder %s8, 0
      %p40 = por %p38, %p39
      %p41 = scmp.ne.s32.totalorder %s30, %s33
      %p42 = scmp.eq.s32.totalorder %s13, 3
      %p43 = por %p41, %p42
      %p44 = scmp.ne.s32.totalorder %s33, %s34
      %p45 = scmp.eq.s32.totalorder %s13, 0
      %p46 = por %p44, %p45
      %p47 = scmp.ne.s32.totalorder %s33, %s34
      %p48 = scmp.eq.s32.totalorder %s14, 3
      %p49 = por %p47, %p48
      %p51 = scmp.ne.s32.totalorder %s34, %s50
      %p52 = scmp.eq.s32.totalorder %s14, 0
      %p53 = por %p51, %p52
      %s55 = sadd.s32 %s54, 1
      %p58 = scmp.eq.s32.totalorder %s8, 3
      %p59 = scmp.ne.s32.totalorder %s54, %s56
      %p60 = scmp.eq.s32.totalorder %s8, 0
      %p61 = por %p59, %p60
      %p62 = scmp.ne.s32.totalorder %s54, %s56
      %p63 = scmp.eq.s32.totalorder %s13, 3
      %p64 = por %p62, %p63
      %p65 = scmp.ne.s32.totalorder %s56, %s57
      %p66 = scmp.eq.s32.totalorder %s13, 0
      %p67 = por %p65, %p66
      %p68 = scmp.ne.s32.totalorder %s56, %s57
      %p69 = scmp.eq.s32.totalorder %s14, 3
      %p70 = por %p68, %p69
      %p72 = scmp.ne.s32.totalorder %s57, %s71
      %p73 = scmp.eq.s32.totalorder %s14, 0
      %p74 = por %p72, %p73
      %s75 = ssub.s32 %s15, %s27
      %p76 = scmp.eq.s32.totalorder %s75, 0
      %s78 = sadd.s32 %s77, 1
      %s79 = scalar_select %p76, %s77, %s78
      %p82 = pneg %p76
      %p83 = scmp.eq.s32.totalorder %s8, 3
      %p84 = por %p82, %p83
      %p85 = scmp.ne.s32.totalorder %s77, %s80
      %p86 = scmp.eq.s32.totalorder %s8, 0
      %p87 = por %p85, %p86
      %p88 = scmp.ne.s32.totalorder %s77, %s80
      %p89 = scmp.eq.s32.totalorder %s13, 3
      %p90 = por %p88, %p89
      %p91 = scmp.ne.s32.totalorder %s80, %s81
      %p92 = scmp.eq.s32.totalorder %s13, 0
      %p93 = por %p91, %p92
      %p94 = scmp.ne.s32.totalorder %s80, %s81
      %p95 = scmp.eq.s32.totalorder %s14, 3
      %p96 = por %p94, %p95
      %p98 = scmp.ne.s32.totalorder %s81, %s97
      %p99 = scmp.eq.s32.totalorder %s14, 0
      %p100 = por %p98, %p99
      %p101 = scmp.le.s32.totalorder 1, %s8
      %p102 = scmp.lt.s32.totalorder %s8, 5
      %p103 = pnand %p101, %p102
      %p104 = pneg %p103
      // Predicated region
      $region9: #{_combined_loss_impl.5} parent=5 // pred_check
        _
      $region10: #{_combined_loss_impl.5} parent=5 // pred_check_branch
        %106 = sbr.rel (%p103) target = $region12
      $region11: #{_combined_loss_impl.5} parent=5 // pred_region
        %s107 = ssub.s32 %s8, 1
        // Predicated region
        $region13: #{_combined_loss_impl.5} parent=11 // pred_check
          %p108 = pneg %p67
        $region14: #{_combined_loss_impl.5} parent=11 // pred_check_branch
          %110 = sbr.rel (%p108) target = $region16
        $region15: #{_combined_loss_impl.5} parent=11 // pred_region
          _
        $region16: #{_combined_loss_impl.5} parent=11 // pred_fallthru
          _
      $region12: #{_combined_loss_impl.5} parent=5 // pred_fallthru
        _
      %p111 = scmp.lt.s32.totalorder %s8, 4
      // Predicated region
      $region17: #{_combined_loss_impl.5} parent=5 // pred_check
        %p112 = pneg %p111
      $region18: #{_combined_loss_impl.5} parent=5 // pred_check_branch
        %114 = sbr.rel (%p112) target = $region20
      $region19: #{_combined_loss_impl.5} parent=5 // pred_region
        // Predicated region
        $region21: #{_combined_loss_impl.5} parent=19 // pred_check
          %p115 = pneg %p40
        $region22: #{_combined_loss_impl.5} parent=19 // pred_check_branch
          %117 = sbr.rel (%p115) target = $region24
        $region23: #{_combined_loss_impl.5} parent=19 // pred_region
          %s118 = sand.u32 %s30, 1
          %s119 = sand.u32 %s30, 1
          %s120 = smul.addr %s119, 224
          %s121 = scalar_lea.vmem [#allocation5], %s120
          %s122 = smul.u32 7, %s15
          %s123 = smul.addr %s122, 4
          %s124 = smul.addr %s123, 4
          %s125 = scalar_lea.vmem %s0, %s124
          // Predicated region
          $region25: #{_combined_loss_impl.5} parent=23 // pred_check
            _
          $region26: #{_combined_loss_impl.5} parent=23 // pred_check_branch
            %127 = sbr.rel (0) target = $region28
          $region27: #{_combined_loss_impl.5} parent=23 // pred_region
            // Predicated region
            $region29: #{_combined_loss_impl.5} parent=27 // pred_check
              _
            $region30: #{_combined_loss_impl.5} parent=27 // pred_check_branch
              %129 = sbr.rel (0) target = $region32
            $region31: #{_combined_loss_impl.5} parent=27 // pred_region
              loop: start=0, step=1, limit=1
              $region33: #{_combined_loss_impl.5} parent=31 // loop_pre_header
                _
              $region34: #{_combined_loss_impl.5} parent=31 // loop_header
                %s131 = sphi 0, %s135
                %p132 = scmp.ge.s32.totalorder %s131, 1
                %s136 = sphi %s125, %s125
                %s137 = sphi %s121, %s121
              $region35: #{_combined_loss_impl.5} parent=31 // loop_header_branch
                %134 = sbr.rel (%p132) target = $region39
              $region36: #{_combined_loss_impl.5} parent=31 // loop_body
                %v138 = vld [vmem:[%s136] sm:$0xff]
                %139 = vst [vmem:[%s137] sm:$0xff] %v138
                %v140 = vld [vmem:[%s136 + $0x8] sm:$0xff]
                %141 = vst [vmem:[%s137 + $0x8] sm:$0xff] %v140
                %v142 = vld [vmem:[%s136 + $0x10] sm:$0xff]
                %143 = vst [vmem:[%s137 + $0x10] sm:$0xff] %v142
                %v144 = vld [vmem:[%s136 + $0x18] sm:$0xff]
                %145 = vst [vmem:[%s137 + $0x18] sm:$0xff] %v144
                %v146 = vld [vmem:[%s136 + $0x20] sm:$0xff]
                %147 = vst [vmem:[%s137 + $0x20] sm:$0xff] %v146
                %v148 = vld [vmem:[%s136 + $0x28] sm:$0xff]
                %149 = vst [vmem:[%s137 + $0x28] sm:$0xff] %v148
                %v150 = vld [vmem:[%s136 + $0x30] sm:$0xff]
                %151 = vst [vmem:[%s137 + $0x30] sm:$0xff] %v150
                %v152 = vld [vmem:[%s136 + $0x38] sm:$0xff]
                %153 = vst [vmem:[%s137 + $0x38] sm:$0xff] %v152
                %v154 = vld [vmem:[%s136 + $0x40] sm:$0xff]
                %155 = vst [vmem:[%s137 + $0x40] sm:$0xff] %v154
                %v156 = vld [vmem:[%s136 + $0x48] sm:$0xff]
                %157 = vst [vmem:[%s137 + $0x48] sm:$0xff] %v156
                %v158 = vld [vmem:[%s136 + $0x50] sm:$0xff]
                %159 = vst [vmem:[%s137 + $0x50] sm:$0xff] %v158
                %v160 = vld [vmem:[%s136 + $0x58] sm:$0xff]
                %161 = vst [vmem:[%s137 + $0x58] sm:$0xff] %v160
                %v162 = vld [vmem:[%s136 + $0x60] sm:$0xff]
                %163 = vst [vmem:[%s137 + $0x60] sm:$0xff] %v162
                %v164 = vld [vmem:[%s136 + $0x68] sm:$0xff]
                %165 = vst [vmem:[%s137 + $0x68] sm:$0xff] %v164
                %v166 = vld [vmem:[%s136 + $0xe0] sm:$0xff]
                %167 = vst [vmem:[%s137 + $0x70] sm:$0xff] %v166
                %v168 = vld [vmem:[%s136 + $0xe8] sm:$0xff]
                %169 = vst [vmem:[%s137 + $0x78] sm:$0xff] %v168
                %v170 = vld [vmem:[%s136 + $0xf0] sm:$0xff]
                %171 = vst [vmem:[%s137 + $0x80] sm:$0xff] %v170
                %v172 = vld [vmem:[%s136 + $0xf8] sm:$0xff]
                %173 = vst [vmem:[%s137 + $0x88] sm:$0xff] %v172
                %v174 = vld [vmem:[%s136 + $0x100] sm:$0xff]
                %175 = vst [vmem:[%s137 + $0x90] sm:$0xff] %v174
                %v176 = vld [vmem:[%s136 + $0x108] sm:$0xff]
                %177 = vst [vmem:[%s137 + $0x98] sm:$0xff] %v176
                %v178 = vld [vmem:[%s136 + $0x110] sm:$0xff]
                %179 = vst [vmem:[%s137 + $0xa0] sm:$0xff] %v178
                %v180 = vld [vmem:[%s136 + $0x118] sm:$0xff]
                %181 = vst [vmem:[%s137 + $0xa8] sm:$0xff] %v180
                %v182 = vld [vmem:[%s136 + $0x120] sm:$0xff]
                %183 = vst [vmem:[%s137 + $0xb0] sm:$0xff] %v182
                %v184 = vld [vmem:[%s136 + $0x128] sm:$0xff]
                %185 = vst [vmem:[%s137 + $0xb8] sm:$0xff] %v184
                %v186 = vld [vmem:[%s136 + $0x130] sm:$0xff]
                %187 = vst [vmem:[%s137 + $0xc0] sm:$0xff] %v186
                %v188 = vld [vmem:[%s136 + $0x138] sm:$0xff]
                %189 = vst [vmem:[%s137 + $0xc8] sm:$0xff] %v188
                %v190 = vld [vmem:[%s136 + $0x140] sm:$0xff]
                %191 = vst [vmem:[%s137 + $0xd0] sm:$0xff] %v190
                %v192 = vld [vmem:[%s136 + $0x148] sm:$0xff]
                %193 = vst [vmem:[%s137 + $0xd8] sm:$0xff] %v192
              $region37: #{_combined_loss_impl.5} parent=31 // loop_footer
                %s135 = sadd.s32 1, %s131
              $region38: #{_combined_loss_impl.5} parent=31 // loop_footer_branch
                %130 = sbr.rel target = $region34
              $region39: #{_combined_loss_impl.5} parent=31 // loop_exit
                _
            $region32: #{_combined_loss_impl.5} parent=27 // pred_fallthru
              _
            // Predicated region
            $region40: #{_combined_loss_impl.5} parent=27 // pred_check
              _
            $region41: #{_combined_loss_impl.5} parent=27 // pred_check_branch
              %195 = sbr.rel target = $region43
            $region42: #{_combined_loss_impl.5} parent=27 // pred_region
              _
            $region43: #{_combined_loss_impl.5} parent=27 // pred_fallthru
              _
          $region28: #{_combined_loss_impl.5} parent=23 // pred_fallthru
            _
          %196 = vnop
        $region24: #{_combined_loss_impl.5} parent=19 // pred_fallthru
          _
      $region20: #{_combined_loss_impl.5} parent=5 // pred_fallthru
        _
      %p197 = scmp.le.s32.totalorder 1, %s8
      %p198 = scmp.lt.s32.totalorder %s8, 5
      %p199 = pnand %p197, %p198
      %p200 = pneg %p199
      // Predicated region
      $region44: #{_combined_loss_impl.5} parent=5 // pred_check
        _
      $region45: #{_combined_loss_impl.5} parent=5 // pred_check_branch
        %202 = sbr.rel (%p199) target = $region47
      $region46: #{_combined_loss_impl.5} parent=5 // pred_region
        %s203 = ssub.s32 %s8, 1
        %s204 = sand.u32 %s33, 1
        %s205 = sand.u32 %s33, 1
        %s206 = smul.addr %s205, 224
        %s207 = scalar_lea.vmem [#allocation5], %s206
        // Predicated region
        $region48: #{_combined_loss_impl.5} parent=46 // pred_check
          %p208 = pneg %p46
        $region49: #{_combined_loss_impl.5} parent=46 // pred_check_branch
          %210 = sbr.rel (%p208) target = $region51
        $region50: #{_combined_loss_impl.5} parent=46 // pred_region
          _
        $region51: #{_combined_loss_impl.5} parent=46 // pred_fallthru
          _
        %s211 = sand.u32 %s33, 1
        %s212 = sand.u32 %s33, 1
        %s213 = smul.addr %s212, 224
        %s214 = scalar_lea.vmem [#allocation5], %s213
        %p215 = pneg %p46
        %p216 = pneg %p43
        %p217 = pneg %p67
        %p218 = pneg %p64
        %p219 = pneg %p93
        %p220 = pneg %p90
        %p221 = scmp.lt.s32.totalorder %s17, 1
        %s222 = scalar_select %p221, %s17, 1
        %s223 = smul.addr %s222, 8
        %s224 = scalar_lea.vmem %s2, %s223
        %s225 = smul.u32 7, %s17
        %p226 = scmp.lt.s32.totalorder %s17, 1
        %s227 = scalar_select %p226, %s17, 1
        %s228 = smul.addr %s227, 8
        %s229 = scalar_lea.vmem %s2, %s228
        %p230 = scmp.eq.s32.totalorder %s18, 0
        // Predicated region
        $region52: #{_combined_loss_impl.5} parent=46 // pred_check
          %p231 = pneg %p230
        $region53: #{_combined_loss_impl.5} parent=46 // pred_check_branch
          %233 = sbr.rel (%p231) target = $region55
        $region54: #{_combined_loss_impl.5} parent=46 // pred_region
          %234 = vst [vmem:[#allocation2] sm:$0xff] 0.0
          %235 = vst [vmem:[#allocation2 + $0x8] sm:$0xff] 0.0
          %236 = vst [vmem:[#allocation2 + $0x10] sm:$0xff] 0.0
          %237 = vst [vmem:[#allocation2 + $0x18] sm:$0xff] 0.0
          %238 = vst [vmem:[#allocation2 + $0x20] sm:$0xff] 0.0
          %239 = vst [vmem:[#allocation2 + $0x28] sm:$0xff] 0.0
          %240 = vst [vmem:[#allocation2 + $0x30] sm:$0xff] 0.0
          %241 = vst [vmem:[#allocation3] sm:$0xff] 0.0
          %242 = vst [vmem:[#allocation3 + $0x8] sm:$0xff] 0.0
          %243 = vst [vmem:[#allocation3 + $0x10] sm:$0xff] 0.0
          %244 = vst [vmem:[#allocation3 + $0x18] sm:$0xff] 0.0
          %245 = vst [vmem:[#allocation3 + $0x20] sm:$0xff] 0.0
          %246 = vst [vmem:[#allocation3 + $0x28] sm:$0xff] 0.0
          %247 = vst [vmem:[#allocation3 + $0x30] sm:$0xff] 0.0
          %248 = vst [vmem:[#allocation4] sm:$0xff] 0.0
          %249 = vst [vmem:[#allocation4 + $0x8] sm:$0xff] 0.0
          %250 = vst [vmem:[#allocation4 + $0x10] sm:$0xff] 0.0
          %251 = vst [vmem:[#allocation4 + $0x18] sm:$0xff] 0.0
          %252 = vst [vmem:[#allocation4 + $0x20] sm:$0xff] 0.0
          %253 = vst [vmem:[#allocation4 + $0x28] sm:$0xff] 0.0
          %254 = vst [vmem:[#allocation4 + $0x30] sm:$0xff] 0.0
        $region55: #{_combined_loss_impl.5} parent=46 // pred_fallthru
          _
        %s255 = smul.u32 %s18, 128
        %s256 = smul.addr %s255, 4
        %s257 = scalar_lea.vmem %s1, %s256
        %v258 = vld [vmem:[%s257] sm:$0xff]
        %v259 = vld [vmem:[%s257 + $0x8] sm:$0xff]
        %v260 = vld [vmem:[%s257 + $0x10] sm:$0xff]
        %v261 = vld [vmem:[%s257 + $0x18] sm:$0xff]
        %v262 = vld [vmem:[%s257 + $0x20] sm:$0xff]
        %v263 = vld [vmem:[%s257 + $0x28] sm:$0xff]
        %v264 = vld [vmem:[%s257 + $0x30] sm:$0xff]
        %v265 = vld [vmem:[%s257 + $0x38] sm:$0xff]
        %v266 = vld [vmem:[%s257 + $0x40] sm:$0xff]
        %v267 = vld [vmem:[%s257 + $0x48] sm:$0xff]
        %v268 = vld [vmem:[%s257 + $0x50] sm:$0xff]
        %v269 = vld [vmem:[%s257 + $0x58] sm:$0xff]
        %v270 = vld [vmem:[%s257 + $0x60] sm:$0xff]
        %v271 = vld [vmem:[%s257 + $0x68] sm:$0xff]
        %v272 = vld [vmem:[%s257 + $0x70] sm:$0xff]
        %v273 = vld [vmem:[%s257 + $0x78] sm:$0xff]
        %v274 = vld [vmem:[%s257 + $0x80] sm:$0xff]
        %v275 = vld [vmem:[%s257 + $0x88] sm:$0xff]
        %v276 = vld [vmem:[%s257 + $0x90] sm:$0xff]
        %v277 = vld [vmem:[%s257 + $0x98] sm:$0xff]
        %v278 = vld [vmem:[%s257 + $0xa0] sm:$0xff]
        %v279 = vld [vmem:[%s257 + $0xa8] sm:$0xff]
        %v280 = vld [vmem:[%s257 + $0xb0] sm:$0xff]
        %v281 = vld [vmem:[%s257 + $0xb8] sm:$0xff]
        %v282 = vld [vmem:[%s257 + $0xc0] sm:$0xff]
        %v283 = vld [vmem:[%s257 + $0xc8] sm:$0xff]
        %v284 = vld [vmem:[%s257 + $0xd0] sm:$0xff]
        %v285 = vld [vmem:[%s257 + $0xd8] sm:$0xff]
        %v286 = vld [vmem:[%s257 + $0xe0] sm:$0xff]
        %v287 = vld [vmem:[%s257 + $0xe8] sm:$0xff]
        %v288 = vld [vmem:[%s257 + $0xf0] sm:$0xff]
        %v289 = vld [vmem:[%s257 + $0xf8] sm:$0xff]
        %v290 = vld [vmem:[%s257 + $0x100] sm:$0xff]
        %v291 = vld [vmem:[%s257 + $0x108] sm:$0xff]
        %v292 = vld [vmem:[%s257 + $0x110] sm:$0xff]
        %v293 = vld [vmem:[%s257 + $0x118] sm:$0xff]
        %v294 = vld [vmem:[%s257 + $0x120] sm:$0xff]
        %v295 = vld [vmem:[%s257 + $0x128] sm:$0xff]
        %v296 = vld [vmem:[%s257 + $0x130] sm:$0xff]
        %v297 = vld [vmem:[%s257 + $0x138] sm:$0xff]
        %v298 = vld [vmem:[%s257 + $0x140] sm:$0xff]
        %v299 = vld [vmem:[%s257 + $0x148] sm:$0xff]
        %v300 = vld [vmem:[%s257 + $0x150] sm:$0xff]
        %v301 = vld [vmem:[%s257 + $0x158] sm:$0xff]
        %v302 = vld [vmem:[%s257 + $0x160] sm:$0xff]
        %v303 = vld [vmem:[%s257 + $0x168] sm:$0xff]
        %v304 = vld [vmem:[%s257 + $0x170] sm:$0xff]
        %v305 = vld [vmem:[%s257 + $0x178] sm:$0xff]
        %v306 = vld [vmem:[%s257 + $0x180] sm:$0xff]
        %v307 = vld [vmem:[%s257 + $0x188] sm:$0xff]
        %v308 = vld [vmem:[%s257 + $0x190] sm:$0xff]
        %v309 = vld [vmem:[%s257 + $0x198] sm:$0xff]
        %v310 = vld [vmem:[%s257 + $0x1a0] sm:$0xff]
        %v311 = vld [vmem:[%s257 + $0x1a8] sm:$0xff]
        %v312 = vld [vmem:[%s257 + $0x1b0] sm:$0xff]
        %v313 = vld [vmem:[%s257 + $0x1b8] sm:$0xff]
        %v314 = vld [vmem:[%s257 + $0x1c0] sm:$0xff]
        %v315 = vld [vmem:[%s257 + $0x1c8] sm:$0xff]
        %v316 = vld [vmem:[%s257 + $0x1d0] sm:$0xff]
        %v317 = vld [vmem:[%s257 + $0x1d8] sm:$0xff]
        %v318 = vld [vmem:[%s257 + $0x1e0] sm:$0xff]
        %v319 = vld [vmem:[%s257 + $0x1e8] sm:$0xff]
        %v320 = vld [vmem:[%s257 + $0x1f0] sm:$0xff]
        %v321 = vld [vmem:[%s257 + $0x1f8] sm:$0xff]
        %v322 = vld [vmem:[%s207] sm:$0xff]
        %v323 = vld [vmem:[%s207 + $0x8] sm:$0xff]
        %v324 = vld [vmem:[%s207 + $0x10] sm:$0xff]
        %v325 = vld [vmem:[%s207 + $0x18] sm:$0xff]
        %v326 = vld [vmem:[%s207 + $0x20] sm:$0xff]
        %v327 = vld [vmem:[%s207 + $0x28] sm:$0xff]
        %v328 = vld [vmem:[%s207 + $0x30] sm:$0xff]
        %v329 = vld [vmem:[%s207 + $0x38] sm:$0xff]
        %v330 = vld [vmem:[%s207 + $0x40] sm:$0xff]
        %v331 = vld [vmem:[%s207 + $0x48] sm:$0xff]
        %v332 = vld [vmem:[%s207 + $0x50] sm:$0xff]
        %v333 = vld [vmem:[%s207 + $0x58] sm:$0xff]
        %v334 = vld [vmem:[%s207 + $0x60] sm:$0xff]
        %v335 = vld [vmem:[%s207 + $0x68] sm:$0xff]
        %v350 = vunpack.c.l.b16 %v322
        %v351 = vunpack.c.h.b16 %v322
        %v352 = vunpack.c.l.b16 %v323
        %v353 = vunpack.c.h.b16 %v323
        %v354 = vunpack.c.l.b16 %v324
        %v355 = vunpack.c.h.b16 %v324
        %v356 = vunpack.c.l.b16 %v325
        %v357 = vunpack.c.h.b16 %v325
        %v358 = vunpack.c.l.b16 %v326
        %v359 = vunpack.c.h.b16 %v326
        %v360 = vunpack.c.l.b16 %v327
        %v361 = vunpack.c.h.b16 %v327
        %v362 = vunpack.c.l.b16 %v328
        %v363 = vunpack.c.h.b16 %v328
        %v364 = vunpack.c.l.b16 %v329
        %v365 = vunpack.c.h.b16 %v329
        %v366 = vunpack.c.l.b16 %v330
        %v367 = vunpack.c.h.b16 %v330
        %v368 = vunpack.c.l.b16 %v331
        %v369 = vunpack.c.h.b16 %v331
        %v370 = vunpack.c.l.b16 %v332
        %v371 = vunpack.c.h.b16 %v332
        %v372 = vunpack.c.l.b16 %v333
        %v373 = vunpack.c.h.b16 %v333
        %v374 = vunpack.c.l.b16 %v334
        %v375 = vunpack.c.h.b16 %v334
        %v376 = vunpack.c.l.b16 %v335
        %v377 = vunpack.c.h.b16 %v335
        %v378 = vpack.c.b16 %v354, %v350
        %v379 = vpack.c.b16 %v355, %v351
        %v380 = vpack.c.b16 %v356, %v352
        %v381 = vpack.c.b16 %v357, %v353
        %v382 = vpack.c.b16 %v362, %v358
        %v383 = vpack.c.b16 %v363, %v359
        %v384 = vpack.c.b16 %v364, %v360
        %v385 = vpack.c.b16 %v365, %v361
        %v386 = vpack.c.b16 %v370, %v366
        %v387 = vpack.c.b16 %v371, %v367
        %v388 = vpack.c.b16 %v372, %v368
        %v389 = vpack.c.b16 %v373, %v369
        %v390 = vpack.c.b16 %v374, %v374
        %v391 = vpack.c.b16 %v375, %v375
        %v392 = vpack.c.b16 %v376, %v376
        %v393 = vpack.c.b16 %v377, %v377
        %v474 = vunpack.c.l.b16 %v258
        %v475 = vunpack.c.h.b16 %v258
        %v476 = vunpack.c.l.b16 %v259
        %v477 = vunpack.c.h.b16 %v259
        %v478 = vunpack.c.l.b16 %v260
        %v479 = vunpack.c.h.b16 %v260
        %v480 = vunpack.c.l.b16 %v261
        %v481 = vunpack.c.h.b16 %v261
        %v482 = vunpack.c.l.b16 %v262
        %v483 = vunpack.c.h.b16 %v262
        %v484 = vunpack.c.l.b16 %v263
        %v485 = vunpack.c.h.b16 %v263
        %v486 = vunpack.c.l.b16 %v264
        %v487 = vunpack.c.h.b16 %v264
        %v488 = vunpack.c.l.b16 %v265
        %v489 = vunpack.c.h.b16 %v265
        %v490 = vunpack.c.l.b16 %v266
        %v491 = vunpack.c.h.b16 %v266
        %v492 = vunpack.c.l.b16 %v267
        %v493 = vunpack.c.h.b16 %v267
        %v494 = vunpack.c.l.b16 %v268
        %v495 = vunpack.c.h.b16 %v268
        %v496 = vunpack.c.l.b16 %v269
        %v497 = vunpack.c.h.b16 %v269
        %v498 = vunpack.c.l.b16 %v270
        %v499 = vunpack.c.h.b16 %v270
        %v500 = vunpack.c.l.b16 %v271
        %v501 = vunpack.c.h.b16 %v271
        %v502 = vunpack.c.l.b16 %v272
        %v503 = vunpack.c.h.b16 %v272
        %v504 = vunpack.c.l.b16 %v273
        %v505 = vunpack.c.h.b16 %v273
        %v506 = vunpack.c.l.b16 %v274
        %v507 = vunpack.c.h.b16 %v274
        %v508 = vunpack.c.l.b16 %v275
        %v509 = vunpack.c.h.b16 %v275
        %v510 = vunpack.c.l.b16 %v276
        %v511 = vunpack.c.h.b16 %v276
        %v512 = vunpack.c.l.b16 %v277
        %v513 = vunpack.c.h.b16 %v277
        %v514 = vunpack.c.l.b16 %v278
        %v515 = vunpack.c.h.b16 %v278
        %v516 = vunpack.c.l.b16 %v279
        %v517 = vunpack.c.h.b16 %v279
        %v518 = vunpack.c.l.b16 %v280
        %v519 = vunpack.c.h.b16 %v280
        %v520 = vunpack.c.l.b16 %v281
        %v521 = vunpack.c.h.b16 %v281
        %v522 = vunpack.c.l.b16 %v282
        %v523 = vunpack.c.h.b16 %v282
        %v524 = vunpack.c.l.b16 %v283
        %v525 = vunpack.c.h.b16 %v283
        %v526 = vunpack.c.l.b16 %v284
        %v527 = vunpack.c.h.b16 %v284
        %v528 = vunpack.c.l.b16 %v285
        %v529 = vunpack.c.h.b16 %v285
        %v530 = vunpack.c.l.b16 %v286
        %v531 = vunpack.c.h.b16 %v286
        %v532 = vunpack.c.l.b16 %v287
        %v533 = vunpack.c.h.b16 %v287
        %v534 = vunpack.c.l.b16 %v288
        %v535 = vunpack.c.h.b16 %v288
        %v536 = vunpack.c.l.b16 %v289
        %v537 = vunpack.c.h.b16 %v289
        %v538 = vunpack.c.l.b16 %v290
        %v539 = vunpack.c.h.b16 %v290
        %v540 = vunpack.c.l.b16 %v291
        %v541 = vunpack.c.h.b16 %v291
        %v542 = vunpack.c.l.b16 %v292
        %v543 = vunpack.c.h.b16 %v292
        %v544 = vunpack.c.l.b16 %v293
        %v545 = vunpack.c.h.b16 %v293
        %v546 = vunpack.c.l.b16 %v294
        %v547 = vunpack.c.h.b16 %v294
        %v548 = vunpack.c.l.b16 %v295
        %v549 = vunpack.c.h.b16 %v295
        %v550 = vunpack.c.l.b16 %v296
        %v551 = vunpack.c.h.b16 %v296
        %v552 = vunpack.c.l.b16 %v297
        %v553 = vunpack.c.h.b16 %v297
        %v554 = vunpack.c.l.b16 %v298
        %v555 = vunpack.c.h.b16 %v298
        %v556 = vunpack.c.l.b16 %v299
        %v557 = vunpack.c.h.b16 %v299
        %v558 = vunpack.c.l.b16 %v300
        %v559 = vunpack.c.h.b16 %v300
        %v560 = vunpack.c.l.b16 %v301
        %v561 = vunpack.c.h.b16 %v301
        %v562 = vunpack.c.l.b16 %v302
        %v563 = vunpack.c.h.b16 %v302
        %v564 = vunpack.c.l.b16 %v303
        %v565 = vunpack.c.h.b16 %v303
        %v566 = vunpack.c.l.b16 %v304
        %v567 = vunpack.c.h.b16 %v304
        %v568 = vunpack.c.l.b16 %v305
        %v569 = vunpack.c.h.b16 %v305
        %v570 = vunpack.c.l.b16 %v306
        %v571 = vunpack.c.h.b16 %v306
        %v572 = vunpack.c.l.b16 %v307
        %v573 = vunpack.c.h.b16 %v307
        %v574 = vunpack.c.l.b16 %v308
        %v575 = vunpack.c.h.b16 %v308
        %v576 = vunpack.c.l.b16 %v309
        %v577 = vunpack.c.h.b16 %v309
        %v578 = vunpack.c.l.b16 %v310
        %v579 = vunpack.c.h.b16 %v310
        %v580 = vunpack.c.l.b16 %v311
        %v581 = vunpack.c.h.b16 %v311
        %v582 = vunpack.c.l.b16 %v312
        %v583 = vunpack.c.h.b16 %v312
        %v584 = vunpack.c.l.b16 %v313
        %v585 = vunpack.c.h.b16 %v313
        %v586 = vunpack.c.l.b16 %v314
        %v587 = vunpack.c.h.b16 %v314
        %v588 = vunpack.c.l.b16 %v315
        %v589 = vunpack.c.h.b16 %v315
        %v590 = vunpack.c.l.b16 %v316
        %v591 = vunpack.c.h.b16 %v316
        %v592 = vunpack.c.l.b16 %v317
        %v593 = vunpack.c.h.b16 %v317
        %v594 = vunpack.c.l.b16 %v318
        %v595 = vunpack.c.h.b16 %v318
        %v596 = vunpack.c.l.b16 %v319
        %v597 = vunpack.c.h.b16 %v319
        %v598 = vunpack.c.l.b16 %v320
        %v599 = vunpack.c.h.b16 %v320
        %v600 = vunpack.c.l.b16 %v321
        %v601 = vunpack.c.h.b16 %v321
        %v602 = vpack.c.b16 %v476, %v474
        %v603 = vpack.c.b16 %v477, %v475
        %v604 = vpack.c.b16 %v480, %v478
        %v605 = vpack.c.b16 %v481, %v479
        %v606 = vpack.c.b16 %v484, %v482
        %v607 = vpack.c.b16 %v485, %v483
        %v608 = vpack.c.b16 %v488, %v486
        %v609 = vpack.c.b16 %v489, %v487
        %v610 = vpack.c.b16 %v492, %v490
        %v611 = vpack.c.b16 %v493, %v491
        %v612 = vpack.c.b16 %v496, %v494
        %v613 = vpack.c.b16 %v497, %v495
        %v614 = vpack.c.b16 %v500, %v498
        %v615 = vpack.c.b16 %v501, %v499
        %v616 = vpack.c.b16 %v504, %v502
        %v617 = vpack.c.b16 %v505, %v503
        %v618 = vpack.c.b16 %v508, %v506
        %v619 = vpack.c.b16 %v509, %v507
        %v620 = vpack.c.b16 %v512, %v510
        %v621 = vpack.c.b16 %v513, %v511
        %v622 = vpack.c.b16 %v516, %v514
        %v623 = vpack.c.b16 %v517, %v515
        %v624 = vpack.c.b16 %v520, %v518
        %v625 = vpack.c.b16 %v521, %v519
        %v626 = vpack.c.b16 %v524, %v522
        %v627 = vpack.c.b16 %v525, %v523
        %v628 = vpack.c.b16 %v528, %v526
        %v629 = vpack.c.b16 %v529, %v527
        %v630 = vpack.c.b16 %v532, %v530
        %v631 = vpack.c.b16 %v533, %v531
        %v632 = vpack.c.b16 %v536, %v534
        %v633 = vpack.c.b16 %v537, %v535
        %v634 = vpack.c.b16 %v540, %v538
        %v635 = vpack.c.b16 %v541, %v539
        %v636 = vpack.c.b16 %v544, %v542
        %v637 = vpack.c.b16 %v545, %v543
        %v638 = vpack.c.b16 %v548, %v546
        %v639 = vpack.c.b16 %v549, %v547
        %v640 = vpack.c.b16 %v552, %v550
        %v641 = vpack.c.b16 %v553, %v551
        %v642 = vpack.c.b16 %v556, %v554
        %v643 = vpack.c.b16 %v557, %v555
        %v644 = vpack.c.b16 %v560, %v558
        %v645 = vpack.c.b16 %v561, %v559
        %v646 = vpack.c.b16 %v564, %v562
        %v647 = vpack.c.b16 %v565, %v563
        %v648 = vpack.c.b16 %v568, %v566
        %v649 = vpack.c.b16 %v569, %v567
        %v650 = vpack.c.b16 %v572, %v570
        %v651 = vpack.c.b16 %v573, %v571
        %v652 = vpack.c.b16 %v576, %v574
        %v653 = vpack.c.b16 %v577, %v575
        %v654 = vpack.c.b16 %v580, %v578
        %v655 = vpack.c.b16 %v581, %v579
        %v656 = vpack.c.b16 %v584, %v582
        %v657 = vpack.c.b16 %v585, %v583
        %v658 = vpack.c.b16 %v588, %v586
        %v659 = vpack.c.b16 %v589, %v587
        %v660 = vpack.c.b16 %v592, %v590
        %v661 = vpack.c.b16 %v593, %v591
        %v662 = vpack.c.b16 %v596, %v594
        %v663 = vpack.c.b16 %v597, %v595
        %v664 = vpack.c.b16 %v600, %v598
        %v665 = vpack.c.b16 %v601, %v599
        %730 = vmatprep.subr.bf16.mxu0 %v603
        %731 = vmatpush1.bf16.msra.mxu0 %v602
        %732 = vmatprep.subr.bf16.mxu0 %v605
        %733 = vmatpush1.bf16.msra.mxu0 %v604
        %734 = vmatprep.subr.bf16.mxu0 %v607
        %735 = vmatpush1.bf16.msra.mxu0 %v606
        %736 = vmatprep.subr.bf16.mxu0 %v609
        %737 = vmatpush1.bf16.msra.mxu0 %v608
        %738 = vmatprep.subr.bf16.mxu0 %v611
        %739 = vmatpush1.bf16.msra.mxu0 %v610
        %740 = vmatprep.subr.bf16.mxu0 %v613
        %741 = vmatpush1.bf16.msra.mxu0 %v612
        %742 = vmatprep.subr.bf16.mxu0 %v615
        %743 = vmatpush1.bf16.msra.mxu0 %v614
        %744 = vmatprep.subr.bf16.mxu0 %v617
        %745 = vmatpush1.bf16.msra.mxu0 %v616
        %746 = vmatprep.subr.bf16.mxu0 %v619
        %747 = vmatpush1.bf16.msra.mxu0 %v618
        %748 = vmatprep.subr.bf16.mxu0 %v621
        %749 = vmatpush1.bf16.msra.mxu0 %v620
        %750 = vmatprep.subr.bf16.mxu0 %v623
        %751 = vmatpush1.bf16.msra.mxu0 %v622
        %752 = vmatprep.subr.bf16.mxu0 %v625
        %753 = vmatpush1.bf16.msra.mxu0 %v624
        %754 = vmatprep.subr.bf16.mxu0 %v627
        %755 = vmatpush1.bf16.msra.mxu0 %v626
        %756 = vmatprep.subr.bf16.mxu0 %v629
        %757 = vmatpush1.bf16.msra.mxu0 %v628
        %758 = vmatprep.subr.bf16.mxu0 %v631
        %759 = vmatpush1.bf16.msra.mxu0 %v630
        %760 = vmatprep.subr.bf16.mxu0 %v633
        %761 = vmatpush1.bf16.msra.mxu0 %v632
        %762 = vmatprep.mubr.bf16.mxu0 %v379
        %763 = vmatmul.mubr.bf16.gmra.mrb[0].mxu0 %v378
        %v764 = vpop.f32.mrb[0].mxu0
        %v765 = vadd.f32 0.0, %v764
        %v766 = vpop.f32.mrb[0].mxu0
        %v767 = vadd.f32 0.0, %v766
        %v768 = vpop.f32.mrb[0].mxu0
        %v769 = vadd.f32 0.0, %v768
        %v770 = vpop.f32.mrb[0].mxu0
        %v771 = vadd.f32 0.0, %v770
        %772 = vmatprep.mubr.bf16.mxu0 %v383
        %773 = vmatmul.mubr.bf16.gmra.mrb[0].mxu0 %v382
        %v774 = vpop.f32.mrb[0].mxu0
        %v775 = vadd.f32 0.0, %v774
        %v776 = vpop.f32.mrb[0].mxu0
        %v777 = vadd.f32 0.0, %v776
        %v778 = vpop.f32.mrb[0].mxu0
        %v779 = vadd.f32 0.0, %v778
        %v780 = vpop.f32.mrb[0].mxu0
        %v781 = vadd.f32 0.0, %v780
        %782 = vmatprep.mubr.bf16.mxu0 %v387
        %783 = vmatmul.mubr.bf16.gmra.mrb[0].mxu0 %v386
        %v784 = vpop.f32.mrb[0].mxu0
        %v785 = vadd.f32 0.0, %v784
        %v786 = vpop.f32.mrb[0].mxu0
        %v787 = vadd.f32 0.0, %v786
        %v788 = vpop.f32.mrb[0].mxu0
        %v789 = vadd.f32 0.0, %v788
        %v790 = vpop.f32.mrb[0].mxu0
        %v791 = vadd.f32 0.0, %v790
        %792 = vmatprep.mubr.bf16.mxu0 %v391
        %793 = vmatmul.mubr.bf16.gmra.mrb[0].mxu0 %v390
        %v794 = vpop.f32.mrb[0].mxu0
        %v795 = vadd.f32 0.0, %v794
        %v796 = vpop.f32.mrb[0].mxu0
        %v797 = vadd.f32 0.0, %v796
        %v798 = vpop.f32.mrb[0].mxu0
        %v799 = vpop.f32.mrb[0].mxu0
        %800 = vdwg.mxu0
        %801 = vmatprep.subr.bf16.mxu0 %v635
        %802 = vmatpush1.bf16.msra.mxu0 %v634
        %803 = vmatprep.subr.bf16.mxu0 %v637
        %804 = vmatpush1.bf16.msra.mxu0 %v636
        %805 = vmatprep.subr.bf16.mxu0 %v639
        %806 = vmatpush1.bf16.msra.mxu0 %v638
        %807 = vmatprep.subr.bf16.mxu0 %v641
        %808 = vmatpush1.bf16.msra.mxu0 %v640
        %809 = vmatprep.subr.bf16.mxu0 %v643
        %810 = vmatpush1.bf16.msra.mxu0 %v642
        %811 = vmatprep.subr.bf16.mxu0 %v645
        %812 = vmatpush1.bf16.msra.mxu0 %v644
        %813 = vmatprep.subr.bf16.mxu0 %v647
        %814 = vmatpush1.bf16.msra.mxu0 %v646
        %815 = vmatprep.subr.bf16.mxu0 %v649
        %816 = vmatpush1.bf16.msra.mxu0 %v648
        %817 = vmatprep.subr.bf16.mxu0 %v651
        %818 = vmatpush1.bf16.msra.mxu0 %v650
        %819 = vmatprep.subr.bf16.mxu0 %v653
        %820 = vmatpush1.bf16.msra.mxu0 %v652
        %821 = vmatprep.subr.bf16.mxu0 %v655
        %822 = vmatpush1.bf16.msra.mxu0 %v654
        %823 = vmatprep.subr.bf16.mxu0 %v657
        %824 = vmatpush1.bf16.msra.mxu0 %v656
        %825 = vmatprep.subr.bf16.mxu0 %v659
        %826 = vmatpush1.bf16.msra.mxu0 %v658
        %827 = vmatprep.subr.bf16.mxu0 %v661
        %828 = vmatpush1.bf16.msra.mxu0 %v660
        %829 = vmatprep.subr.bf16.mxu0 %v663
        %830 = vmatpush1.bf16.msra.mxu0 %v662
        %831 = vmatprep.subr.bf16.mxu0 %v665
        %832 = vmatpush1.bf16.msra.mxu0 %v664
        %833 = vmatprep.mubr.bf16.mxu0 %v381
        %834 = vmatmul.mubr.bf16.gmra.mrb[0].mxu0 %v380
        %v835 = vpop.f32.mrb[0].mxu0
        %v836 = vadd.f32 %v765, %v835
        %v837 = vpop.f32.mrb[0].mxu0
        %v838 = vadd.f32 %v767, %v837
        %v839 = vpop.f32.mrb[0].mxu0
        %v840 = vadd.f32 %v769, %v839
        %v841 = vpop.f32.mrb[0].mxu0
        %v842 = vadd.f32 %v771, %v841
        %843 = vmatprep.mubr.bf16.mxu0 %v385
        %844 = vmatmul.mubr.bf16.gmra.mrb[0].mxu0 %v384
        %v845 = vpop.f32.mrb[0].mxu0
        %v846 = vadd.f32 %v775, %v845
        %v847 = vpop.f32.mrb[0].mxu0
        %v848 = vadd.f32 %v777, %v847
        %v849 = vpop.f32.mrb[0].mxu0
        %v850 = vadd.f32 %v779, %v849
        %v851 = vpop.f32.mrb[0].mxu0
        %v852 = vadd.f32 %v781, %v851
        %853 = vmatprep.mubr.bf16.mxu0 %v389
        %854 = vmatmul.mubr.bf16.gmra.mrb[0].mxu0 %v388
        %v855 = vpop.f32.mrb[0].mxu0
        %v856 = vadd.f32 %v785, %v855
        %v857 = vpop.f32.mrb[0].mxu0
        %v858 = vadd.f32 %v787, %v857
        %v859 = vpop.f32.mrb[0].mxu0
        %v860 = vadd.f32 %v789, %v859
        %v861 = vpop.f32.mrb[0].mxu0
        %v862 = vadd.f32 %v791, %v861
        %863 = vmatprep.mubr.bf16.mxu0 %v393
        %864 = vmatmul.mubr.bf16.gmra.mrb[0].mxu0 %v392
        %v865 = vpop.f32.mrb[0].mxu0
        %v866 = vadd.f32 %v795, %v865
        %v867 = vpop.f32.mrb[0].mxu0
        %v868 = vadd.f32 %v797, %v867
        %v869 = vpop.f32.mrb[0].mxu0
        %v870 = vpop.f32.mrb[0].mxu0
        %871 = vdwg.mxu0
        %s872 = scalar_lea.vmem %s207, 112 [#allocation5]
        %v873 = vld [vmem:[%s872] sm:$0xff]
        %v874 = vld [vmem:[%s872 + $0x8] sm:$0xff]
        %v875 = vld [vmem:[%s872 + $0x10] sm:$0xff]
        %v876 = vld [vmem:[%s872 + $0x18] sm:$0xff]
        %v877 = vld [vmem:[%s872 + $0x20] sm:$0xff]
        %v878 = vld [vmem:[%s872 + $0x28] sm:$0xff]
        %v879 = vld [vmem:[%s872 + $0x30] sm:$0xff]
        %v880 = vld [vmem:[%s872 + $0x38] sm:$0xff]
        %v881 = vld [vmem:[%s872 + $0x40] sm:$0xff]
        %v882 = vld [vmem:[%s872 + $0x48] sm:$0xff]
        %v883 = vld [vmem:[%s872 + $0x50] sm:$0xff]
        %v884 = vld [vmem:[%s872 + $0x58] sm:$0xff]
        %v885 = vld [vmem:[%s872 + $0x60] sm:$0xff]
        %v886 = vld [vmem:[%s872 + $0x68] sm:$0xff]
        %v901 = vunpack.c.l.b16 %v873
        %v902 = vunpack.c.h.b16 %v873
        %v903 = vunpack.c.l.b16 %v874
        %v904 = vunpack.c.h.b16 %v874
        %v905 = vunpack.c.l.b16 %v875
        %v906 = vunpack.c.h.b16 %v875
        %v907 = vunpack.c.l.b16 %v876
        %v908 = vunpack.c.h.b16 %v876
        %v909 = vunpack.c.l.b16 %v877
        %v910 = vunpack.c.h.b16 %v877
        %v911 = vunpack.c.l.b16 %v878
        %v912 = vunpack.c.h.b16 %v878
        %v913 = vunpack.c.l.b16 %v879
        %v914 = vunpack.c.h.b16 %v879
        %v915 = vunpack.c.l.b16 %v880
        %v916 = vunpack.c.h.b16 %v880
        %v917 = vunpack.c.l.b16 %v881
        %v918 = vunpack.c.h.b16 %v881
        %v919 = vunpack.c.l.b16 %v882
        %v920 = vunpack.c.h.b16 %v882
        %v921 = vunpack.c.l.b16 %v883
        %v922 = vunpack.c.h.b16 %v883
        %v923 = vunpack.c.l.b16 %v884
        %v924 = vunpack.c.h.b16 %v884
        %v925 = vunpack.c.l.b16 %v885
        %v926 = vunpack.c.h.b16 %v885
        %v927 = vunpack.c.l.b16 %v886
        %v928 = vunpack.c.h.b16 %v886
        %v929 = vpack.c.b16 %v905, %v901
        %v930 = vpack.c.b16 %v906, %v902
        %v931 = vpack.c.b16 %v907, %v903
        %v932 = vpack.c.b16 %v908, %v904
        %v933 = vpack.c.b16 %v913, %v909
        %v934 = vpack.c.b16 %v914, %v910
        %v935 = vpack.c.b16 %v915, %v911
        %v936 = vpack.c.b16 %v916, %v912
        %v937 = vpack.c.b16 %v921, %v917
        %v938 = vpack.c.b16 %v922, %v918
        %v939 = vpack.c.b16 %v923, %v919
        %v940 = vpack.c.b16 %v924, %v920
        %v941 = vpack.c.b16 %v925, %v925
        %v942 = vpack.c.b16 %v926, %v926
        %v943 = vpack.c.b16 %v927, %v927
        %v944 = vpack.c.b16 %v928, %v928
        %961 = vmatprep.subr.bf16.mxu0 %v603
        %962 = vmatpush1.bf16.msra.mxu0 %v602
        %963 = vmatprep.subr.bf16.mxu0 %v605
        %964 = vmatpush1.bf16.msra.mxu0 %v604
        %965 = vmatprep.subr.bf16.mxu0 %v607
        %966 = vmatpush1.bf16.msra.mxu0 %v606
        %967 = vmatprep.subr.bf16.mxu0 %v609
        %968 = vmatpush1.bf16.msra.mxu0 %v608
        %969 = vmatprep.subr.bf16.mxu0 %v611
        %970 = vmatpush1.bf16.msra.mxu0 %v610
        %971 = vmatprep.subr.bf16.mxu0 %v613
        %972 = vmatpush1.bf16.msra.mxu0 %v612
        %973 = vmatprep.subr.bf16.mxu0 %v615
        %974 = vmatpush1.bf16.msra.mxu0 %v614
        %975 = vmatprep.subr.bf16.mxu0 %v617
        %976 = vmatpush1.bf16.msra.mxu0 %v616
        %977 = vmatprep.subr.bf16.mxu0 %v619
        %978 = vmatpush1.bf16.msra.mxu0 %v618
        %979 = vmatprep.subr.bf16.mxu0 %v621
        %980 = vmatpush1.bf16.msra.mxu0 %v620
        %981 = vmatprep.subr.bf16.mxu0 %v623
        %982 = vmatpush1.bf16.msra.mxu0 %v622
        %983 = vmatprep.subr.bf16.mxu0 %v625
        %984 = vmatpush1.bf16.msra.mxu0 %v624
        %985 = vmatprep.subr.bf16.mxu0 %v627
        %986 = vmatpush1.bf16.msra.mxu0 %v626
        %987 = vmatprep.subr.bf16.mxu0 %v629
        %988 = vmatpush1.bf16.msra.mxu0 %v628
        %989 = vmatprep.subr.bf16.mxu0 %v631
        %990 = vmatpush1.bf16.msra.mxu0 %v630
        %991 = vmatprep.subr.bf16.mxu0 %v633
        %992 = vmatpush1.bf16.msra.mxu0 %v632
        %993 = vmatprep.mubr.bf16.mxu0 %v930
        %994 = vmatmul.mubr.bf16.gmra.mrb[0].mxu0 %v929
        %v995 = vpop.f32.mrb[0].mxu0
        %v996 = vadd.f32 0.0, %v995
        %v997 = vpop.f32.mrb[0].mxu0
        %v998 = vadd.f32 0.0, %v997
        %v999 = vpop.f32.mrb[0].mxu0
        %v1000 = vadd.f32 0.0, %v999
        %v1001 = vpop.f32.mrb[0].mxu0
        %v1002 = vadd.f32 0.0, %v1001
        %1003 = vmatprep.mubr.bf16.mxu0 %v934
        %1004 = vmatmul.mubr.bf16.gmra.mrb[0].mxu0 %v933
        %v1005 = vpop.f32.mrb[0].mxu0
        %v1006 = vadd.f32 0.0, %v1005
        %v1007 = vpop.f32.mrb[0].mxu0
        %v1008 = vadd.f32 0.0, %v1007
        %v1009 = vpop.f32.mrb[0].mxu0
        %v1010 = vadd.f32 0.0, %v1009
        %v1011 = vpop.f32.mrb[0].mxu0
        %v1012 = vadd.f32 0.0, %v1011
        %1013 = vmatprep.mubr.bf16.mxu0 %v938
        %1014 = vmatmul.mubr.bf16.gmra.mrb[0].mxu0 %v937
        %v1015 = vpop.f32.mrb[0].mxu0
        %v1016 = vadd.f32 0.0, %v1015
        %v1017 = vpop.f32.mrb[0].mxu0
        %v1018 = vadd.f32 0.0, %v1017
        %v1019 = vpop.f32.mrb[0].mxu0
        %v1020 = vadd.f32 0.0, %v1019
        %v1021 = vpop.f32.mrb[0].mxu0
        %v1022 = vadd.f32 0.0, %v1021
        %1023 = vmatprep.mubr.bf16.mxu0 %v942
        %1024 = vmatmul.mubr.bf16.gmra.mrb[0].mxu0 %v941
        %v1025 = vpop.f32.mrb[0].mxu0
        %v1026 = vadd.f32 0.0, %v1025
        %v1027 = vpop.f32.mrb[0].mxu0
        %v1028 = vadd.f32 0.0, %v1027
        %v1029 = vpop.f32.mrb[0].mxu0
        %v1030 = vpop.f32.mrb[0].mxu0
        %1031 = vdwg.mxu0
        %1032 = vmatprep.subr.bf16.mxu0 %v635
        %1033 = vmatpush1.bf16.msra.mxu0 %v634
        %1034 = vmatprep.subr.bf16.mxu0 %v637
        %1035 = vmatpush1.bf16.msra.mxu0 %v636
        %1036 = vmatprep.subr.bf16.mxu0 %v639
        %1037 = vmatpush1.bf16.msra.mxu0 %v638
        %1038 = vmatprep.subr.bf16.mxu0 %v641
        %1039 = vmatpush1.bf16.msra.mxu0 %v640
        %1040 = vmatprep.subr.bf16.mxu0 %v643
        %1041 = vmatpush1.bf16.msra.mxu0 %v642
        %1042 = vmatprep.subr.bf16.mxu0 %v645
        %1043 = vmatpush1.bf16.msra.mxu0 %v644
        %1044 = vmatprep.subr.bf16.mxu0 %v647
        %1045 = vmatpush1.bf16.msra.mxu0 %v646
        %1046 = vmatprep.subr.bf16.mxu0 %v649
        %1047 = vmatpush1.bf16.msra.mxu0 %v648
        %1048 = vmatprep.subr.bf16.mxu0 %v651
        %1049 = vmatpush1.bf16.msra.mxu0 %v650
        %1050 = vmatprep.subr.bf16.mxu0 %v653
        %1051 = vmatpush1.bf16.msra.mxu0 %v652
        %1052 = vmatprep.subr.bf16.mxu0 %v655
        %1053 = vmatpush1.bf16.msra.mxu0 %v654
        %1054 = vmatprep.subr.bf16.mxu0 %v657
        %1055 = vmatpush1.bf16.msra.mxu0 %v656
        %1056 = vmatprep.subr.bf16.mxu0 %v659
        %1057 = vmatpush1.bf16.msra.mxu0 %v658
        %1058 = vmatprep.subr.bf16.mxu0 %v661
        %1059 = vmatpush1.bf16.msra.mxu0 %v660
        %1060 = vmatprep.subr.bf16.mxu0 %v663
        %1061 = vmatpush1.bf16.msra.mxu0 %v662
        %1062 = vmatprep.subr.bf16.mxu0 %v665
        %1063 = vmatpush1.bf16.msra.mxu0 %v664
        %1064 = vmatprep.mubr.bf16.mxu0 %v932
        %1065 = vmatmul.mubr.bf16.gmra.mrb[0].mxu0 %v931
        %v1066 = vpop.f32.mrb[0].mxu0
        %v1067 = vadd.f32 %v996, %v1066
        %v1068 = vpop.f32.mrb[0].mxu0
        %v1069 = vadd.f32 %v998, %v1068
        %v1070 = vpop.f32.mrb[0].mxu0
        %v1071 = vadd.f32 %v1000, %v1070
        %v1072 = vpop.f32.mrb[0].mxu0
        %v1073 = vadd.f32 %v1002, %v1072
        %1074 = vmatprep.mubr.bf16.mxu0 %v936
        %1075 = vmatmul.mubr.bf16.gmra.mrb[0].mxu0 %v935
        %v1076 = vpop.f32.mrb[0].mxu0
        %v1077 = vadd.f32 %v1006, %v1076
        %v1078 = vpop.f32.mrb[0].mxu0
        %v1079 = vadd.f32 %v1008, %v1078
        %v1080 = vpop.f32.mrb[0].mxu0
        %v1081 = vadd.f32 %v1010, %v1080
        %v1082 = vpop.f32.mrb[0].mxu0
        %v1083 = vadd.f32 %v1012, %v1082
        %1084 = vmatprep.mubr.bf16.mxu0 %v940
        %1085 = vmatmul.mubr.bf16.gmra.mrb[0].mxu0 %v939
        %v1086 = vpop.f32.mrb[0].mxu0
        %v1087 = vadd.f32 %v1016, %v1086
        %v1088 = vpop.f32.mrb[0].mxu0
        %v1089 = vadd.f32 %v1018, %v1088
        %v1090 = vpop.f32.mrb[0].mxu0
        %v1091 = vadd.f32 %v1020, %v1090
        %v1092 = vpop.f32.mrb[0].mxu0
        %v1093 = vadd.f32 %v1022, %v1092
        %1094 = vmatprep.mubr.bf16.mxu0 %v944
        %1095 = vmatmul.mubr.bf16.gmra.mrb[0].mxu0 %v943
        %v1096 = vpop.f32.mrb[0].mxu0
        %v1097 = vadd.f32 %v1026, %v1096
        %v1098 = vpop.f32.mrb[0].mxu0
        %v1099 = vadd.f32 %v1028, %v1098
        %v1100 = vpop.f32.mrb[0].mxu0
        %v1101 = vpop.f32.mrb[0].mxu0
        %1102 = vdwg.mxu0
        %v1103 = vmul.f32 %v836, %v836
        %v1104 = vmul.f32 %v840, %v840
        %v1105 = vmul.f32 %v846, %v846
        %v1106 = vmul.f32 %v850, %v850
        %v1107 = vmul.f32 %v856, %v856
        %v1108 = vmul.f32 %v860, %v860
        %v1109 = vmul.f32 %v866, %v866
        %v1110 = vmul.f32 %v838, %v838
        %v1111 = vmul.f32 %v842, %v842
        %v1112 = vmul.f32 %v848, %v848
        %v1113 = vmul.f32 %v852, %v852
        %v1114 = vmul.f32 %v858, %v858
        %v1115 = vmul.f32 %v862, %v862
        %v1116 = vmul.f32 %v868, %v868
        %v1117 = vadd.f32 %v1103, %v1110
        %v1118 = vadd.f32 %v1104, %v1111
        %v1119 = vadd.f32 %v1105, %v1112
        %v1120 = vadd.f32 %v1106, %v1113
        %v1121 = vadd.f32 %v1107, %v1114
        %v1122 = vadd.f32 %v1108, %v1115
        %v1123 = vadd.f32 %v1109, %v1116
        %v1124 = vmax.f32 %v1117, 1e-07
        %v1125 = vmax.f32 %v1118, 1e-07
        %v1126 = vmax.f32 %v1119, 1e-07
        %v1127 = vmax.f32 %v1120, 1e-07
        %v1128 = vmax.f32 %v1121, 1e-07
        %v1129 = vmax.f32 %v1122, 1e-07
        %v1130 = vmax.f32 %v1123, 1e-07
        %v1131 = vmul.f32 %v1067, %v1067
        %v1132 = vmul.f32 %v1071, %v1071
        %v1133 = vmul.f32 %v1077, %v1077
        %v1134 = vmul.f32 %v1081, %v1081
        %v1135 = vmul.f32 %v1087, %v1087
        %v1136 = vmul.f32 %v1091, %v1091
        %v1137 = vmul.f32 %v1097, %v1097
        %v1138 = vmul.f32 %v1069, %v1069
        %v1139 = vmul.f32 %v1073, %v1073
        %v1140 = vmul.f32 %v1079, %v1079
        %v1141 = vmul.f32 %v1083, %v1083
        %v1142 = vmul.f32 %v1089, %v1089
        %v1143 = vmul.f32 %v1093, %v1093
        %v1144 = vmul.f32 %v1099, %v1099
        %v1145 = vadd.f32 %v1131, %v1138
        %v1146 = vadd.f32 %v1132, %v1139
        %v1147 = vadd.f32 %v1133, %v1140
        %v1148 = vadd.f32 %v1134, %v1141
        %v1149 = vadd.f32 %v1135, %v1142
        %v1150 = vadd.f32 %v1136, %v1143
        %v1151 = vadd.f32 %v1137, %v1144
        %v1152 = vmax.f32 %v1145, 1e-07
        %v1153 = vmax.f32 %v1146, 1e-07
        %v1154 = vmax.f32 %v1147, 1e-07
        %v1155 = vmax.f32 %v1148, 1e-07
        %v1156 = vmax.f32 %v1149, 1e-07
        %v1157 = vmax.f32 %v1150, 1e-07
        %v1158 = vmax.f32 %v1151, 1e-07
        %v1159 = vld [vmem:[#allocation2] sm:$0xff]
        %v1160 = vld [vmem:[#allocation2 + $0x8] sm:$0xff]
        %v1161 = vld [vmem:[#allocation2 + $0x10] sm:$0xff]
        %v1162 = vld [vmem:[#allocation2 + $0x18] sm:$0xff]
        %v1163 = vld [vmem:[#allocation2 + $0x20] sm:$0xff]
        %v1164 = vld [vmem:[#allocation2 + $0x28] sm:$0xff]
        %v1165 = vld [vmem:[#allocation2 + $0x30] sm:$0xff]
        %v1166 = vadd.f32 %v1124, %v1152
        %v1167 = vadd.f32 %v1125, %v1153
        %v1168 = vadd.f32 %v1126, %v1154
        %v1169 = vadd.f32 %v1127, %v1155
        %v1170 = vadd.f32 %v1128, %v1156
        %v1171 = vadd.f32 %v1129, %v1157
        %v1172 = vadd.f32 %v1130, %v1158
        %v1173 = vmul.f32 %v1124, %v1152
        %v1174 = vmul.f32 %v1125, %v1153
        %v1175 = vmul.f32 %v1126, %v1154
        %v1176 = vmul.f32 %v1127, %v1155
        %v1177 = vmul.f32 %v1128, %v1156
        %v1178 = vmul.f32 %v1129, %v1157
        %v1179 = vmul.f32 %v1130, %v1158
        %v1180 = vrsqrt.pop %v1173
        %v1181 = vmul.f32 %v1173, %v1180
        %vm1182 = vcmp.eq.f32.partialorder %v1173, inf
        %v1183 = vsel %vm1182, %v1173, %v1181
        %vm1184 = vcmp.eq.f32.partialorder %v1173, 0.0
        %v1185 = vand.u32 %v1173, 2147483648
        %v1186 = vsel %vm1184, %v1185, %v1183
        %v1187 = vrsqrt.pop %v1174
        %v1188 = vmul.f32 %v1174, %v1187
        %vm1189 = vcmp.eq.f32.partialorder %v1174, inf
        %v1190 = vsel %vm1189, %v1174, %v1188
        %vm1191 = vcmp.eq.f32.partialorder %v1174, 0.0
        %v1192 = vand.u32 %v1174, 2147483648
        %v1193 = vsel %vm1191, %v1192, %v1190
        %v1194 = vrsqrt.pop %v1175
        %v1195 = vmul.f32 %v1175, %v1194
        %vm1196 = vcmp.eq.f32.partialorder %v1175, inf
        %v1197 = vsel %vm1196, %v1175, %v1195
        %vm1198 = vcmp.eq.f32.partialorder %v1175, 0.0
        %v1199 = vand.u32 %v1175, 2147483648
        %v1200 = vsel %vm1198, %v1199, %v1197
        %v1201 = vrsqrt.pop %v1176
        %v1202 = vmul.f32 %v1176, %v1201
        %vm1203 = vcmp.eq.f32.partialorder %v1176, inf
        %v1204 = vsel %vm1203, %v1176, %v1202
        %vm1205 = vcmp.eq.f32.partialorder %v1176, 0.0
        %v1206 = vand.u32 %v1176, 2147483648
        %v1207 = vsel %vm1205, %v1206, %v1204
        %v1208 = vrsqrt.pop %v1177
        %v1209 = vmul.f32 %v1177, %v1208
        %vm1210 = vcmp.eq.f32.partialorder %v1177, inf
        %v1211 = vsel %vm1210, %v1177, %v1209
        %vm1212 = vcmp.eq.f32.partialorder %v1177, 0.0
        %v1213 = vand.u32 %v1177, 2147483648
        %v1214 = vsel %vm1212, %v1213, %v1211
        %v1215 = vrsqrt.pop %v1178
        %v1216 = vmul.f32 %v1178, %v1215
        %vm1217 = vcmp.eq.f32.partialorder %v1178, inf
        %v1218 = vsel %vm1217, %v1178, %v1216
        %vm1219 = vcmp.eq.f32.partialorder %v1178, 0.0
        %v1220 = vand.u32 %v1178, 2147483648
        %v1221 = vsel %vm1219, %v1220, %v1218
        %v1222 = vrsqrt.pop %v1179
        %v1223 = vmul.f32 %v1179, %v1222
        %vm1224 = vcmp.eq.f32.partialorder %v1179, inf
        %v1225 = vsel %vm1224, %v1179, %v1223
        %vm1226 = vcmp.eq.f32.partialorder %v1179, 0.0
        %v1227 = vand.u32 %v1179, 2147483648
        %v1228 = vsel %vm1226, %v1227, %v1225
        %v1229 = vmul.f32 %v1186, 2.0
        %v1230 = vmul.f32 %v1193, 2.0
        %v1231 = vmul.f32 %v1200, 2.0
        %v1232 = vmul.f32 %v1207, 2.0
        %v1233 = vmul.f32 %v1214, 2.0
        %v1234 = vmul.f32 %v1221, 2.0
        %v1235 = vmul.f32 %v1228, 2.0
        %v1236 = vsub.f32 %v1166, %v1229
        %v1237 = vsub.f32 %v1167, %v1230
        %v1238 = vsub.f32 %v1168, %v1231
        %v1239 = vsub.f32 %v1169, %v1232
        %v1240 = vsub.f32 %v1170, %v1233
        %v1241 = vsub.f32 %v1171, %v1234
        %v1242 = vsub.f32 %v1172, %v1235
        %v1243 = vadd.f32 %v1159, %v1236
        %v1244 = vadd.f32 %v1160, %v1237
        %v1245 = vadd.f32 %v1161, %v1238
        %v1246 = vadd.f32 %v1162, %v1239
        %v1247 = vadd.f32 %v1163, %v1240
        %v1248 = vadd.f32 %v1164, %v1241
        %v1249 = vadd.f32 %v1165, %v1242
        %1250 = vst [vmem:[#allocation2] sm:$0xff] %v1243
        %1251 = vst [vmem:[#allocation2 + $0x8] sm:$0xff] %v1244
        %1252 = vst [vmem:[#allocation2 + $0x10] sm:$0xff] %v1245
        %1253 = vst [vmem:[#allocation2 + $0x18] sm:$0xff] %v1246
        %1254 = vst [vmem:[#allocation2 + $0x20] sm:$0xff] %v1247
        %1255 = vst [vmem:[#allocation2 + $0x28] sm:$0xff] %v1248
        %1256 = vst [vmem:[#allocation2 + $0x30] sm:$0xff] %v1249
        %v1257 = vld [vmem:[#allocation3] sm:$0xff]
        %v1258 = vld [vmem:[#allocation3 + $0x8] sm:$0xff]
        %v1259 = vld [vmem:[#allocation3 + $0x10] sm:$0xff]
        %v1260 = vld [vmem:[#allocation3 + $0x18] sm:$0xff]
        %v1261 = vld [vmem:[#allocation3 + $0x20] sm:$0xff]
        %v1262 = vld [vmem:[#allocation3 + $0x28] sm:$0xff]
        %v1263 = vld [vmem:[#allocation3 + $0x30] sm:$0xff]
        %v1264 = vadd.f32 %v1257, %v1152
        %v1265 = vadd.f32 %v1258, %v1153
        %v1266 = vadd.f32 %v1259, %v1154
        %v1267 = vadd.f32 %v1260, %v1155
        %v1268 = vadd.f32 %v1261, %v1156
        %v1269 = vadd.f32 %v1262, %v1157
        %v1270 = vadd.f32 %v1263, %v1158
        %1271 = vst [vmem:[#allocation3] sm:$0xff] %v1264
        %1272 = vst [vmem:[#allocation3 + $0x8] sm:$0xff] %v1265
        %1273 = vst [vmem:[#allocation3 + $0x10] sm:$0xff] %v1266
        %1274 = vst [vmem:[#allocation3 + $0x18] sm:$0xff] %v1267
        %1275 = vst [vmem:[#allocation3 + $0x20] sm:$0xff] %v1268
        %1276 = vst [vmem:[#allocation3 + $0x28] sm:$0xff] %v1269
        %1277 = vst [vmem:[#allocation3 + $0x30] sm:$0xff] %v1270
        %v1278 = vld [vmem:[#allocation4] sm:$0xff]
        %v1279 = vld [vmem:[#allocation4 + $0x8] sm:$0xff]
        %v1280 = vld [vmem:[#allocation4 + $0x10] sm:$0xff]
        %v1281 = vld [vmem:[#allocation4 + $0x18] sm:$0xff]
        %v1282 = vld [vmem:[#allocation4 + $0x20] sm:$0xff]
        %v1283 = vld [vmem:[#allocation4 + $0x28] sm:$0xff]
        %v1284 = vld [vmem:[#allocation4 + $0x30] sm:$0xff]
        %v1285 = vrcp.pop %v1124
        %v1286 = vrcp.pop %v1125
        %v1287 = vrcp.pop %v1126
        %v1288 = vrcp.pop %v1127
        %v1289 = vrcp.pop %v1128
        %v1290 = vrcp.pop %v1129
        %v1291 = vrcp.pop %v1130
        %v1292 = vmul.f32 %v1152, %v1285
        %v1293 = vmul.f32 %v1153, %v1286
        %v1294 = vmul.f32 %v1154, %v1287
        %v1295 = vmul.f32 %v1155, %v1288
        %v1296 = vmul.f32 %v1156, %v1289
        %v1297 = vmul.f32 %v1157, %v1290
        %v1298 = vmul.f32 %v1158, %v1291
        %v1299 = vlog2.pop %v1292
        %v1300 = vmul.f32 %v1299, 0.6931472
        %v1301 = vlog2.pop %v1293
        %v1302 = vmul.f32 %v1301, 0.6931472
        %v1303 = vlog2.pop %v1294
        %v1304 = vmul.f32 %v1303, 0.6931472
        %v1305 = vlog2.pop %v1295
        %v1306 = vmul.f32 %v1305, 0.6931472
        %v1307 = vlog2.pop %v1296
        %v1308 = vmul.f32 %v1307, 0.6931472
        %v1309 = vlog2.pop %v1297
        %v1310 = vmul.f32 %v1309, 0.6931472
        %v1311 = vlog2.pop %v1298
        %v1312 = vmul.f32 %v1311, 0.6931472
        %v1313 = vand.u32 2147483647, %v1300
        %v1314 = vand.u32 2147483647, %v1302
        %v1315 = vand.u32 2147483647, %v1304
        %v1316 = vand.u32 2147483647, %v1306
        %v1317 = vand.u32 2147483647, %v1308
        %v1318 = vand.u32 2147483647, %v1310
        %v1319 = vand.u32 2147483647, %v1312
        %v1320 = vadd.f32 %v1278, %v1313
        %v1321 = vadd.f32 %v1279, %v1314
        %v1322 = vadd.f32 %v1280, %v1315
        %v1323 = vadd.f32 %v1281, %v1316
        %v1324 = vadd.f32 %v1282, %v1317
        %v1325 = vadd.f32 %v1283, %v1318
        %v1326 = vadd.f32 %v1284, %v1319
        %1327 = vst [vmem:[#allocation4] sm:$0xff] %v1320
        %1328 = vst [vmem:[#allocation4 + $0x8] sm:$0xff] %v1321
        %1329 = vst [vmem:[#allocation4 + $0x10] sm:$0xff] %v1322
        %1330 = vst [vmem:[#allocation4 + $0x18] sm:$0xff] %v1323
        %1331 = vst [vmem:[#allocation4 + $0x20] sm:$0xff] %v1324
        %1332 = vst [vmem:[#allocation4 + $0x28] sm:$0xff] %v1325
        %1333 = vst [vmem:[#allocation4 + $0x30] sm:$0xff] %v1326
        %p1334 = scmp.eq.s32.totalorder %s18, 1
        // Predicated region
        $region56: #{_combined_loss_impl.5} parent=46 // pred_check
          %p1335 = pneg %p1334
        $region57: #{_combined_loss_impl.5} parent=46 // pred_check_branch
          %1337 = sbr.rel (%p1335) target = $region59
        $region58: #{_combined_loss_impl.5} parent=46 // pred_region
          %v1338 = vlaneseq
          %v1339 = vand.u32 %v1338, 127
          %v1340 = vld [vmem:[#allocation2] sm:$0xff]
          %v1341 = vld [vmem:[#allocation2 + $0x8] sm:$0xff]
          %v1342 = vld [vmem:[#allocation2 + $0x10] sm:$0xff]
          %v1343 = vld [vmem:[#allocation2 + $0x18] sm:$0xff]
          %v1344 = vld [vmem:[#allocation2 + $0x20] sm:$0xff]
          %v1345 = vld [vmem:[#allocation2 + $0x28] sm:$0xff]
          %v1346 = vld [vmem:[#allocation2 + $0x30] sm:$0xff]
          %v1347 = vadd.f32 %v1340, %v1341
          %v1348 = vadd.f32 %v1347, %v1342
          %v1349 = vadd.f32 %v1348, %v1343
          %v1350 = vadd.f32 %v1349, %v1344
          %v1351 = vadd.f32 %v1350, %v1345
          %v1352 = vadd.f32 %v1351, %v1346
          %1353 = vadd.xlane.f32.xlu0 %v1352
          %v1354 = vpop.xlane.xlu0 %1353
          %v1355 = vrot.slane %v1354, 4
          %v1356 = vadd.f32 %v1354, %v1355
          %v1357 = vrot.slane %v1356, 2
          %v1358 = vadd.f32 %v1356, %v1357
          %v1359 = vrot.slane %v1358, 1
          %v1360 = vadd.f32 %v1358, %v1359
          %s1361 = vtos %v1360
          %v1362 = vld [vmem:[#allocation3] sm:$0xff]
          %v1363 = vld [vmem:[#allocation3 + $0x8] sm:$0xff]
          %v1364 = vld [vmem:[#allocation3 + $0x10] sm:$0xff]
          %v1365 = vld [vmem:[#allocation3 + $0x18] sm:$0xff]
          %v1366 = vld [vmem:[#allocation3 + $0x20] sm:$0xff]
          %v1367 = vld [vmem:[#allocation3 + $0x28] sm:$0xff]
          %v1368 = vld [vmem:[#allocation3 + $0x30] sm:$0xff]
          %v1369 = vadd.f32 %v1362, %v1363
          %v1370 = vadd.f32 %v1369, %v1364
          %v1371 = vadd.f32 %v1370, %v1365
          %v1372 = vadd.f32 %v1371, %v1366
          %v1373 = vadd.f32 %v1372, %v1367
          %v1374 = vadd.f32 %v1373, %v1368
          %1375 = vadd.xlane.f32.xlu0 %v1374
          %v1376 = vpop.xlane.xlu0 %1375
          %v1377 = vrot.slane %v1376, 4
          %v1378 = vadd.f32 %v1376, %v1377
          %v1379 = vrot.slane %v1378, 2
          %v1380 = vadd.f32 %v1378, %v1379
          %v1381 = vrot.slane %v1380, 1
          %v1382 = vadd.f32 %v1380, %v1381
          %s1383 = vtos %v1382
          %v1384 = vld [vmem:[#allocation4] sm:$0xff]
          %v1385 = vld [vmem:[#allocation4 + $0x8] sm:$0xff]
          %v1386 = vld [vmem:[#allocation4 + $0x10] sm:$0xff]
          %v1387 = vld [vmem:[#allocation4 + $0x18] sm:$0xff]
          %v1388 = vld [vmem:[#allocation4 + $0x20] sm:$0xff]
          %v1389 = vld [vmem:[#allocation4 + $0x28] sm:$0xff]
          %v1390 = vld [vmem:[#allocation4 + $0x30] sm:$0xff]
          %v1391 = vadd.f32 %v1384, %v1385
          %v1392 = vadd.f32 %v1391, %v1386
          %v1393 = vadd.f32 %v1392, %v1387
          %v1394 = vadd.f32 %v1393, %v1388
          %v1395 = vadd.f32 %v1394, %v1389
          %v1396 = vadd.f32 %v1395, %v1390
          %1397 = vadd.xlane.f32.xlu0 %v1396
          %v1398 = vpop.xlane.xlu0 %1397
          %v1399 = vrot.slane %v1398, 4
          %v1400 = vadd.f32 %v1398, %v1399
          %v1401 = vrot.slane %v1400, 2
          %v1402 = vadd.f32 %v1400, %v1401
          %v1403 = vrot.slane %v1402, 1
          %v1404 = vadd.f32 %v1402, %v1403
          %s1405 = vtos %v1404
          %s1406 = smul.f32 %s1405, 0.5
          %vm1407 = vcmp.eq.s32.totalorder %v1339, 0
          %vm1408 = vcmp.eq.s32.totalorder %v1339, 1
          %vm1409 = vcmp.eq.s32.totalorder %v1339, 2
          %v1410 = vstv %s1406
          %v1411 = vsel %vm1409, %v1410, 0.0
          %v1412 = vstv %s1383
          %v1413 = vsel %vm1408, %v1412, %v1411
          %v1414 = vstv %s1361
          %v1415 = vsel %vm1407, %v1414, %v1413
          %1416 = vst [vmem:[%s229] sm:$0xff] %v1415
        $region59: #{_combined_loss_impl.5} parent=46 // pred_fallthru
          _
        %p1417 = scmp.lt.s32.totalorder %s17, 1
        %s1418 = scalar_select %p1417, %s17, 1
        %s1419 = smul.addr %s1418, 8
        %s1420 = scalar_lea.vmem %s2, %s1419
        // Predicated region
        $region60: #{_combined_loss_impl.5} parent=46 // pred_check
          %p1421 = pneg %p90
        $region61: #{_combined_loss_impl.5} parent=46 // pred_check_branch
          %1423 = sbr.rel (%p1421) target = $region63
        $region62: #{_combined_loss_impl.5} parent=46 // pred_region
          _
        $region63: #{_combined_loss_impl.5} parent=46 // pred_fallthru
          _
      $region47: #{_combined_loss_impl.5} parent=5 // pred_fallthru
        _
      %p1424 = scmp.le.s32.totalorder 2, %s8
      // Predicated region
      $region64: #{_combined_loss_impl.5} parent=5 // pred_check
        %p1425 = pneg %p1424
      $region65: #{_combined_loss_impl.5} parent=5 // pred_check_branch
        %1427 = sbr.rel (%p1425) target = $region67
      $region66: #{_combined_loss_impl.5} parent=5 // pred_region
        %s1428 = ssub.s32 %s8, 2
        // Predicated region
        $region68: #{_combined_loss_impl.5} parent=66 // pred_check
          %p1429 = pneg %p96
        $region69: #{_combined_loss_impl.5} parent=66 // pred_check_branch
          %1431 = sbr.rel (%p1429) target = $region71
        $region70: #{_combined_loss_impl.5} parent=66 // pred_region
          %p1432 = scmp.lt.s32.totalorder %s19, 1
          %s1433 = scalar_select %p1432, %s19, 1
          %s1434 = smul.addr %s1433, 8
          %s1435 = scalar_lea.vmem %s2, %s1434
        $region71: #{_combined_loss_impl.5} parent=66 // pred_fallthru
          _
      $region67: #{_combined_loss_impl.5} parent=5 // pred_fallthru
        _
    $region6: #{_combined_loss_impl.5} parent=1 // loop_footer
      %s12 = sadd.s32 1, %s8
    $region7: #{_combined_loss_impl.5} parent=1 // loop_footer_branch
      %7 = sbr.rel target = $region3
    $region8: #{_combined_loss_impl.5} parent=1 // loop_exit
      _

// kernel: _combined_loss_impl.6
$region0: #{_combined_loss_impl.6}
  #allocation0 [shape = 'u32[]', space=smem, size = 0x4, offset = 0x4, fixed_abs, tag = 'smem constant byte address 0x4 - core index']
  #allocation1 [shape = 'u32[144,128]{1,0:T(1,128)}', space=vmem, size = 0x12000, scoped, tag = 'internal scratch']
  #allocation2 [shape = 'f32[24,128]{1,0:T(8,128)}', space=vmem, size = 0x3000, scoped, tag = 'scratch operand']
  #allocation3 [shape = 'f32[24,128]{1,0:T(8,128)}', space=vmem, size = 0x3000, scoped, tag = 'scratch operand']
  #allocation4 [shape = 'f32[24,128]{1,0:T(8,128)}', space=vmem, size = 0x3000, scoped, tag = 'scratch operand']
  %s0 = inlined_call_operand.vmem [shape: bf16[2,48,1024], index: 0, kind: input, shape index: {}]
  %s1 = inlined_call_operand.vmem [shape: bf16[4,1024,256], index: 1, kind: input, shape index: {}]
  %s2 = inlined_call_operand.vmem [shape: f32[2,8,128], index: 2, kind: output, shape index: {}]
  %s3 = sld [smem:[#allocation0]]
  $region72: #{_combined_loss_impl.6} parent=0
    _
  %s5 = ssub.s32 1, %s3
  %s6 = scalar_select 0, %s5, %s3
  $region1: #{_combined_loss_impl.6} parent=0
    #allocation5 [shape = 'u8[196608]{0}', space=vmem, size = 0x30000, scoped, tag = 'input window, operand 0']
    loop: start=0, step=1, limit=10
    $region2: #{_combined_loss_impl.6} parent=1 // loop_pre_header
      _
    $region3: #{_combined_loss_impl.6} parent=1 // loop_header
      %s8 = sphi 0, %s12
      %p9 = scmp.ge.s32.totalorder %s8, 10
      %s15 = sphi 0, %s27
      %s16 = sphi 0, %s23
      %s17 = sphi 0, %s15
      %s18 = sphi 0, %s16
      %s19 = sphi 0, %s17
      %s20 = sphi 0, %s18
      %s30 = sphi 0, %s32
      %s33 = sphi 0, %s30
      %s34 = sphi 0, %s33
      %s50 = sphi 0, %s34
      %s54 = sphi 0, %s54
      %s56 = sphi 0, %s54
      %s57 = sphi 0, %s56
      %s71 = sphi 0, %s57
      %s77 = sphi 0, %s79
      %s80 = sphi 0, %s77
      %s81 = sphi 0, %s80
      %s97 = sphi 0, %s81
    $region4: #{_combined_loss_impl.6} parent=1 // loop_header_branch
      %11 = sbr.rel (%p9) target = $region8
    $region5: #{_combined_loss_impl.6} parent=1 // loop_body
      %s13 = ssub.s32 %s8, 1
      %s14 = ssub.s32 %s8, 2
      %s21 = sadd.s32 1, %s16
      %p22 = scmp.ge.s32.totalorder %s21, 4
      %s23 = scalar_select %p22, 0, %s21
      %s24 = sadd.s32 1, %s15
      %s25 = scalar_select %p22, %s24, %s15
      %p26 = scmp.ge.s32.totalorder %s25, 2
      %s27 = scalar_select %p26, 0, %s25
      %s28 = ssub.s32 %s15, %s27
      %p29 = scmp.eq.s32.totalorder %s28, 0
      %s31 = sadd.s32 %s30, 1
      %s32 = scalar_select %p29, %s30, %s31
      %p35 = pneg %p29
      %p36 = scmp.eq.s32.totalorder %s8, 7
      %p37 = por %p35, %p36
      %p38 = scmp.ne.s32.totalorder %s30, %s33
      %p39 = scmp.eq.s32.totalorder %s8, 0
      %p40 = por %p38, %p39
      %p41 = scmp.ne.s32.totalorder %s30, %s33
      %p42 = scmp.eq.s32.totalorder %s13, 7
      %p43 = por %p41, %p42
      %p44 = scmp.ne.s32.totalorder %s33, %s34
      %p45 = scmp.eq.s32.totalorder %s13, 0
      %p46 = por %p44, %p45
      %p47 = scmp.ne.s32.totalorder %s33, %s34
      %p48 = scmp.eq.s32.totalorder %s14, 7
      %p49 = por %p47, %p48
      %p51 = scmp.ne.s32.totalorder %s34, %s50
      %p52 = scmp.eq.s32.totalorder %s14, 0
      %p53 = por %p51, %p52
      %s55 = sadd.s32 %s54, 1
      %p58 = scmp.eq.s32.totalorder %s8, 7
      %p59 = scmp.ne.s32.totalorder %s54, %s56
      %p60 = scmp.eq.s32.totalorder %s8, 0
      %p61 = por %p59, %p60
      %p62 = scmp.ne.s32.totalorder %s54, %s56
      %p63 = scmp.eq.s32.totalorder %s13, 7
      %p64 = por %p62, %p63
      %p65 = scmp.ne.s32.totalorder %s56, %s57
      %p66 = scmp.eq.s32.totalorder %s13, 0
      %p67 = por %p65, %p66
      %p68 = scmp.ne.s32.totalorder %s56, %s57
      %p69 = scmp.eq.s32.totalorder %s14, 7
      %p70 = por %p68, %p69
      %p72 = scmp.ne.s32.totalorder %s57, %s71
      %p73 = scmp.eq.s32.totalorder %s14, 0
      %p74 = por %p72, %p73
      %s75 = ssub.s32 %s15, %s27
      %p76 = scmp.eq.s32.totalorder %s75, 0
      %s78 = sadd.s32 %s77, 1
      %s79 = scalar_select %p76, %s77, %s78
      %p82 = pneg %p76
      %p83 = scmp.eq.s32.totalorder %s8, 7
      %p84 = por %p82, %p83
      %p85 = scmp.ne.s32.totalorder %s77, %s80
      %p86 = scmp.eq.s32.totalorder %s8, 0
      %p87 = por %p85, %p86
      %p88 = scmp.ne.s32.totalorder %s77, %s80
      %p89 = scmp.eq.s32.totalorder %s13, 7
      %p90 = por %p88, %p89
      %p91 = scmp.ne.s32.totalorder %s80, %s81
      %p92 = scmp.eq.s32.totalorder %s13, 0
      %p93 = por %p91, %p92
      %p94 = scmp.ne.s32.totalorder %s80, %s81
      %p95 = scmp.eq.s32.totalorder %s14, 7
      %p96 = por %p94, %p95
      %p98 = scmp.ne.s32.totalorder %s81, %s97
      %p99 = scmp.eq.s32.totalorder %s14, 0
      %p100 = por %p98, %p99
      %p101 = scmp.le.s32.totalorder 1, %s8
      %p102 = scmp.lt.s32.totalorder %s8, 9
      %p103 = pnand %p101, %p102
      %p104 = pneg %p103
      // Predicated region
      $region9: #{_combined_loss_impl.6} parent=5 // pred_check
        _
      $region10: #{_combined_loss_impl.6} parent=5 // pred_check_branch
        %106 = sbr.rel (%p103) target = $region12
      $region11: #{_combined_loss_impl.6} parent=5 // pred_region
        %s107 = ssub.s32 %s8, 1
        // Predicated region
        $region13: #{_combined_loss_impl.6} parent=11 // pred_check
          %p108 = pneg %p67
        $region14: #{_combined_loss_impl.6} parent=11 // pred_check_branch
          %110 = sbr.rel (%p108) target = $region16
        $region15: #{_combined_loss_impl.6} parent=11 // pred_region
          _
        $region16: #{_combined_loss_impl.6} parent=11 // pred_fallthru
          _
      $region12: #{_combined_loss_impl.6} parent=5 // pred_fallthru
        _
      %p111 = scmp.lt.s32.totalorder %s8, 8
      // Predicated region
      $region17: #{_combined_loss_impl.6} parent=5 // pred_check
        %p112 = pneg %p111
      $region18: #{_combined_loss_impl.6} parent=5 // pred_check_branch
        %114 = sbr.rel (%p112) target = $region20
      $region19: #{_combined_loss_impl.6} parent=5 // pred_region
        // Predicated region
        $region21: #{_combined_loss_impl.6} parent=19 // pred_check
          %p115 = pneg %p40
        $region22: #{_combined_loss_impl.6} parent=19 // pred_check_branch
          %117 = sbr.rel (%p115) target = $region24
        $region23: #{_combined_loss_impl.6} parent=19 // pred_region
          %s118 = sand.u32 %s30, 1
          %s119 = sand.u32 %s30, 1
          %s120 = smul.addr %s119, 192
          %s121 = scalar_lea.vmem [#allocation5], %s120
          %s122 = smul.u32 3, %s15
          %s123 = smul.addr %s122, 8
          %s124 = smul.addr %s123, 4
          %s125 = scalar_lea.vmem %s0, %s124
          // Predicated region
          $region25: #{_combined_loss_impl.6} parent=23 // pred_check
            _
          $region26: #{_combined_loss_impl.6} parent=23 // pred_check_branch
            %127 = sbr.rel (0) target = $region28
          $region27: #{_combined_loss_impl.6} parent=23 // pred_region
            // Predicated region
            $region29: #{_combined_loss_impl.6} parent=27 // pred_check
              _
            $region30: #{_combined_loss_impl.6} parent=27 // pred_check_branch
              %129 = sbr.rel (0) target = $region32
            $region31: #{_combined_loss_impl.6} parent=27 // pred_region
              loop: start=0, step=1, limit=1
              $region33: #{_combined_loss_impl.6} parent=31 // loop_pre_header
                _
              $region34: #{_combined_loss_impl.6} parent=31 // loop_header
                %s131 = sphi 0, %s135
                %p132 = scmp.ge.s32.totalorder %s131, 1
                %s136 = sphi %s125, %s125
                %s137 = sphi %s121, %s121
              $region35: #{_combined_loss_impl.6} parent=31 // loop_header_branch
                %134 = sbr.rel (%p132) target = $region39
              $region36: #{_combined_loss_impl.6} parent=31 // loop_body
                %v138 = vld [vmem:[%s136] sm:$0xff]
                %139 = vst [vmem:[%s137] sm:$0xff] %v138
                %v140 = vld [vmem:[%s136 + $0x8] sm:$0xff]
                %141 = vst [vmem:[%s137 + $0x8] sm:$0xff] %v140
                %v142 = vld [vmem:[%s136 + $0x10] sm:$0xff]
                %143 = vst [vmem:[%s137 + $0x10] sm:$0xff] %v142
                %v144 = vld [vmem:[%s136 + $0x18] sm:$0xff]
                %145 = vst [vmem:[%s137 + $0x18] sm:$0xff] %v144
                %v146 = vld [vmem:[%s136 + $0x20] sm:$0xff]
                %147 = vst [vmem:[%s137 + $0x20] sm:$0xff] %v146
                %v148 = vld [vmem:[%s136 + $0x28] sm:$0xff]
                %149 = vst [vmem:[%s137 + $0x28] sm:$0xff] %v148
                %v150 = vld [vmem:[%s136 + $0x30] sm:$0xff]
                %151 = vst [vmem:[%s137 + $0x30] sm:$0xff] %v150
                %v152 = vld [vmem:[%s136 + $0x38] sm:$0xff]
                %153 = vst [vmem:[%s137 + $0x38] sm:$0xff] %v152
                %v154 = vld [vmem:[%s136 + $0x40] sm:$0xff]
                %155 = vst [vmem:[%s137 + $0x40] sm:$0xff] %v154
                %v156 = vld [vmem:[%s136 + $0x48] sm:$0xff]
                %157 = vst [vmem:[%s137 + $0x48] sm:$0xff] %v156
                %v158 = vld [vmem:[%s136 + $0x50] sm:$0xff]
                %159 = vst [vmem:[%s137 + $0x50] sm:$0xff] %v158
                %v160 = vld [vmem:[%s136 + $0x58] sm:$0xff]
                %161 = vst [vmem:[%s137 + $0x58] sm:$0xff] %v160
                %v162 = vld [vmem:[%s136 + $0xc0] sm:$0xff]
                %163 = vst [vmem:[%s137 + $0x60] sm:$0xff] %v162
                %v164 = vld [vmem:[%s136 + $0xc8] sm:$0xff]
                %165 = vst [vmem:[%s137 + $0x68] sm:$0xff] %v164
                %v166 = vld [vmem:[%s136 + $0xd0] sm:$0xff]
                %167 = vst [vmem:[%s137 + $0x70] sm:$0xff] %v166
                %v168 = vld [vmem:[%s136 + $0xd8] sm:$0xff]
                %169 = vst [vmem:[%s137 + $0x78] sm:$0xff] %v168
                %v170 = vld [vmem:[%s136 + $0xe0] sm:$0xff]
                %171 = vst [vmem:[%s137 + $0x80] sm:$0xff] %v170
                %v172 = vld [vmem:[%s136 + $0xe8] sm:$0xff]
                %173 = vst [vmem:[%s137 + $0x88] sm:$0xff] %v172
                %v174 = vld [vmem:[%s136 + $0xf0] sm:$0xff]
                %175 = vst [vmem:[%s137 + $0x90] sm:$0xff] %v174
                %v176 = vld [vmem:[%s136 + $0xf8] sm:$0xff]
                %177 = vst [vmem:[%s137 + $0x98] sm:$0xff] %v176
                %v178 = vld [vmem:[%s136 + $0x100] sm:$0xff]
                %179 = vst [vmem:[%s137 + $0xa0] sm:$0xff] %v178
                %v180 = vld [vmem:[%s136 + $0x108] sm:$0xff]
                %181 = vst [vmem:[%s137 + $0xa8] sm:$0xff] %v180
                %v182 = vld [vmem:[%s136 + $0x110] sm:$0xff]
                %183 = vst [vmem:[%s137 + $0xb0] sm:$0xff] %v182
                %v184 = vld [vmem:[%s136 + $0x118] sm:$0xff]
                %185 = vst [vmem:[%s137 + $0xb8] sm:$0xff] %v184
              $region37: #{_combined_loss_impl.6} parent=31 // loop_footer
                %s135 = sadd.s32 1, %s131
              $region38: #{_combined_loss_impl.6} parent=31 // loop_footer_branch
                %130 = sbr.rel target = $region34
              $region39: #{_combined_loss_impl.6} parent=31 // loop_exit
                _
            $region32: #{_combined_loss_impl.6} parent=27 // pred_fallthru
              _
            // Predicated region
            $region40: #{_combined_loss_impl.6} parent=27 // pred_check
              _
            $region41: #{_combined_loss_impl.6} parent=27 // pred_check_branch
              %187 = sbr.rel target = $region43
            $region42: #{_combined_loss_impl.6} parent=27 // pred_region
              _
            $region43: #{_combined_loss_impl.6} parent=27 // pred_fallthru
              _
          $region28: #{_combined_loss_impl.6} parent=23 // pred_fallthru
            _
          %188 = vnop
        $region24: #{_combined_loss_impl.6} parent=19 // pred_fallthru
          _
      $region20: #{_combined_loss_impl.6} parent=5 // pred_fallthru
        _
      %p189 = scmp.le.s32.totalorder 1, %s8
      %p190 = scmp.lt.s32.totalorder %s8, 9
      %p191 = pnand %p189, %p190
      %p192 = pneg %p191
      // Predicated region
      $region44: #{_combined_loss_impl.6} parent=5 // pred_check
        _
      $region45: #{_combined_loss_impl.6} parent=5 // pred_check_branch
        %194 = sbr.rel (%p191) target = $region47
      $region46: #{_combined_loss_impl.6} parent=5 // pred_region
        %s195 = ssub.s32 %s8, 1
        %s196 = sand.u32 %s33, 1
        %s197 = sand.u32 %s33, 1
        %s198 = smul.addr %s197, 192
        %s199 = scalar_lea.vmem [#allocation5], %s198
        // Predicated region
        $region48: #{_combined_loss_impl.6} parent=46 // pred_check
          %p200 = pneg %p46
        $region49: #{_combined_loss_impl.6} parent=46 // pred_check_branch
          %202 = sbr.rel (%p200) target = $region51
        $region50: #{_combined_loss_impl.6} parent=46 // pred_region
          _
        $region51: #{_combined_loss_impl.6} parent=46 // pred_fallthru
          _
        %s203 = sand.u32 %s33, 1
        %s204 = sand.u32 %s33, 1
        %s205 = smul.addr %s204, 192
        %s206 = scalar_lea.vmem [#allocation5], %s205
        %p207 = pneg %p46
        %p208 = pneg %p43
        %p209 = pneg %p67
        %p210 = pneg %p64
        %p211 = pneg %p93
        %p212 = pneg %p90
        %p213 = scmp.lt.s32.totalorder %s17, 1
        %s214 = scalar_select %p213, %s17, 1
        %s215 = smul.addr %s214, 8
        %s216 = scalar_lea.vmem %s2, %s215
        %s217 = smul.u32 3, %s17
        %p218 = scmp.lt.s32.totalorder %s17, 1
        %s219 = scalar_select %p218, %s17, 1
        %s220 = smul.addr %s219, 8
        %s221 = scalar_lea.vmem %s2, %s220
        %p222 = scmp.eq.s32.totalorder %s18, 0
        // Predicated region
        $region52: #{_combined_loss_impl.6} parent=46 // pred_check
          %p223 = pneg %p222
        $region53: #{_combined_loss_impl.6} parent=46 // pred_check_branch
          %225 = sbr.rel (%p223) target = $region55
        $region54: #{_combined_loss_impl.6} parent=46 // pred_region
          %226 = vst [vmem:[#allocation2] sm:$0xff] 0.0
          %227 = vst [vmem:[#allocation2 + $0x8] sm:$0xff] 0.0
          %228 = vst [vmem:[#allocation2 + $0x10] sm:$0xff] 0.0
          %229 = vst [vmem:[#allocation3] sm:$0xff] 0.0
          %230 = vst [vmem:[#allocation3 + $0x8] sm:$0xff] 0.0
          %231 = vst [vmem:[#allocation3 + $0x10] sm:$0xff] 0.0
          %232 = vst [vmem:[#allocation4] sm:$0xff] 0.0
          %233 = vst [vmem:[#allocation4 + $0x8] sm:$0xff] 0.0
          %234 = vst [vmem:[#allocation4 + $0x10] sm:$0xff] 0.0
        $region55: #{_combined_loss_impl.6} parent=46 // pred_fallthru
          _
        %s235 = smul.u32 %s18, 256
        %s236 = smul.addr %s235, 4
        %s237 = scalar_lea.vmem %s1, %s236
        %v238 = vld [vmem:[%s237] sm:$0xff]
        %v239 = vld [vmem:[%s237 + $0x8] sm:$0xff]
        %v240 = vld [vmem:[%s237 + $0x10] sm:$0xff]
        %v241 = vld [vmem:[%s237 + $0x18] sm:$0xff]
        %v242 = vld [vmem:[%s237 + $0x20] sm:$0xff]
        %v243 = vld [vmem:[%s237 + $0x28] sm:$0xff]
        %v244 = vld [vmem:[%s237 + $0x30] sm:$0xff]
        %v245 = vld [vmem:[%s237 + $0x38] sm:$0xff]
        %v246 = vld [vmem:[%s237 + $0x40] sm:$0xff]
        %v247 = vld [vmem:[%s237 + $0x48] sm:$0xff]
        %v248 = vld [vmem:[%s237 + $0x50] sm:$0xff]
        %v249 = vld [vmem:[%s237 + $0x58] sm:$0xff]
        %v250 = vld [vmem:[%s237 + $0x60] sm:$0xff]
        %v251 = vld [vmem:[%s237 + $0x68] sm:$0xff]
        %v252 = vld [vmem:[%s237 + $0x70] sm:$0xff]
        %v253 = vld [vmem:[%s237 + $0x78] sm:$0xff]
        %v254 = vld [vmem:[%s237 + $0x80] sm:$0xff]
        %v255 = vld [vmem:[%s237 + $0x88] sm:$0xff]
        %v256 = vld [vmem:[%s237 + $0x90] sm:$0xff]
        %v257 = vld [vmem:[%s237 + $0x98] sm:$0xff]
        %v258 = vld [vmem:[%s237 + $0xa0] sm:$0xff]
        %v259 = vld [vmem:[%s237 + $0xa8] sm:$0xff]
        %v260 = vld [vmem:[%s237 + $0xb0] sm:$0xff]
        %v261 = vld [vmem:[%s237 + $0xb8] sm:$0xff]
        %v262 = vld [vmem:[%s237 + $0xc0] sm:$0xff]
        %v263 = vld [vmem:[%s237 + $0xc8] sm:$0xff]
        %v264 = vld [vmem:[%s237 + $0xd0] sm:$0xff]
        %v265 = vld [vmem:[%s237 + $0xd8] sm:$0xff]
        %v266 = vld [vmem:[%s237 + $0xe0] sm:$0xff]
        %v267 = vld [vmem:[%s237 + $0xe8] sm:$0xff]
        %v268 = vld [vmem:[%s237 + $0xf0] sm:$0xff]
        %v269 = vld [vmem:[%s237 + $0xf8] sm:$0xff]
        %v270 = vld [vmem:[%s237 + $0x100] sm:$0xff]
        %v271 = vld [vmem:[%s237 + $0x108] sm:$0xff]
        %v272 = vld [vmem:[%s237 + $0x110] sm:$0xff]
        %v273 = vld [vmem:[%s237 + $0x118] sm:$0xff]
        %v274 = vld [vmem:[%s237 + $0x120] sm:$0xff]
        %v275 = vld [vmem:[%s237 + $0x128] sm:$0xff]
        %v276 = vld [vmem:[%s237 + $0x130] sm:$0xff]
        %v277 = vld [vmem:[%s237 + $0x138] sm:$0xff]
        %v278 = vld [vmem:[%s237 + $0x140] sm:$0xff]
        %v279 = vld [vmem:[%s237 + $0x148] sm:$0xff]
        %v280 = vld [vmem:[%s237 + $0x150] sm:$0xff]
        %v281 = vld [vmem:[%s237 + $0x158] sm:$0xff]
        %v282 = vld [vmem:[%s237 + $0x160] sm:$0xff]
        %v283 = vld [vmem:[%s237 + $0x168] sm:$0xff]
        %v284 = vld [vmem:[%s237 + $0x170] sm:$0xff]
        %v285 = vld [vmem:[%s237 + $0x178] sm:$0xff]
        %v286 = vld [vmem:[%s237 + $0x180] sm:$0xff]
        %v287 = vld [vmem:[%s237 + $0x188] sm:$0xff]
        %v288 = vld [vmem:[%s237 + $0x190] sm:$0xff]
        %v289 = vld [vmem:[%s237 + $0x198] sm:$0xff]
        %v290 = vld [vmem:[%s237 + $0x1a0] sm:$0xff]
        %v291 = vld [vmem:[%s237 + $0x1a8] sm:$0xff]
        %v292 = vld [vmem:[%s237 + $0x1b0] sm:$0xff]
        %v293 = vld [vmem:[%s237 + $0x1b8] sm:$0xff]
        %v294 = vld [vmem:[%s237 + $0x1c0] sm:$0xff]
        %v295 = vld [vmem:[%s237 + $0x1c8] sm:$0xff]
        %v296 = vld [vmem:[%s237 + $0x1d0] sm:$0xff]
        %v297 = vld [vmem:[%s237 + $0x1d8] sm:$0xff]
        %v298 = vld [vmem:[%s237 + $0x1e0] sm:$0xff]
        %v299 = vld [vmem:[%s237 + $0x1e8] sm:$0xff]
        %v300 = vld [vmem:[%s237 + $0x1f0] sm:$0xff]
        %v301 = vld [vmem:[%s237 + $0x1f8] sm:$0xff]
        %v302 = vld [vmem:[%s237 + $0x200] sm:$0xff]
        %v303 = vld [vmem:[%s237 + $0x208] sm:$0xff]
        %v304 = vld [vmem:[%s237 + $0x210] sm:$0xff]
        %v305 = vld [vmem:[%s237 + $0x218] sm:$0xff]
        %v306 = vld [vmem:[%s237 + $0x220] sm:$0xff]
        %v307 = vld [vmem:[%s237 + $0x228] sm:$0xff]
        %v308 = vld [vmem:[%s237 + $0x230] sm:$0xff]
        %v309 = vld [vmem:[%s237 + $0x238] sm:$0xff]
        %v310 = vld [vmem:[%s237 + $0x240] sm:$0xff]
        %v311 = vld [vmem:[%s237 + $0x248] sm:$0xff]
        %v312 = vld [vmem:[%s237 + $0x250] sm:$0xff]
        %v313 = vld [vmem:[%s237 + $0x258] sm:$0xff]
        %v314 = vld [vmem:[%s237 + $0x260] sm:$0xff]
        %v315 = vld [vmem:[%s237 + $0x268] sm:$0xff]
        %v316 = vld [vmem:[%s237 + $0x270] sm:$0xff]
        %v317 = vld [vmem:[%s237 + $0x278] sm:$0xff]
        %v318 = vld [vmem:[%s237 + $0x280] sm:$0xff]
        %v319 = vld [vmem:[%s237 + $0x288] sm:$0xff]
        %v320 = vld [vmem:[%s237 + $0x290] sm:$0xff]
        %v321 = vld [vmem:[%s237 + $0x298] sm:$0xff]
        %v322 = vld [vmem:[%s237 + $0x2a0] sm:$0xff]
        %v323 = vld [vmem:[%s237 + $0x2a8] sm:$0xff]
        %v324 = vld [vmem:[%s237 + $0x2b0] sm:$0xff]
        %v325 = vld [vmem:[%s237 + $0x2b8] sm:$0xff]
        %v326 = vld [vmem:[%s237 + $0x2c0] sm:$0xff]
        %v327 = vld [vmem:[%s237 + $0x2c8] sm:$0xff]
        %v328 = vld [vmem:[%s237 + $0x2d0] sm:$0xff]
        %v329 = vld [vmem:[%s237 + $0x2d8] sm:$0xff]
        %v330 = vld [vmem:[%s237 + $0x2e0] sm:$0xff]
        %v331 = vld [vmem:[%s237 + $0x2e8] sm:$0xff]
        %v332 = vld [vmem:[%s237 + $0x2f0] sm:$0xff]
        %v333 = vld [vmem:[%s237 + $0x2f8] sm:$0xff]
        %v334 = vld [vmem:[%s237 + $0x300] sm:$0xff]
        %v335 = vld [vmem:[%s237 + $0x308] sm:$0xff]
        %v336 = vld [vmem:[%s237 + $0x310] sm:$0xff]
        %v337 = vld [vmem:[%s237 + $0x318] sm:$0xff]
        %v338 = vld [vmem:[%s237 + $0x320] sm:$0xff]
        %v339 = vld [vmem:[%s237 + $0x328] sm:$0xff]
        %v340 = vld [vmem:[%s237 + $0x330] sm:$0xff]
        %v341 = vld [vmem:[%s237 + $0x338] sm:$0xff]
        %v342 = vld [vmem:[%s237 + $0x340] sm:$0xff]
        %v343 = vld [vmem:[%s237 + $0x348] sm:$0xff]
        %v344 = vld [vmem:[%s237 + $0x350] sm:$0xff]
        %v345 = vld [vmem:[%s237 + $0x358] sm:$0xff]
        %v346 = vld [vmem:[%s237 + $0x360] sm:$0xff]
        %v347 = vld [vmem:[%s237 + $0x368] sm:$0xff]
        %v348 = vld [vmem:[%s237 + $0x370] sm:$0xff]
        %v349 = vld [vmem:[%s237 + $0x378] sm:$0xff]
        %v350 = vld [vmem:[%s237 + $0x380] sm:$0xff]
        %v351 = vld [vmem:[%s237 + $0x388] sm:$0xff]
        %v352 = vld [vmem:[%s237 + $0x390] sm:$0xff]
        %v353 = vld [vmem:[%s237 + $0x398] sm:$0xff]
        %v354 = vld [vmem:[%s237 + $0x3a0] sm:$0xff]
        %v355 = vld [vmem:[%s237 + $0x3a8] sm:$0xff]
        %v356 = vld [vmem:[%s237 + $0x3b0] sm:$0xff]
        %v357 = vld [vmem:[%s237 + $0x3b8] sm:$0xff]
        %v358 = vld [vmem:[%s237 + $0x3c0] sm:$0xff]
        %v359 = vld [vmem:[%s237 + $0x3c8] sm:$0xff]
        %v360 = vld [vmem:[%s237 + $0x3d0] sm:$0xff]
        %v361 = vld [vmem:[%s237 + $0x3d8] sm:$0xff]
        %v362 = vld [vmem:[%s237 + $0x3e0] sm:$0xff]
        %v363 = vld [vmem:[%s237 + $0x3e8] sm:$0xff]
        %v364 = vld [vmem:[%s237 + $0x3f0] sm:$0xff]
        %v365 = vld [vmem:[%s237 + $0x3f8] sm:$0xff]
        %v366 = vld [vmem:[%s199] sm:$0xff]
        %v367 = vld [vmem:[%s199 + $0x8] sm:$0xff]
        %v368 = vld [vmem:[%s199 + $0x10] sm:$0xff]
        %v369 = vld [vmem:[%s199 + $0x18] sm:$0xff]
        %v370 = vld [vmem:[%s199 + $0x20] sm:$0xff]
        %v371 = vld [vmem:[%s199 + $0x28] sm:$0xff]
        %v372 = vld [vmem:[%s199 + $0x30] sm:$0xff]
        %v373 = vld [vmem:[%s199 + $0x38] sm:$0xff]
        %v374 = vld [vmem:[%s199 + $0x40] sm:$0xff]
        %v375 = vld [vmem:[%s199 + $0x48] sm:$0xff]
        %v376 = vld [vmem:[%s199 + $0x50] sm:$0xff]
        %v377 = vld [vmem:[%s199 + $0x58] sm:$0xff]
        %v390 = vunpack.c.l.b16 %v366
        %v391 = vunpack.c.h.b16 %v366
        %v392 = vunpack.c.l.b16 %v367
        %v393 = vunpack.c.h.b16 %v367
        %v394 = vunpack.c.l.b16 %v368
        %v395 = vunpack.c.h.b16 %v368
        %v396 = vunpack.c.l.b16 %v369
        %v397 = vunpack.c.h.b16 %v369
        %v398 = vunpack.c.l.b16 %v370
        %v399 = vunpack.c.h.b16 %v370
        %v400 = vunpack.c.l.b16 %v371
        %v401 = vunpack.c.h.b16 %v371
        %v402 = vunpack.c.l.b16 %v372
        %v403 = vunpack.c.h.b16 %v372
        %v404 = vunpack.c.l.b16 %v373
        %v405 = vunpack.c.h.b16 %v373
        %v406 = vunpack.c.l.b16 %v374
        %v407 = vunpack.c.h.b16 %v374
        %v408 = vunpack.c.l.b16 %v375
        %v409 = vunpack.c.h.b16 %v375
        %v410 = vunpack.c.l.b16 %v376
        %v411 = vunpack.c.h.b16 %v376
        %v412 = vunpack.c.l.b16 %v377
        %v413 = vunpack.c.h.b16 %v377
        %v414 = vpack.c.b16 %v398, %v390
        %v415 = vpack.c.b16 %v399, %v391
        %v416 = vpack.c.b16 %v400, %v392
        %v417 = vpack.c.b16 %v401, %v393
        %v418 = vpack.c.b16 %v402, %v394
        %v419 = vpack.c.b16 %v403, %v395
        %v420 = vpack.c.b16 %v404, %v396
        %v421 = vpack.c.b16 %v405, %v397
        %v422 = vpack.c.b16 %v406, %v406
        %v423 = vpack.c.b16 %v407, %v407
        %v424 = vpack.c.b16 %v408, %v408
        %v425 = vpack.c.b16 %v409, %v409
        %v426 = vpack.c.b16 %v410, %v410
        %v427 = vpack.c.b16 %v411, %v411
        %v428 = vpack.c.b16 %v412, %v412
        %v429 = vpack.c.b16 %v413, %v413
        %v574 = vunpack.c.l.b16 %v238
        %v575 = vunpack.c.h.b16 %v238
        %v576 = vunpack.c.l.b16 %v239
        %v577 = vunpack.c.h.b16 %v239
        %v578 = vunpack.c.l.b16 %v240
        %v579 = vunpack.c.h.b16 %v240
        %v580 = vunpack.c.l.b16 %v241
        %v581 = vunpack.c.h.b16 %v241
        %v582 = vunpack.c.l.b16 %v242
        %v583 = vunpack.c.h.b16 %v242
        %v584 = vunpack.c.l.b16 %v243
        %v585 = vunpack.c.h.b16 %v243
        %v586 = vunpack.c.l.b16 %v244
        %v587 = vunpack.c.h.b16 %v244
        %v588 = vunpack.c.l.b16 %v245
        %v589 = vunpack.c.h.b16 %v245
        %v590 = vunpack.c.l.b16 %v246
        %v591 = vunpack.c.h.b16 %v246
        %v592 = vunpack.c.l.b16 %v247
        %v593 = vunpack.c.h.b16 %v247
        %v594 = vunpack.c.l.b16 %v248
        %v595 = vunpack.c.h.b16 %v248
        %v596 = vunpack.c.l.b16 %v249
        %v597 = vunpack.c.h.b16 %v249
        %v598 = vunpack.c.l.b16 %v250
        %v599 = vunpack.c.h.b16 %v250
        %v600 = vunpack.c.l.b16 %v251
        %v601 = vunpack.c.h.b16 %v251
        %v602 = vunpack.c.l.b16 %v252
        %v603 = vunpack.c.h.b16 %v252
        %v604 = vunpack.c.l.b16 %v253
        %v605 = vunpack.c.h.b16 %v253
        %v606 = vunpack.c.l.b16 %v254
        %v607 = vunpack.c.h.b16 %v254
        %v608 = vunpack.c.l.b16 %v255
        %v609 = vunpack.c.h.b16 %v255
        %v610 = vunpack.c.l.b16 %v256
        %v611 = vunpack.c.h.b16 %v256
        %v612 = vunpack.c.l.b16 %v257
        %v613 = vunpack.c.h.b16 %v257
        %v614 = vunpack.c.l.b16 %v258
        %v615 = vunpack.c.h.b16 %v258
        %v616 = vunpack.c.l.b16 %v259
        %v617 = vunpack.c.h.b16 %v259
        %v618 = vunpack.c.l.b16 %v260
        %v619 = vunpack.c.h.b16 %v260
        %v620 = vunpack.c.l.b16 %v261
        %v621 = vunpack.c.h.b16 %v261
        %v622 = vunpack.c.l.b16 %v262
        %v623 = vunpack.c.h.b16 %v262
        %v624 = vunpack.c.l.b16 %v263
        %v625 = vunpack.c.h.b16 %v263
        %v626 = vunpack.c.l.b16 %v264
        %v627 = vunpack.c.h.b16 %v264
        %v628 = vunpack.c.l.b16 %v265
        %v629 = vunpack.c.h.b16 %v265
        %v630 = vunpack.c.l.b16 %v266
        %v631 = vunpack.c.h.b16 %v266
        %v632 = vunpack.c.l.b16 %v267
        %v633 = vunpack.c.h.b16 %v267
        %v634 = vunpack.c.l.b16 %v268
        %v635 = vunpack.c.h.b16 %v268
        %v636 = vunpack.c.l.b16 %v269
        %v637 = vunpack.c.h.b16 %v269
        %v638 = vunpack.c.l.b16 %v270
        %v639 = vunpack.c.h.b16 %v270
        %v640 = vunpack.c.l.b16 %v271
        %v641 = vunpack.c.h.b16 %v271
        %v642 = vunpack.c.l.b16 %v272
        %v643 = vunpack.c.h.b16 %v272
        %v644 = vunpack.c.l.b16 %v273
        %v645 = vunpack.c.h.b16 %v273
        %v646 = vunpack.c.l.b16 %v274
        %v647 = vunpack.c.h.b16 %v274
        %v648 = vunpack.c.l.b16 %v275
        %v649 = vunpack.c.h.b16 %v275
        %v650 = vunpack.c.l.b16 %v276
        %v651 = vunpack.c.h.b16 %v276
        %v652 = vunpack.c.l.b16 %v277
        %v653 = vunpack.c.h.b16 %v277
        %v654 = vunpack.c.l.b16 %v278
        %v655 = vunpack.c.h.b16 %v278
        %v656 = vunpack.c.l.b16 %v279
        %v657 = vunpack.c.h.b16 %v279
        %v658 = vunpack.c.l.b16 %v280
        %v659 = vunpack.c.h.b16 %v280
        %v660 = vunpack.c.l.b16 %v281
        %v661 = vunpack.c.h.b16 %v281
        %v662 = vunpack.c.l.b16 %v282
        %v663 = vunpack.c.h.b16 %v282
        %v664 = vunpack.c.l.b16 %v283
        %v665 = vunpack.c.h.b16 %v283
        %v666 = vunpack.c.l.b16 %v284
        %v667 = vunpack.c.h.b16 %v284
        %v668 = vunpack.c.l.b16 %v285
        %v669 = vunpack.c.h.b16 %v285
        %v670 = vunpack.c.l.b16 %v286
        %v671 = vunpack.c.h.b16 %v286
        %v672 = vunpack.c.l.b16 %v287
        %v673 = vunpack.c.h.b16 %v287
        %v674 = vunpack.c.l.b16 %v288
        %v675 = vunpack.c.h.b16 %v288
        %v676 = vunpack.c.l.b16 %v289
        %v677 = vunpack.c.h.b16 %v289
        %v678 = vunpack.c.l.b16 %v290
        %v679 = vunpack.c.h.b16 %v290
        %v680 = vunpack.c.l.b16 %v291
        %v681 = vunpack.c.h.b16 %v291
        %v682 = vunpack.c.l.b16 %v292
        %v683 = vunpack.c.h.b16 %v292
        %v684 = vunpack.c.l.b16 %v293
        %v685 = vunpack.c.h.b16 %v293
        %v686 = vunpack.c.l.b16 %v294
        %v687 = vunpack.c.h.b16 %v294
        %v688 = vunpack.c.l.b16 %v295
        %v689 = vunpack.c.h.b16 %v295
        %v690 = vunpack.c.l.b16 %v296
        %v691 = vunpack.c.h.b16 %v296
        %v692 = vunpack.c.l.b16 %v297
        %v693 = vunpack.c.h.b16 %v297
        %v694 = vunpack.c.l.b16 %v298
        %v695 = vunpack.c.h.b16 %v298
        %v696 = vunpack.c.l.b16 %v299
        %v697 = vunpack.c.h.b16 %v299
        %v698 = vunpack.c.l.b16 %v300
        %v699 = vunpack.c.h.b16 %v300
        %v700 = vunpack.c.l.b16 %v301
        %v701 = vunpack.c.h.b16 %v301
        %v702 = vunpack.c.l.b16 %v302
        %v703 = vunpack.c.h.b16 %v302
        %v704 = vunpack.c.l.b16 %v303
        %v705 = vunpack.c.h.b16 %v303
        %v706 = vunpack.c.l.b16 %v304
        %v707 = vunpack.c.h.b16 %v304
        %v708 = vunpack.c.l.b16 %v305
        %v709 = vunpack.c.h.b16 %v305
        %v710 = vunpack.c.l.b16 %v306
        %v711 = vunpack.c.h.b16 %v306
        %v712 = vunpack.c.l.b16 %v307
        %v713 = vunpack.c.h.b16 %v307
        %v714 = vunpack.c.l.b16 %v308
        %v715 = vunpack.c.h.b16 %v308
        %v716 = vunpack.c.l.b16 %v309
        %v717 = vunpack.c.h.b16 %v309
        %v718 = vunpack.c.l.b16 %v310
        %v719 = vunpack.c.h.b16 %v310
        %v720 = vunpack.c.l.b16 %v311
        %v721 = vunpack.c.h.b16 %v311
        %v722 = vunpack.c.l.b16 %v312
        %v723 = vunpack.c.h.b16 %v312
        %v724 = vunpack.c.l.b16 %v313
        %v725 = vunpack.c.h.b16 %v313
        %v726 = vunpack.c.l.b16 %v314
        %v727 = vunpack.c.h.b16 %v314
        %v728 = vunpack.c.l.b16 %v315
        %v729 = vunpack.c.h.b16 %v315
        %v730 = vunpack.c.l.b16 %v316
        %v731 = vunpack.c.h.b16 %v316
        %v732 = vunpack.c.l.b16 %v317
        %v733 = vunpack.c.h.b16 %v317
        %v734 = vunpack.c.l.b16 %v318
        %v735 = vunpack.c.h.b16 %v318
        %v736 = vunpack.c.l.b16 %v319
        %v737 = vunpack.c.h.b16 %v319
        %v738 = vunpack.c.l.b16 %v320
        %v739 = vunpack.c.h.b16 %v320
        %v740 = vunpack.c.l.b16 %v321
        %v741 = vunpack.c.h.b16 %v321
        %v742 = vunpack.c.l.b16 %v322
        %v743 = vunpack.c.h.b16 %v322
        %v744 = vunpack.c.l.b16 %v323
        %v745 = vunpack.c.h.b16 %v323
        %v746 = vunpack.c.l.b16 %v324
        %v747 = vunpack.c.h.b16 %v324
        %v748 = vunpack.c.l.b16 %v325
        %v749 = vunpack.c.h.b16 %v325
        %v750 = vunpack.c.l.b16 %v326
        %v751 = vunpack.c.h.b16 %v326
        %v752 = vunpack.c.l.b16 %v327
        %v753 = vunpack.c.h.b16 %v327
        %v754 = vunpack.c.l.b16 %v328
        %v755 = vunpack.c.h.b16 %v328
        %v756 = vunpack.c.l.b16 %v329
        %v757 = vunpack.c.h.b16 %v329
        %v758 = vunpack.c.l.b16 %v330
        %v759 = vunpack.c.h.b16 %v330
        %v760 = vunpack.c.l.b16 %v331
        %v761 = vunpack.c.h.b16 %v331
        %v762 = vunpack.c.l.b16 %v332
        %v763 = vunpack.c.h.b16 %v332
        %v764 = vunpack.c.l.b16 %v333
        %v765 = vunpack.c.h.b16 %v333
        %v766 = vunpack.c.l.b16 %v334
        %v767 = vunpack.c.h.b16 %v334
        %v768 = vunpack.c.l.b16 %v335
        %v769 = vunpack.c.h.b16 %v335
        %v770 = vunpack.c.l.b16 %v336
        %v771 = vunpack.c.h.b16 %v336
        %v772 = vunpack.c.l.b16 %v337
        %v773 = vunpack.c.h.b16 %v337
        %v774 = vunpack.c.l.b16 %v338
        %v775 = vunpack.c.h.b16 %v338
        %v776 = vunpack.c.l.b16 %v339
        %v777 = vunpack.c.h.b16 %v339
        %v778 = vunpack.c.l.b16 %v340
        %v779 = vunpack.c.h.b16 %v340
        %v780 = vunpack.c.l.b16 %v341
        %v781 = vunpack.c.h.b16 %v341
        %v782 = vunpack.c.l.b16 %v342
        %v783 = vunpack.c.h.b16 %v342
        %v784 = vunpack.c.l.b16 %v343
        %v785 = vunpack.c.h.b16 %v343
        %v786 = vunpack.c.l.b16 %v344
        %v787 = vunpack.c.h.b16 %v344
        %v788 = vunpack.c.l.b16 %v345
        %v789 = vunpack.c.h.b16 %v345
        %v790 = vunpack.c.l.b16 %v346
        %v791 = vunpack.c.h.b16 %v346
        %v792 = vunpack.c.l.b16 %v347
        %v793 = vunpack.c.h.b16 %v347
        %v794 = vunpack.c.l.b16 %v348
        %v795 = vunpack.c.h.b16 %v348
        %v796 = vunpack.c.l.b16 %v349
        %v797 = vunpack.c.h.b16 %v349
        %v798 = vunpack.c.l.b16 %v350
        %v799 = vunpack.c.h.b16 %v350
        %v800 = vunpack.c.l.b16 %v351
        %v801 = vunpack.c.h.b16 %v351
        %v802 = vunpack.c.l.b16 %v352
        %v803 = vunpack.c.h.b16 %v352
        %v804 = vunpack.c.l.b16 %v353
        %v805 = vunpack.c.h.b16 %v353
        %v806 = vunpack.c.l.b16 %v354
        %v807 = vunpack.c.h.b16 %v354
        %v808 = vunpack.c.l.b16 %v355
        %v809 = vunpack.c.h.b16 %v355
        %v810 = vunpack.c.l.b16 %v356
        %v811 = vunpack.c.h.b16 %v356
        %v812 = vunpack.c.l.b16 %v357
        %v813 = vunpack.c.h.b16 %v357
        %v814 = vunpack.c.l.b16 %v358
        %v815 = vunpack.c.h.b16 %v358
        %v816 = vunpack.c.l.b16 %v359
        %v817 = vunpack.c.h.b16 %v359
        %v818 = vunpack.c.l.b16 %v360
        %v819 = vunpack.c.h.b16 %v360
        %v820 = vunpack.c.l.b16 %v361
        %v821 = vunpack.c.h.b16 %v361
        %v822 = vunpack.c.l.b16 %v362
        %v823 = vunpack.c.h.b16 %v362
        %v824 = vunpack.c.l.b16 %v363
        %v825 = vunpack.c.h.b16 %v363
        %v826 = vunpack.c.l.b16 %v364
        %v827 = vunpack.c.h.b16 %v364
        %v828 = vunpack.c.l.b16 %v365
        %v829 = vunpack.c.h.b16 %v365
        %v830 = vpack.c.b16 %v576, %v574
        %v831 = vpack.c.b16 %v577, %v575
        %v832 = vpack.c.b16 %v580, %v578
        %v833 = vpack.c.b16 %v581, %v579
        %v834 = vpack.c.b16 %v584, %v582
        %v835 = vpack.c.b16 %v585, %v583
        %v836 = vpack.c.b16 %v588, %v586
        %v837 = vpack.c.b16 %v589, %v587
        %v838 = vpack.c.b16 %v592, %v590
        %v839 = vpack.c.b16 %v593, %v591
        %v840 = vpack.c.b16 %v596, %v594
        %v841 = vpack.c.b16 %v597, %v595
        %v842 = vpack.c.b16 %v600, %v598
        %v843 = vpack.c.b16 %v601, %v599
        %v844 = vpack.c.b16 %v604, %v602
        %v845 = vpack.c.b16 %v605, %v603
        %v846 = vpack.c.b16 %v608, %v606
        %v847 = vpack.c.b16 %v609, %v607
        %v848 = vpack.c.b16 %v612, %v610
        %v849 = vpack.c.b16 %v613, %v611
        %v850 = vpack.c.b16 %v616, %v614
        %v851 = vpack.c.b16 %v617, %v615
        %v852 = vpack.c.b16 %v620, %v618
        %v853 = vpack.c.b16 %v621, %v619
        %v854 = vpack.c.b16 %v624, %v622
        %v855 = vpack.c.b16 %v625, %v623
        %v856 = vpack.c.b16 %v628, %v626
        %v857 = vpack.c.b16 %v629, %v627
        %v858 = vpack.c.b16 %v632, %v630
        %v859 = vpack.c.b16 %v633, %v631
        %v860 = vpack.c.b16 %v636, %v634
        %v861 = vpack.c.b16 %v637, %v635
        %v862 = vpack.c.b16 %v640, %v638
        %v863 = vpack.c.b16 %v641, %v639
        %v864 = vpack.c.b16 %v644, %v642
        %v865 = vpack.c.b16 %v645, %v643
        %v866 = vpack.c.b16 %v648, %v646
        %v867 = vpack.c.b16 %v649, %v647
        %v868 = vpack.c.b16 %v652, %v650
        %v869 = vpack.c.b16 %v653, %v651
        %v870 = vpack.c.b16 %v656, %v654
        %v871 = vpack.c.b16 %v657, %v655
        %v872 = vpack.c.b16 %v660, %v658
        %v873 = vpack.c.b16 %v661, %v659
        %v874 = vpack.c.b16 %v664, %v662
        %v875 = vpack.c.b16 %v665, %v663
        %v876 = vpack.c.b16 %v668, %v666
        %v877 = vpack.c.b16 %v669, %v667
        %v878 = vpack.c.b16 %v672, %v670
        %v879 = vpack.c.b16 %v673, %v671
        %v880 = vpack.c.b16 %v676, %v674
        %v881 = vpack.c.b16 %v677, %v675
        %v882 = vpack.c.b16 %v680, %v678
        %v883 = vpack.c.b16 %v681, %v679
        %v884 = vpack.c.b16 %v684, %v682
        %v885 = vpack.c.b16 %v685, %v683
        %v886 = vpack.c.b16 %v688, %v686
        %v887 = vpack.c.b16 %v689, %v687
        %v888 = vpack.c.b16 %v692, %v690
        %v889 = vpack.c.b16 %v693, %v691
        %v890 = vpack.c.b16 %v696, %v694
        %v891 = vpack.c.b16 %v697, %v695
        %v892 = vpack.c.b16 %v700, %v698
        %v893 = vpack.c.b16 %v701, %v699
        %v894 = vpack.c.b16 %v704, %v702
        %v895 = vpack.c.b16 %v705, %v703
        %v896 = vpack.c.b16 %v708, %v706
        %v897 = vpack.c.b16 %v709, %v707
        %v898 = vpack.c.b16 %v712, %v710
        %v899 = vpack.c.b16 %v713, %v711
        %v900 = vpack.c.b16 %v716, %v714
        %v901 = vpack.c.b16 %v717, %v715
        %v902 = vpack.c.b16 %v720, %v718
        %v903 = vpack.c.b16 %v721, %v719
        %v904 = vpack.c.b16 %v724, %v722
        %v905 = vpack.c.b16 %v725, %v723
        %v906 = vpack.c.b16 %v728, %v726
        %v907 = vpack.c.b16 %v729, %v727
        %v908 = vpack.c.b16 %v732, %v730
        %v909 = vpack.c.b16 %v733, %v731
        %v910 = vpack.c.b16 %v736, %v734
        %v911 = vpack.c.b16 %v737, %v735
        %v912 = vpack.c.b16 %v740, %v738
        %v913 = vpack.c.b16 %v741, %v739
        %v914 = vpack.c.b16 %v744, %v742
        %v915 = vpack.c.b16 %v745, %v743
        %v916 = vpack.c.b16 %v748, %v746
        %v917 = vpack.c.b16 %v749, %v747
        %v918 = vpack.c.b16 %v752, %v750
        %v919 = vpack.c.b16 %v753, %v751
        %v920 = vpack.c.b16 %v756, %v754
        %v921 = vpack.c.b16 %v757, %v755
        %v922 = vpack.c.b16 %v760, %v758
        %v923 = vpack.c.b16 %v761, %v759
        %v924 = vpack.c.b16 %v764, %v762
        %v925 = vpack.c.b16 %v765, %v763
        %v926 = vpack.c.b16 %v768, %v766
        %v927 = vpack.c.b16 %v769, %v767
        %v928 = vpack.c.b16 %v772, %v770
        %v929 = vpack.c.b16 %v773, %v771
        %v930 = vpack.c.b16 %v776, %v774
        %v931 = vpack.c.b16 %v777, %v775
        %v932 = vpack.c.b16 %v780, %v778
        %v933 = vpack.c.b16 %v781, %v779
        %v934 = vpack.c.b16 %v784, %v782
        %v935 = vpack.c.b16 %v785, %v783
        %v936 = vpack.c.b16 %v788, %v786
        %v937 = vpack.c.b16 %v789, %v787
        %v938 = vpack.c.b16 %v792, %v790
        %v939 = vpack.c.b16 %v793, %v791
        %v940 = vpack.c.b16 %v796, %v794
        %v941 = vpack.c.b16 %v797, %v795
        %v942 = vpack.c.b16 %v800, %v798
        %v943 = vpack.c.b16 %v801, %v799
        %v944 = vpack.c.b16 %v804, %v802
        %v945 = vpack.c.b16 %v805, %v803
        %v946 = vpack.c.b16 %v808, %v806
        %v947 = vpack.c.b16 %v809, %v807
        %v948 = vpack.c.b16 %v812, %v810
        %v949 = vpack.c.b16 %v813, %v811
        %v950 = vpack.c.b16 %v816, %v814
        %v951 = vpack.c.b16 %v817, %v815
        %v952 = vpack.c.b16 %v820, %v818
        %v953 = vpack.c.b16 %v821, %v819
        %v954 = vpack.c.b16 %v824, %v822
        %v955 = vpack.c.b16 %v825, %v823
        %v956 = vpack.c.b16 %v828, %v826
        %v957 = vpack.c.b16 %v829, %v827
        %1086 = vmatprep.subr.bf16.mxu0 %v831
        %1087 = vmatpush1.bf16.msra.mxu0 %v830
        %1088 = vmatprep.subr.bf16.mxu0 %v833
        %1089 = vmatpush1.bf16.msra.mxu0 %v832
        %1090 = vmatprep.subr.bf16.mxu0 %v835
        %1091 = vmatpush1.bf16.msra.mxu0 %v834
        %1092 = vmatprep.subr.bf16.mxu0 %v837
        %1093 = vmatpush1.bf16.msra.mxu0 %v836
        %1094 = vmatprep.subr.bf16.mxu0 %v839
        %1095 = vmatpush1.bf16.msra.mxu0 %v838
        %1096 = vmatprep.subr.bf16.mxu0 %v841
        %1097 = vmatpush1.bf16.msra.mxu0 %v840
        %1098 = vmatprep.subr.bf16.mxu0 %v843
        %1099 = vmatpush1.bf16.msra.mxu0 %v842
        %1100 = vmatprep.subr.bf16.mxu0 %v845
        %1101 = vmatpush1.bf16.msra.mxu0 %v844
        %1102 = vmatprep.subr.bf16.mxu0 %v847
        %1103 = vmatpush1.bf16.msra.mxu0 %v846
        %1104 = vmatprep.subr.bf16.mxu0 %v849
        %1105 = vmatpush1.bf16.msra.mxu0 %v848
        %1106 = vmatprep.subr.bf16.mxu0 %v851
        %1107 = vmatpush1.bf16.msra.mxu0 %v850
        %1108 = vmatprep.subr.bf16.mxu0 %v853
        %1109 = vmatpush1.bf16.msra.mxu0 %v852
        %1110 = vmatprep.subr.bf16.mxu0 %v855
        %1111 = vmatpush1.bf16.msra.mxu0 %v854
        %1112 = vmatprep.subr.bf16.mxu0 %v857
        %1113 = vmatpush1.bf16.msra.mxu0 %v856
        %1114 = vmatprep.subr.bf16.mxu0 %v859
        %1115 = vmatpush1.bf16.msra.mxu0 %v858
        %1116 = vmatprep.subr.bf16.mxu0 %v861
        %1117 = vmatpush1.bf16.msra.mxu0 %v860
        %1118 = vmatprep.mubr.bf16.mxu0 %v415
        %1119 = vmatmul.mubr.bf16.gmra.mrb[0].mxu0 %v414
        %v1120 = vpop.f32.mrb[0].mxu0
        %v1121 = vadd.f32 0.0, %v1120
        %v1122 = vpop.f32.mrb[0].mxu0
        %v1123 = vadd.f32 0.0, %v1122
        %v1124 = vpop.f32.mrb[0].mxu0
        %v1125 = vadd.f32 0.0, %v1124
        %v1126 = vpop.f32.mrb[0].mxu0
        %v1127 = vadd.f32 0.0, %v1126
        %1128 = vmatprep.mubr.bf16.mxu0 %v423
        %1129 = vmatmul.mubr.bf16.gmra.mrb[0].mxu0 %v422
        %v1130 = vpop.f32.mrb[0].mxu0
        %v1131 = vadd.f32 0.0, %v1130
        %v1132 = vpop.f32.mrb[0].mxu0
        %v1133 = vadd.f32 0.0, %v1132
        %v1134 = vpop.f32.mrb[0].mxu0
        %v1135 = vpop.f32.mrb[0].mxu0
        %1136 = vdwg.mxu0
        %1137 = vmatprep.subr.bf16.mxu0 %v863
        %1138 = vmatpush1.bf16.msra.mxu0 %v862
        %1139 = vmatprep.subr.bf16.mxu0 %v865
        %1140 = vmatpush1.bf16.msra.mxu0 %v864
        %1141 = vmatprep.subr.bf16.mxu0 %v867
        %1142 = vmatpush1.bf16.msra.mxu0 %v866
        %1143 = vmatprep.subr.bf16.mxu0 %v869
        %1144 = vmatpush1.bf16.msra.mxu0 %v868
        %1145 = vmatprep.subr.bf16.mxu0 %v871
        %1146 = vmatpush1.bf16.msra.mxu0 %v870
        %1147 = vmatprep.subr.bf16.mxu0 %v873
        %1148 = vmatpush1.bf16.msra.mxu0 %v872
        %1149 = vmatprep.subr.bf16.mxu0 %v875
        %1150 = vmatpush1.bf16.msra.mxu0 %v874
        %1151 = vmatprep.subr.bf16.mxu0 %v877
        %1152 = vmatpush1.bf16.msra.mxu0 %v876
        %1153 = vmatprep.subr.bf16.mxu0 %v879
        %1154 = vmatpush1.bf16.msra.mxu0 %v878
        %1155 = vmatprep.subr.bf16.mxu0 %v881
        %1156 = vmatpush1.bf16.msra.mxu0 %v880
        %1157 = vmatprep.subr.bf16.mxu0 %v883
        %1158 = vmatpush1.bf16.msra.mxu0 %v882
        %1159 = vmatprep.subr.bf16.mxu0 %v885
        %1160 = vmatpush1.bf16.msra.mxu0 %v884
        %1161 = vmatprep.subr.bf16.mxu0 %v887
        %1162 = vmatpush1.bf16.msra.mxu0 %v886
        %1163 = vmatprep.subr.bf16.mxu0 %v889
        %1164 = vmatpush1.bf16.msra.mxu0 %v888
        %1165 = vmatprep.subr.bf16.mxu0 %v891
        %1166 = vmatpush1.bf16.msra.mxu0 %v890
        %1167 = vmatprep.subr.bf16.mxu0 %v893
        %1168 = vmatpush1.bf16.msra.mxu0 %v892
        %1169 = vmatprep.mubr.bf16.mxu0 %v417
        %1170 = vmatmul.mubr.bf16.gmra.mrb[0].mxu0 %v416
        %v1171 = vpop.f32.mrb[0].mxu0
        %v1172 = vadd.f32 %v1121, %v1171
        %v1173 = vpop.f32.mrb[0].mxu0
        %v1174 = vadd.f32 %v1123, %v1173
        %v1175 = vpop.f32.mrb[0].mxu0
        %v1176 = vadd.f32 %v1125, %v1175
        %v1177 = vpop.f32.mrb[0].mxu0
        %v1178 = vadd.f32 %v1127, %v1177
        %1179 = vmatprep.mubr.bf16.mxu0 %v425
        %1180 = vmatmul.mubr.bf16.gmra.mrb[0].mxu0 %v424
        %v1181 = vpop.f32.mrb[0].mxu0
        %v1182 = vadd.f32 %v1131, %v1181
        %v1183 = vpop.f32.mrb[0].mxu0
        %v1184 = vadd.f32 %v1133, %v1183
        %v1185 = vpop.f32.mrb[0].mxu0
        %v1186 = vpop.f32.mrb[0].mxu0
        %1187 = vdwg.mxu0
        %1188 = vmatprep.subr.bf16.mxu0 %v895
        %1189 = vmatpush1.bf16.msra.mxu0 %v894
        %1190 = vmatprep.subr.bf16.mxu0 %v897
        %1191 = vmatpush1.bf16.msra.mxu0 %v896
        %1192 = vmatprep.subr.bf16.mxu0 %v899
        %1193 = vmatpush1.bf16.msra.mxu0 %v898
        %1194 = vmatprep.subr.bf16.mxu0 %v901
        %1195 = vmatpush1.bf16.msra.mxu0 %v900
        %1196 = vmatprep.subr.bf16.mxu0 %v903
        %1197 = vmatpush1.bf16.msra.mxu0 %v902
        %1198 = vmatprep.subr.bf16.mxu0 %v905
        %1199 = vmatpush1.bf16.msra.mxu0 %v904
        %1200 = vmatprep.subr.bf16.mxu0 %v907
        %1201 = vmatpush1.bf16.msra.mxu0 %v906
        %1202 = vmatprep.subr.bf16.mxu0 %v909
        %1203 = vmatpush1.bf16.msra.mxu0 %v908
        %1204 = vmatprep.subr.bf16.mxu0 %v911
        %1205 = vmatpush1.bf16.msra.mxu0 %v910
        %1206 = vmatprep.subr.bf16.mxu0 %v913
        %1207 = vmatpush1.bf16.msra.mxu0 %v912
        %1208 = vmatprep.subr.bf16.mxu0 %v915
        %1209 = vmatpush1.bf16.msra.mxu0 %v914
        %1210 = vmatprep.subr.bf16.mxu0 %v917
        %1211 = vmatpush1.bf16.msra.mxu0 %v916
        %1212 = vmatprep.subr.bf16.mxu0 %v919
        %1213 = vmatpush1.bf16.msra.mxu0 %v918
        %1214 = vmatprep.subr.bf16.mxu0 %v921
        %1215 = vmatpush1.bf16.msra.mxu0 %v920
        %1216 = vmatprep.subr.bf16.mxu0 %v923
        %1217 = vmatpush1.bf16.msra.mxu0 %v922
        %1218 = vmatprep.subr.bf16.mxu0 %v925
        %1219 = vmatpush1.bf16.msra.mxu0 %v924
        %1220 = vmatprep.mubr.bf16.mxu0 %v419
        %1221 = vmatmul.mubr.bf16.gmra.mrb[0].mxu0 %v418
        %v1222 = vpop.f32.mrb[0].mxu0
        %v1223 = vadd.f32 %v1172, %v1222
        %v1224 = vpop.f32.mrb[0].mxu0
        %v1225 = vadd.f32 %v1174, %v1224
        %v1226 = vpop.f32.mrb[0].mxu0
        %v1227 = vadd.f32 %v1176, %v1226
        %v1228 = vpop.f32.mrb[0].mxu0
        %v1229 = vadd.f32 %v1178, %v1228
        %1230 = vmatprep.mubr.bf16.mxu0 %v427
        %1231 = vmatmul.mubr.bf16.gmra.mrb[0].mxu0 %v426
        %v1232 = vpop.f32.mrb[0].mxu0
        %v1233 = vadd.f32 %v1182, %v1232
        %v1234 = vpop.f32.mrb[0].mxu0
        %v1235 = vadd.f32 %v1184, %v1234
        %v1236 = vpop.f32.mrb[0].mxu0
        %v1237 = vpop.f32.mrb[0].mxu0
        %1238 = vdwg.mxu0
        %1239 = vmatprep.subr.bf16.mxu0 %v927
        %1240 = vmatpush1.bf16.msra.mxu0 %v926
        %1241 = vmatprep.subr.bf16.mxu0 %v929
        %1242 = vmatpush1.bf16.msra.mxu0 %v928
        %1243 = vmatprep.subr.bf16.mxu0 %v931
        %1244 = vmatpush1.bf16.msra.mxu0 %v930
        %1245 = vmatprep.subr.bf16.mxu0 %v933
        %1246 = vmatpush1.bf16.msra.mxu0 %v932
        %1247 = vmatprep.subr.bf16.mxu0 %v935
        %1248 = vmatpush1.bf16.msra.mxu0 %v934
        %1249 = vmatprep.subr.bf16.mxu0 %v937
        %1250 = vmatpush1.bf16.msra.mxu0 %v936
        %1251 = vmatprep.subr.bf16.mxu0 %v939
        %1252 = vmatpush1.bf16.msra.mxu0 %v938
        %1253 = vmatprep.subr.bf16.mxu0 %v941
        %1254 = vmatpush1.bf16.msra.mxu0 %v940
        %1255 = vmatprep.subr.bf16.mxu0 %v943
        %1256 = vmatpush1.bf16.msra.mxu0 %v942
        %1257 = vmatprep.subr.bf16.mxu0 %v945
        %1258 = vmatpush1.bf16.msra.mxu0 %v944
        %1259 = vmatprep.subr.bf16.mxu0 %v947
        %1260 = vmatpush1.bf16.msra.mxu0 %v946
        %1261 = vmatprep.subr.bf16.mxu0 %v949
        %1262 = vmatpush1.bf16.msra.mxu0 %v948
        %1263 = vmatprep.subr.bf16.mxu0 %v951
        %1264 = vmatpush1.bf16.msra.mxu0 %v950
        %1265 = vmatprep.subr.bf16.mxu0 %v953
        %1266 = vmatpush1.bf16.msra.mxu0 %v952
        %1267 = vmatprep.subr.bf16.mxu0 %v955
        %1268 = vmatpush1.bf16.msra.mxu0 %v954
        %1269 = vmatprep.subr.bf16.mxu0 %v957
        %1270 = vmatpush1.bf16.msra.mxu0 %v956
        %1271 = vmatprep.mubr.bf16.mxu0 %v421
        %1272 = vmatmul.mubr.bf16.gmra.mrb[0].mxu0 %v420
        %v1273 = vpop.f32.mrb[0].mxu0
        %v1274 = vadd.f32 %v1223, %v1273
        %v1275 = vpop.f32.mrb[0].mxu0
        %v1276 = vadd.f32 %v1225, %v1275
        %v1277 = vpop.f32.mrb[0].mxu0
        %v1278 = vadd.f32 %v1227, %v1277
        %v1279 = vpop.f32.mrb[0].mxu0
        %v1280 = vadd.f32 %v1229, %v1279
        %1281 = vmatprep.mubr.bf16.mxu0 %v429
        %1282 = vmatmul.mubr.bf16.gmra.mrb[0].mxu0 %v428
        %v1283 = vpop.f32.mrb[0].mxu0
        %v1284 = vadd.f32 %v1233, %v1283
        %v1285 = vpop.f32.mrb[0].mxu0
        %v1286 = vadd.f32 %v1235, %v1285
        %v1287 = vpop.f32.mrb[0].mxu0
        %v1288 = vpop.f32.mrb[0].mxu0
        %1289 = vdwg.mxu0
        %s1290 = scalar_lea.vmem %s199, 96 [#allocation5]
        %v1291 = vld [vmem:[%s1290] sm:$0xff]
        %v1292 = vld [vmem:[%s1290 + $0x8] sm:$0xff]
        %v1293 = vld [vmem:[%s1290 + $0x10] sm:$0xff]
        %v1294 = vld [vmem:[%s1290 + $0x18] sm:$0xff]
        %v1295 = vld [vmem:[%s1290 + $0x20] sm:$0xff]
        %v1296 = vld [vmem:[%s1290 + $0x28] sm:$0xff]
        %v1297 = vld [vmem:[%s1290 + $0x30] sm:$0xff]
        %v1298 = vld [vmem:[%s1290 + $0x38] sm:$0xff]
        %v1299 = vld [vmem:[%s1290 + $0x40] sm:$0xff]
        %v1300 = vld [vmem:[%s1290 + $0x48] sm:$0xff]
        %v1301 = vld [vmem:[%s1290 + $0x50] sm:$0xff]
        %v1302 = vld [vmem:[%s1290 + $0x58] sm:$0xff]
        %v1315 = vunpack.c.l.b16 %v1291
        %v1316 = vunpack.c.h.b16 %v1291
        %v1317 = vunpack.c.l.b16 %v1292
        %v1318 = vunpack.c.h.b16 %v1292
        %v1319 = vunpack.c.l.b16 %v1293
        %v1320 = vunpack.c.h.b16 %v1293
        %v1321 = vunpack.c.l.b16 %v1294
        %v1322 = vunpack.c.h.b16 %v1294
        %v1323 = vunpack.c.l.b16 %v1295
        %v1324 = vunpack.c.h.b16 %v1295
        %v1325 = vunpack.c.l.b16 %v1296
        %v1326 = vunpack.c.h.b16 %v1296
        %v1327 = vunpack.c.l.b16 %v1297
        %v1328 = vunpack.c.h.b16 %v1297
        %v1329 = vunpack.c.l.b16 %v1298
        %v1330 = vunpack.c.h.b16 %v1298
        %v1331 = vunpack.c.l.b16 %v1299
        %v1332 = vunpack.c.h.b16 %v1299
        %v1333 = vunpack.c.l.b16 %v1300
        %v1334 = vunpack.c.h.b16 %v1300
        %v1335 = vunpack.c.l.b16 %v1301
        %v1336 = vunpack.c.h.b16 %v1301
        %v1337 = vunpack.c.l.b16 %v1302
        %v1338 = vunpack.c.h.b16 %v1302
        %v1339 = vpack.c.b16 %v1323, %v1315
        %v1340 = vpack.c.b16 %v1324, %v1316
        %v1341 = vpack.c.b16 %v1325, %v1317
        %v1342 = vpack.c.b16 %v1326, %v1318
        %v1343 = vpack.c.b16 %v1327, %v1319
        %v1344 = vpack.c.b16 %v1328, %v1320
        %v1345 = vpack.c.b16 %v1329, %v1321
        %v1346 = vpack.c.b16 %v1330, %v1322
        %v1347 = vpack.c.b16 %v1331, %v1331
        %v1348 = vpack.c.b16 %v1332, %v1332
        %v1349 = vpack.c.b16 %v1333, %v1333
        %v1350 = vpack.c.b16 %v1334, %v1334
        %v1351 = vpack.c.b16 %v1335, %v1335
        %v1352 = vpack.c.b16 %v1336, %v1336
        %v1353 = vpack.c.b16 %v1337, %v1337
        %v1354 = vpack.c.b16 %v1338, %v1338
        %1371 = vmatprep.subr.bf16.mxu0 %v831
        %1372 = vmatpush1.bf16.msra.mxu0 %v830
        %1373 = vmatprep.subr.bf16.mxu0 %v833
        %1374 = vmatpush1.bf16.msra.mxu0 %v832
        %1375 = vmatprep.subr.bf16.mxu0 %v835
        %1376 = vmatpush1.bf16.msra.mxu0 %v834
        %1377 = vmatprep.subr.bf16.mxu0 %v837
        %1378 = vmatpush1.bf16.msra.mxu0 %v836
        %1379 = vmatprep.subr.bf16.mxu0 %v839
        %1380 = vmatpush1.bf16.msra.mxu0 %v838
        %1381 = vmatprep.subr.bf16.mxu0 %v841
        %1382 = vmatpush1.bf16.msra.mxu0 %v840
        %1383 = vmatprep.subr.bf16.mxu0 %v843
        %1384 = vmatpush1.bf16.msra.mxu0 %v842
        %1385 = vmatprep.subr.bf16.mxu0 %v845
        %1386 = vmatpush1.bf16.msra.mxu0 %v844
        %1387 = vmatprep.subr.bf16.mxu0 %v847
        %1388 = vmatpush1.bf16.msra.mxu0 %v846
        %1389 = vmatprep.subr.bf16.mxu0 %v849
        %1390 = vmatpush1.bf16.msra.mxu0 %v848
        %1391 = vmatprep.subr.bf16.mxu0 %v851
        %1392 = vmatpush1.bf16.msra.mxu0 %v850
        %1393 = vmatprep.subr.bf16.mxu0 %v853
        %1394 = vmatpush1.bf16.msra.mxu0 %v852
        %1395 = vmatprep.subr.bf16.mxu0 %v855
        %1396 = vmatpush1.bf16.msra.mxu0 %v854
        %1397 = vmatprep.subr.bf16.mxu0 %v857
        %1398 = vmatpush1.bf16.msra.mxu0 %v856
        %1399 = vmatprep.subr.bf16.mxu0 %v859
        %1400 = vmatpush1.bf16.msra.mxu0 %v858
        %1401 = vmatprep.subr.bf16.mxu0 %v861
        %1402 = vmatpush1.bf16.msra.mxu0 %v860
        %1403 = vmatprep.mubr.bf16.mxu0 %v1340
        %1404 = vmatmul.mubr.bf16.gmra.mrb[0].mxu0 %v1339
        %v1405 = vpop.f32.mrb[0].mxu0
        %v1406 = vadd.f32 0.0, %v1405
        %v1407 = vpop.f32.mrb[0].mxu0
        %v1408 = vadd.f32 0.0, %v1407
        %v1409 = vpop.f32.mrb[0].mxu0
        %v1410 = vadd.f32 0.0, %v1409
        %v1411 = vpop.f32.mrb[0].mxu0
        %v1412 = vadd.f32 0.0, %v1411
        %1413 = vmatprep.mubr.bf16.mxu0 %v1348
        %1414 = vmatmul.mubr.bf16.gmra.mrb[0].mxu0 %v1347
        %v1415 = vpop.f32.mrb[0].mxu0
        %v1416 = vadd.f32 0.0, %v1415
        %v1417 = vpop.f32.mrb[0].mxu0
        %v1418 = vadd.f32 0.0, %v1417
        %v1419 = vpop.f32.mrb[0].mxu0
        %v1420 = vpop.f32.mrb[0].mxu0
        %1421 = vdwg.mxu0
        %1422 = vmatprep.subr.bf16.mxu0 %v863
        %1423 = vmatpush1.bf16.msra.mxu0 %v862
        %1424 = vmatprep.subr.bf16.mxu0 %v865
        %1425 = vmatpush1.bf16.msra.mxu0 %v864
        %1426 = vmatprep.subr.bf16.mxu0 %v867
        %1427 = vmatpush1.bf16.msra.mxu0 %v866
        %1428 = vmatprep.subr.bf16.mxu0 %v869
        %1429 = vmatpush1.bf16.msra.mxu0 %v868
        %1430 = vmatprep.subr.bf16.mxu0 %v871
        %1431 = vmatpush1.bf16.msra.mxu0 %v870
        %1432 = vmatprep.subr.bf16.mxu0 %v873
        %1433 = vmatpush1.bf16.msra.mxu0 %v872
        %1434 = vmatprep.subr.bf16.mxu0 %v875
        %1435 = vmatpush1.bf16.msra.mxu0 %v874
        %1436 = vmatprep.subr.bf16.mxu0 %v877
        %1437 = vmatpush1.bf16.msra.mxu0 %v876
        %1438 = vmatprep.subr.bf16.mxu0 %v879
        %1439 = vmatpush1.bf16.msra.mxu0 %v878
        %1440 = vmatprep.subr.bf16.mxu0 %v881
        %1441 = vmatpush1.bf16.msra.mxu0 %v880
        %1442 = vmatprep.subr.bf16.mxu0 %v883
        %1443 = vmatpush1.bf16.msra.mxu0 %v882
        %1444 = vmatprep.subr.bf16.mxu0 %v885
        %1445 = vmatpush1.bf16.msra.mxu0 %v884
        %1446 = vmatprep.subr.bf16.mxu0 %v887
        %1447 = vmatpush1.bf16.msra.mxu0 %v886
        %1448 = vmatprep.subr.bf16.mxu0 %v889
        %1449 = vmatpush1.bf16.msra.mxu0 %v888
        %1450 = vmatprep.subr.bf16.mxu0 %v891
        %1451 = vmatpush1.bf16.msra.mxu0 %v890
        %1452 = vmatprep.subr.bf16.mxu0 %v893
        %1453 = vmatpush1.bf16.msra.mxu0 %v892
        %1454 = vmatprep.mubr.bf16.mxu0 %v1342
        %1455 = vmatmul.mubr.bf16.gmra.mrb[0].mxu0 %v1341
        %v1456 = vpop.f32.mrb[0].mxu0
        %v1457 = vadd.f32 %v1406, %v1456
        %v1458 = vpop.f32.mrb[0].mxu0
        %v1459 = vadd.f32 %v1408, %v1458
        %v1460 = vpop.f32.mrb[0].mxu0
        %v1461 = vadd.f32 %v1410, %v1460
        %v1462 = vpop.f32.mrb[0].mxu0
        %v1463 = vadd.f32 %v1412, %v1462
        %1464 = vmatprep.mubr.bf16.mxu0 %v1350
        %1465 = vmatmul.mubr.bf16.gmra.mrb[0].mxu0 %v1349
        %v1466 = vpop.f32.mrb[0].mxu0
        %v1467 = vadd.f32 %v1416, %v1466
        %v1468 = vpop.f32.mrb[0].mxu0
        %v1469 = vadd.f32 %v1418, %v1468
        %v1470 = vpop.f32.mrb[0].mxu0
        %v1471 = vpop.f32.mrb[0].mxu0
        %1472 = vdwg.mxu0
        %1473 = vmatprep.subr.bf16.mxu0 %v895
        %1474 = vmatpush1.bf16.msra.mxu0 %v894
        %1475 = vmatprep.subr.bf16.mxu0 %v897
        %1476 = vmatpush1.bf16.msra.mxu0 %v896
        %1477 = vmatprep.subr.bf16.mxu0 %v899
        %1478 = vmatpush1.bf16.msra.mxu0 %v898
        %1479 = vmatprep.subr.bf16.mxu0 %v901
        %1480 = vmatpush1.bf16.msra.mxu0 %v900
        %1481 = vmatprep.subr.bf16.mxu0 %v903
        %1482 = vmatpush1.bf16.msra.mxu0 %v902
        %1483 = vmatprep.subr.bf16.mxu0 %v905
        %1484 = vmatpush1.bf16.msra.mxu0 %v904
        %1485 = vmatprep.subr.bf16.mxu0 %v907
        %1486 = vmatpush1.bf16.msra.mxu0 %v906
        %1487 = vmatprep.subr.bf16.mxu0 %v909
        %1488 = vmatpush1.bf16.msra.mxu0 %v908
        %1489 = vmatprep.subr.bf16.mxu0 %v911
        %1490 = vmatpush1.bf16.msra.mxu0 %v910
        %1491 = vmatprep.subr.bf16.mxu0 %v913
        %1492 = vmatpush1.bf16.msra.mxu0 %v912
        %1493 = vmatprep.subr.bf16.mxu0 %v915
        %1494 = vmatpush1.bf16.msra.mxu0 %v914
        %1495 = vmatprep.subr.bf16.mxu0 %v917
        %1496 = vmatpush1.bf16.msra.mxu0 %v916
        %1497 = vmatprep.subr.bf16.mxu0 %v919
        %1498 = vmatpush1.bf16.msra.mxu0 %v918
        %1499 = vmatprep.subr.bf16.mxu0 %v921
        %1500 = vmatpush1.bf16.msra.mxu0 %v920
        %1501 = vmatprep.subr.bf16.mxu0 %v923
        %1502 = vmatpush1.bf16.msra.mxu0 %v922
        %1503 = vmatprep.subr.bf16.mxu0 %v925
        %1504 = vmatpush1.bf16.msra.mxu0 %v924
        %1505 = vmatprep.mubr.bf16.mxu0 %v1344
        %1506 = vmatmul.mubr.bf16.gmra.mrb[0].mxu0 %v1343
        %v1507 = vpop.f32.mrb[0].mxu0
        %v1508 = vadd.f32 %v1457, %v1507
        %v1509 = vpop.f32.mrb[0].mxu0
        %v1510 = vadd.f32 %v1459, %v1509
        %v1511 = vpop.f32.mrb[0].mxu0
        %v1512 = vadd.f32 %v1461, %v1511
        %v1513 = vpop.f32.mrb[0].mxu0
        %v1514 = vadd.f32 %v1463, %v1513
        %1515 = vmatprep.mubr.bf16.mxu0 %v1352
        %1516 = vmatmul.mubr.bf16.gmra.mrb[0].mxu0 %v1351
        %v1517 = vpop.f32.mrb[0].mxu0
        %v1518 = vadd.f32 %v1467, %v1517
        %v1519 = vpop.f32.mrb[0].mxu0
        %v1520 = vadd.f32 %v1469, %v1519
        %v1521 = vpop.f32.mrb[0].mxu0
        %v1522 = vpop.f32.mrb[0].mxu0
        %1523 = vdwg.mxu0
        %1524 = vmatprep.subr.bf16.mxu0 %v927
        %1525 = vmatpush1.bf16.msra.mxu0 %v926
        %1526 = vmatprep.subr.bf16.mxu0 %v929
        %1527 = vmatpush1.bf16.msra.mxu0 %v928
        %1528 = vmatprep.subr.bf16.mxu0 %v931
        %1529 = vmatpush1.bf16.msra.mxu0 %v930
        %1530 = vmatprep.subr.bf16.mxu0 %v933
        %1531 = vmatpush1.bf16.msra.mxu0 %v932
        %1532 = vmatprep.subr.bf16.mxu0 %v935
        %1533 = vmatpush1.bf16.msra.mxu0 %v934
        %1534 = vmatprep.subr.bf16.mxu0 %v937
        %1535 = vmatpush1.bf16.msra.mxu0 %v936
        %1536 = vmatprep.subr.bf16.mxu0 %v939
        %1537 = vmatpush1.bf16.msra.mxu0 %v938
        %1538 = vmatprep.subr.bf16.mxu0 %v941
        %1539 = vmatpush1.bf16.msra.mxu0 %v940
        %1540 = vmatprep.subr.bf16.mxu0 %v943
        %1541 = vmatpush1.bf16.msra.mxu0 %v942
        %1542 = vmatprep.subr.bf16.mxu0 %v945
        %1543 = vmatpush1.bf16.msra.mxu0 %v944
        %1544 = vmatprep.subr.bf16.mxu0 %v947
        %1545 = vmatpush1.bf16.msra.mxu0 %v946
        %1546 = vmatprep.subr.bf16.mxu0 %v949
        %1547 = vmatpush1.bf16.msra.mxu0 %v948
        %1548 = vmatprep.subr.bf16.mxu0 %v951
        %1549 = vmatpush1.bf16.msra.mxu0 %v950
        %1550 = vmatprep.subr.bf16.mxu0 %v953
        %1551 = vmatpush1.bf16.msra.mxu0 %v952
        %1552 = vmatprep.subr.bf16.mxu0 %v955
        %1553 = vmatpush1.bf16.msra.mxu0 %v954
        %1554 = vmatprep.subr.bf16.mxu0 %v957
        %1555 = vmatpush1.bf16.msra.mxu0 %v956
        %1556 = vmatprep.mubr.bf16.mxu0 %v1346
        %1557 = vmatmul.mubr.bf16.gmra.mrb[0].mxu0 %v1345
        %v1558 = vpop.f32.mrb[0].mxu0
        %v1559 = vadd.f32 %v1508, %v1558
        %v1560 = vpop.f32.mrb[0].mxu0
        %v1561 = vadd.f32 %v1510, %v1560
        %v1562 = vpop.f32.mrb[0].mxu0
        %v1563 = vadd.f32 %v1512, %v1562
        %v1564 = vpop.f32.mrb[0].mxu0
        %v1565 = vadd.f32 %v1514, %v1564
        %1566 = vmatprep.mubr.bf16.mxu0 %v1354
        %1567 = vmatmul.mubr.bf16.gmra.mrb[0].mxu0 %v1353
        %v1568 = vpop.f32.mrb[0].mxu0
        %v1569 = vadd.f32 %v1518, %v1568
        %v1570 = vpop.f32.mrb[0].mxu0
        %v1571 = vadd.f32 %v1520, %v1570
        %v1572 = vpop.f32.mrb[0].mxu0
        %v1573 = vpop.f32.mrb[0].mxu0
        %1574 = vdwg.mxu0
        %v1575 = vmul.f32 %v1274, %v1274
        %v1576 = vmul.f32 %v1278, %v1278
        %v1577 = vmul.f32 %v1284, %v1284
        %v1578 = vmul.f32 %v1276, %v1276
        %v1579 = vmul.f32 %v1280, %v1280
        %v1580 = vmul.f32 %v1286, %v1286
        %v1581 = vadd.f32 %v1575, %v1578
        %v1582 = vadd.f32 %v1576, %v1579
        %v1583 = vadd.f32 %v1577, %v1580
        %v1584 = vmax.f32 %v1581, 1e-07
        %v1585 = vmax.f32 %v1582, 1e-07
        %v1586 = vmax.f32 %v1583, 1e-07
        %v1587 = vmul.f32 %v1559, %v1559
        %v1588 = vmul.f32 %v1563, %v1563
        %v1589 = vmul.f32 %v1569, %v1569
        %v1590 = vmul.f32 %v1561, %v1561
        %v1591 = vmul.f32 %v1565, %v1565
        %v1592 = vmul.f32 %v1571, %v1571
        %v1593 = vadd.f32 %v1587, %v1590
        %v1594 = vadd.f32 %v1588, %v1591
        %v1595 = vadd.f32 %v1589, %v1592
        %v1596 = vmax.f32 %v1593, 1e-07
        %v1597 = vmax.f32 %v1594, 1e-07
        %v1598 = vmax.f32 %v1595, 1e-07
        %v1599 = vld [vmem:[#allocation2] sm:$0xff]
        %v1600 = vld [vmem:[#allocation2 + $0x8] sm:$0xff]
        %v1601 = vld [vmem:[#allocation2 + $0x10] sm:$0xff]
        %v1602 = vadd.f32 %v1584, %v1596
        %v1603 = vadd.f32 %v1585, %v1597
        %v1604 = vadd.f32 %v1586, %v1598
        %v1605 = vmul.f32 %v1584, %v1596
        %v1606 = vmul.f32 %v1585, %v1597
        %v1607 = vmul.f32 %v1586, %v1598
        %v1608 = vrsqrt.pop %v1605
        %v1609 = vmul.f32 %v1605, %v1608
        %vm1610 = vcmp.eq.f32.partialorder %v1605, inf
        %v1611 = vsel %vm1610, %v1605, %v1609
        %vm1612 = vcmp.eq.f32.partialorder %v1605, 0.0
        %v1613 = vand.u32 %v1605, 2147483648
        %v1614 = vsel %vm1612, %v1613, %v1611
        %v1615 = vrsqrt.pop %v1606
        %v1616 = vmul.f32 %v1606, %v1615
        %vm1617 = vcmp.eq.f32.partialorder %v1606, inf
        %v1618 = vsel %vm1617, %v1606, %v1616
        %vm1619 = vcmp.eq.f32.partialorder %v1606, 0.0
        %v1620 = vand.u32 %v1606, 2147483648
        %v1621 = vsel %vm1619, %v1620, %v1618
        %v1622 = vrsqrt.pop %v1607
        %v1623 = vmul.f32 %v1607, %v1622
        %vm1624 = vcmp.eq.f32.partialorder %v1607, inf
        %v1625 = vsel %vm1624, %v1607, %v1623
        %vm1626 = vcmp.eq.f32.partialorder %v1607, 0.0
        %v1627 = vand.u32 %v1607, 2147483648
        %v1628 = vsel %vm1626, %v1627, %v1625
        %v1629 = vmul.f32 %v1614, 2.0
        %v1630 = vmul.f32 %v1621, 2.0
        %v1631 = vmul.f32 %v1628, 2.0
        %v1632 = vsub.f32 %v1602, %v1629
        %v1633 = vsub.f32 %v1603, %v1630
        %v1634 = vsub.f32 %v1604, %v1631
        %v1635 = vadd.f32 %v1599, %v1632
        %v1636 = vadd.f32 %v1600, %v1633
        %v1637 = vadd.f32 %v1601, %v1634
        %1638 = vst [vmem:[#allocation2] sm:$0xff] %v1635
        %1639 = vst [vmem:[#allocation2 + $0x8] sm:$0xff] %v1636
        %1640 = vst [vmem:[#allocation2 + $0x10] sm:$0xff] %v1637
        %v1641 = vld [vmem:[#allocation3] sm:$0xff]
        %v1642 = vld [vmem:[#allocation3 + $0x8] sm:$0xff]
        %v1643 = vld [vmem:[#allocation3 + $0x10] sm:$0xff]
        %v1644 = vadd.f32 %v1641, %v1596
        %v1645 = vadd.f32 %v1642, %v1597
        %v1646 = vadd.f32 %v1643, %v1598
        %1647 = vst [vmem:[#allocation3] sm:$0xff] %v1644
        %1648 = vst [vmem:[#allocation3 + $0x8] sm:$0xff] %v1645
        %1649 = vst [vmem:[#allocation3 + $0x10] sm:$0xff] %v1646
        %v1650 = vld [vmem:[#allocation4] sm:$0xff]
        %v1651 = vld [vmem:[#allocation4 + $0x8] sm:$0xff]
        %v1652 = vld [vmem:[#allocation4 + $0x10] sm:$0xff]
        %v1653 = vrcp.pop %v1584
        %v1654 = vrcp.pop %v1585
        %v1655 = vrcp.pop %v1586
        %v1656 = vmul.f32 %v1596, %v1653
        %v1657 = vmul.f32 %v1597, %v1654
        %v1658 = vmul.f32 %v1598, %v1655
        %v1659 = vlog2.pop %v1656
        %v1660 = vmul.f32 %v1659, 0.6931472
        %v1661 = vlog2.pop %v1657
        %v1662 = vmul.f32 %v1661, 0.6931472
        %v1663 = vlog2.pop %v1658
        %v1664 = vmul.f32 %v1663, 0.6931472
        %v1665 = vand.u32 2147483647, %v1660
        %v1666 = vand.u32 2147483647, %v1662
        %v1667 = vand.u32 2147483647, %v1664
        %v1668 = vadd.f32 %v1650, %v1665
        %v1669 = vadd.f32 %v1651, %v1666
        %v1670 = vadd.f32 %v1652, %v1667
        %1671 = vst [vmem:[#allocation4] sm:$0xff] %v1668
        %1672 = vst [vmem:[#allocation4 + $0x8] sm:$0xff] %v1669
        %1673 = vst [vmem:[#allocation4 + $0x10] sm:$0xff] %v1670
        %p1674 = scmp.eq.s32.totalorder %s18, 3
        // Predicated region
        $region56: #{_combined_loss_impl.6} parent=46 // pred_check
          %p1675 = pneg %p1674
        $region57: #{_combined_loss_impl.6} parent=46 // pred_check_branch
          %1677 = sbr.rel (%p1675) target = $region59
        $region58: #{_combined_loss_impl.6} parent=46 // pred_region
          %v1678 = vlaneseq
          %v1679 = vand.u32 %v1678, 127
          %v1680 = vld [vmem:[#allocation2] sm:$0xff]
          %v1681 = vld [vmem:[#allocation2 + $0x8] sm:$0xff]
          %v1682 = vld [vmem:[#allocation2 + $0x10] sm:$0xff]
          %v1683 = vadd.f32 %v1680, %v1681
          %v1684 = vadd.f32 %v1683, %v1682
          %1685 = vadd.xlane.f32.xlu0 %v1684
          %v1686 = vpop.xlane.xlu0 %1685
          %v1687 = vrot.slane %v1686, 4
          %v1688 = vadd.f32 %v1686, %v1687
          %v1689 = vrot.slane %v1688, 2
          %v1690 = vadd.f32 %v1688, %v1689
          %v1691 = vrot.slane %v1690, 1
          %v1692 = vadd.f32 %v1690, %v1691
          %s1693 = vtos %v1692
          %v1694 = vld [vmem:[#allocation3] sm:$0xff]
          %v1695 = vld [vmem:[#allocation3 + $0x8] sm:$0xff]
          %v1696 = vld [vmem:[#allocation3 + $0x10] sm:$0xff]
          %v1697 = vadd.f32 %v1694, %v1695
          %v1698 = vadd.f32 %v1697, %v1696
          %1699 = vadd.xlane.f32.xlu0 %v1698
          %v1700 = vpop.xlane.xlu0 %1699
          %v1701 = vrot.slane %v1700, 4
          %v1702 = vadd.f32 %v1700, %v1701
          %v1703 = vrot.slane %v1702, 2
          %v1704 = vadd.f32 %v1702, %v1703
          %v1705 = vrot.slane %v1704, 1
          %v1706 = vadd.f32 %v1704, %v1705
          %s1707 = vtos %v1706
          %v1708 = vld [vmem:[#allocation4] sm:$0xff]
          %v1709 = vld [vmem:[#allocation4 + $0x8] sm:$0xff]
          %v1710 = vld [vmem:[#allocation4 + $0x10] sm:$0xff]
          %v1711 = vadd.f32 %v1708, %v1709
          %v1712 = vadd.f32 %v1711, %v1710
          %1713 = vadd.xlane.f32.xlu0 %v1712
          %v1714 = vpop.xlane.xlu0 %1713
          %v1715 = vrot.slane %v1714, 4
          %v1716 = vadd.f32 %v1714, %v1715
          %v1717 = vrot.slane %v1716, 2
          %v1718 = vadd.f32 %v1716, %v1717
          %v1719 = vrot.slane %v1718, 1
          %v1720 = vadd.f32 %v1718, %v1719
          %s1721 = vtos %v1720
          %s1722 = smul.f32 %s1721, 0.5
          %vm1723 = vcmp.eq.s32.totalorder %v1679, 0
          %vm1724 = vcmp.eq.s32.totalorder %v1679, 1
          %vm1725 = vcmp.eq.s32.totalorder %v1679, 2
          %v1726 = vstv %s1722
          %v1727 = vsel %vm1725, %v1726, 0.0
          %v1728 = vstv %s1707
          %v1729 = vsel %vm1724, %v1728, %v1727
          %v1730 = vstv %s1693
          %v1731 = vsel %vm1723, %v1730, %v1729
          %1732 = vst [vmem:[%s221] sm:$0xff] %v1731
        $region59: #{_combined_loss_impl.6} parent=46 // pred_fallthru
          _
        %p1733 = scmp.lt.s32.totalorder %s17, 1
        %s1734 = scalar_select %p1733, %s17, 1
        %s1735 = smul.addr %s1734, 8
        %s1736 = scalar_lea.vmem %s2, %s1735
        // Predicated region
        $region60: #{_combined_loss_impl.6} parent=46 // pred_check
          %p1737 = pneg %p90
        $region61: #{_combined_loss_impl.6} parent=46 // pred_check_branch
          %1739 = sbr.rel (%p1737) target = $region63
        $region62: #{_combined_loss_impl.6} parent=46 // pred_region
          _
        $region63: #{_combined_loss_impl.6} parent=46 // pred_fallthru
          _
      $region47: #{_combined_loss_impl.6} parent=5 // pred_fallthru
        _
      %p1740 = scmp.le.s32.totalorder 2, %s8
      // Predicated region
      $region64: #{_combined_loss_impl.6} parent=5 // pred_check
        %p1741 = pneg %p1740
      $region65: #{_combined_loss_impl.6} parent=5 // pred_check_branch
        %1743 = sbr.rel (%p1741) target = $region67
      $region66: #{_combined_loss_impl.6} parent=5 // pred_region
        %s1744 = ssub.s32 %s8, 2
        // Predicated region
        $region68: #{_combined_loss_impl.6} parent=66 // pred_check
          %p1745 = pneg %p96
        $region69: #{_combined_loss_impl.6} parent=66 // pred_check_branch
          %1747 = sbr.rel (%p1745) target = $region71
        $region70: #{_combined_loss_impl.6} parent=66 // pred_region
          %p1748 = scmp.lt.s32.totalorder %s19, 1
          %s1749 = scalar_select %p1748, %s19, 1
          %s1750 = smul.addr %s1749, 8
          %s1751 = scalar_lea.vmem %s2, %s1750
        $region71: #{_combined_loss_impl.6} parent=66 // pred_fallthru
          _
      $region67: #{_combined_loss_impl.6} parent=5 // pred_fallthru
        _
    $region6: #{_combined_loss_impl.6} parent=1 // loop_footer
      %s12 = sadd.s32 1, %s8
    $region7: #{_combined_loss_impl.6} parent=1 // loop_footer_branch
      %7 = sbr.rel target = $region3
    $region8: #{_combined_loss_impl.6} parent=1 // loop_exit
      _

// kernel: _combined_loss_impl.7
$region0: #{_combined_loss_impl.7}
  #allocation0 [shape = 'u32[]', space=smem, size = 0x4, offset = 0x4, fixed_abs, tag = 'smem constant byte address 0x4 - core index']
  #allocation1 [shape = 'u32[144,128]{1,0:T(1,128)}', space=vmem, size = 0x12000, scoped, tag = 'internal scratch']
  #allocation2 [shape = 'f32[16,128]{1,0:T(8,128)}', space=vmem, size = 0x2000, scoped, tag = 'scratch operand']
  #allocation3 [shape = 'f32[16,128]{1,0:T(8,128)}', space=vmem, size = 0x2000, scoped, tag = 'scratch operand']
  #allocation4 [shape = 'f32[16,128]{1,0:T(8,128)}', space=vmem, size = 0x2000, scoped, tag = 'scratch operand']
  %s0 = inlined_call_operand.vmem [shape: bf16[2,32,2048], index: 0, kind: input, shape index: {}]
  %s1 = inlined_call_operand.vmem [shape: bf16[8,2048,256], index: 1, kind: input, shape index: {}]
  %s2 = inlined_call_operand.vmem [shape: f32[2,8,128], index: 2, kind: output, shape index: {}]
  %s3 = sld [smem:[#allocation0]]
  $region72: #{_combined_loss_impl.7} parent=0
    _
  %s5 = ssub.s32 1, %s3
  %s6 = scalar_select 0, %s5, %s3
  $region1: #{_combined_loss_impl.7} parent=0
    #allocation5 [shape = 'u8[262144]{0}', space=vmem, size = 0x40000, scoped, tag = 'input window, operand 0']
    loop: start=0, step=1, limit=18
    $region2: #{_combined_loss_impl.7} parent=1 // loop_pre_header
      _
    $region3: #{_combined_loss_impl.7} parent=1 // loop_header
      %s8 = sphi 0, %s12
      %p9 = scmp.ge.s32.totalorder %s8, 18
      %s15 = sphi 0, %s27
      %s16 = sphi 0, %s23
      %s17 = sphi 0, %s15
      %s18 = sphi 0, %s16
      %s19 = sphi 0, %s17
      %s20 = sphi 0, %s18
      %s30 = sphi 0, %s32
      %s33 = sphi 0, %s30
      %s34 = sphi 0, %s33
      %s50 = sphi 0, %s34
      %s54 = sphi 0, %s54
      %s56 = sphi 0, %s54
      %s57 = sphi 0, %s56
      %s71 = sphi 0, %s57
      %s77 = sphi 0, %s79
      %s80 = sphi 0, %s77
      %s81 = sphi 0, %s80
      %s97 = sphi 0, %s81
    $region4: #{_combined_loss_impl.7} parent=1 // loop_header_branch
      %11 = sbr.rel (%p9) target = $region8
    $region5: #{_combined_loss_impl.7} parent=1 // loop_body
      %s13 = ssub.s32 %s8, 1
      %s14 = ssub.s32 %s8, 2
      %s21 = sadd.s32 1, %s16
      %p22 = scmp.ge.s32.totalorder %s21, 8
      %s23 = scalar_select %p22, 0, %s21
      %s24 = sadd.s32 1, %s15
      %s25 = scalar_select %p22, %s24, %s15
      %p26 = scmp.ge.s32.totalorder %s25, 2
      %s27 = scalar_select %p26, 0, %s25
      %s28 = ssub.s32 %s15, %s27
      %p29 = scmp.eq.s32.totalorder %s28, 0
      %s31 = sadd.s32 %s30, 1
      %s32 = scalar_select %p29, %s30, %s31
      %p35 = pneg %p29
      %p36 = scmp.eq.s32.totalorder %s8, 15
      %p37 = por %p35, %p36
      %p38 = scmp.ne.s32.totalorder %s30, %s33
      %p39 = scmp.eq.s32.totalorder %s8, 0
      %p40 = por %p38, %p39
      %p41 = scmp.ne.s32.totalorder %s30, %s33
      %p42 = scmp.eq.s32.totalorder %s13, 15
      %p43 = por %p41, %p42
      %p44 = scmp.ne.s32.totalorder %s33, %s34
      %p45 = scmp.eq.s32.totalorder %s13, 0
      %p46 = por %p44, %p45
      %p47 = scmp.ne.s32.totalorder %s33, %s34
      %p48 = scmp.eq.s32.totalorder %s14, 15
      %p49 = por %p47, %p48
      %p51 = scmp.ne.s32.totalorder %s34, %s50
      %p52 = scmp.eq.s32.totalorder %s14, 0
      %p53 = por %p51, %p52
      %s55 = sadd.s32 %s54, 1
      %p58 = scmp.eq.s32.totalorder %s8, 15
      %p59 = scmp.ne.s32.totalorder %s54, %s56
      %p60 = scmp.eq.s32.totalorder %s8, 0
      %p61 = por %p59, %p60
      %p62 = scmp.ne.s32.totalorder %s54, %s56
      %p63 = scmp.eq.s32.totalorder %s13, 15
      %p64 = por %p62, %p63
      %p65 = scmp.ne.s32.totalorder %s56, %s57
      %p66 = scmp.eq.s32.totalorder %s13, 0
      %p67 = por %p65, %p66
      %p68 = scmp.ne.s32.totalorder %s56, %s57
      %p69 = scmp.eq.s32.totalorder %s14, 15
      %p70 = por %p68, %p69
      %p72 = scmp.ne.s32.totalorder %s57, %s71
      %p73 = scmp.eq.s32.totalorder %s14, 0
      %p74 = por %p72, %p73
      %s75 = ssub.s32 %s15, %s27
      %p76 = scmp.eq.s32.totalorder %s75, 0
      %s78 = sadd.s32 %s77, 1
      %s79 = scalar_select %p76, %s77, %s78
      %p82 = pneg %p76
      %p83 = scmp.eq.s32.totalorder %s8, 15
      %p84 = por %p82, %p83
      %p85 = scmp.ne.s32.totalorder %s77, %s80
      %p86 = scmp.eq.s32.totalorder %s8, 0
      %p87 = por %p85, %p86
      %p88 = scmp.ne.s32.totalorder %s77, %s80
      %p89 = scmp.eq.s32.totalorder %s13, 15
      %p90 = por %p88, %p89
      %p91 = scmp.ne.s32.totalorder %s80, %s81
      %p92 = scmp.eq.s32.totalorder %s13, 0
      %p93 = por %p91, %p92
      %p94 = scmp.ne.s32.totalorder %s80, %s81
      %p95 = scmp.eq.s32.totalorder %s14, 15
      %p96 = por %p94, %p95
      %p98 = scmp.ne.s32.totalorder %s81, %s97
      %p99 = scmp.eq.s32.totalorder %s14, 0
      %p100 = por %p98, %p99
      %p101 = scmp.le.s32.totalorder 1, %s8
      %p102 = scmp.lt.s32.totalorder %s8, 17
      %p103 = pnand %p101, %p102
      %p104 = pneg %p103
      // Predicated region
      $region9: #{_combined_loss_impl.7} parent=5 // pred_check
        _
      $region10: #{_combined_loss_impl.7} parent=5 // pred_check_branch
        %106 = sbr.rel (%p103) target = $region12
      $region11: #{_combined_loss_impl.7} parent=5 // pred_region
        %s107 = ssub.s32 %s8, 1
        // Predicated region
        $region13: #{_combined_loss_impl.7} parent=11 // pred_check
          %p108 = pneg %p67
        $region14: #{_combined_loss_impl.7} parent=11 // pred_check_branch
          %110 = sbr.rel (%p108) target = $region16
        $region15: #{_combined_loss_impl.7} parent=11 // pred_region
          _
        $region16: #{_combined_loss_impl.7} parent=11 // pred_fallthru
          _
      $region12: #{_combined_loss_impl.7} parent=5 // pred_fallthru
        _
      %p111 = scmp.lt.s32.totalorder %s8, 16
      // Predicated region
      $region17: #{_combined_loss_impl.7} parent=5 // pred_check
        %p112 = pneg %p111
      $region18: #{_combined_loss_impl.7} parent=5 // pred_check_branch
        %114 = sbr.rel (%p112) target = $region20
      $region19: #{_combined_loss_impl.7} parent=5 // pred_region
        // Predicated region
        $region21: #{_combined_loss_impl.7} parent=19 // pred_check
          %p115 = pneg %p40
        $region22: #{_combined_loss_impl.7} parent=19 // pred_check_branch
          %117 = sbr.rel (%p115) target = $region24
        $region23: #{_combined_loss_impl.7} parent=19 // pred_region
          %s118 = sand.u32 %s30, 1
          %s119 = sand.u32 %s30, 1
          %s120 = smul.addr %s119, 256
          %s121 = scalar_lea.vmem [#allocation5], %s120
          %s122 = smul.u32 2, %s15
          %s123 = smul.addr %s122, 16
          %s124 = smul.addr %s123, 4
          %s125 = scalar_lea.vmem %s0, %s124
          // Predicated region
          $region25: #{_combined_loss_impl.7} parent=23 // pred_check
            _
          $region26: #{_combined_loss_impl.7} parent=23 // pred_check_branch
            %127 = sbr.rel (0) target = $region28
          $region27: #{_combined_loss_impl.7} parent=23 // pred_region
            // Predicated region
            $region29: #{_combined_loss_impl.7} parent=27 // pred_check
              _
            $region30: #{_combined_loss_impl.7} parent=27 // pred_check_branch
              %129 = sbr.rel (0) target = $region32
            $region31: #{_combined_loss_impl.7} parent=27 // pred_region
              loop: start=0, step=1, limit=1
              $region33: #{_combined_loss_impl.7} parent=31 // loop_pre_header
                _
              $region34: #{_combined_loss_impl.7} parent=31 // loop_header
                %s131 = sphi 0, %s135
                %p132 = scmp.ge.s32.totalorder %s131, 1
                %s136 = sphi %s125, %s125
                %s137 = sphi %s121, %s121
              $region35: #{_combined_loss_impl.7} parent=31 // loop_header_branch
                %134 = sbr.rel (%p132) target = $region39
              $region36: #{_combined_loss_impl.7} parent=31 // loop_body
                %v138 = vld [vmem:[%s136] sm:$0xff]
                %139 = vst [vmem:[%s137] sm:$0xff] %v138
                %v140 = vld [vmem:[%s136 + $0x8] sm:$0xff]
                %141 = vst [vmem:[%s137 + $0x8] sm:$0xff] %v140
                %v142 = vld [vmem:[%s136 + $0x10] sm:$0xff]
                %143 = vst [vmem:[%s137 + $0x10] sm:$0xff] %v142
                %v144 = vld [vmem:[%s136 + $0x18] sm:$0xff]
                %145 = vst [vmem:[%s137 + $0x18] sm:$0xff] %v144
                %v146 = vld [vmem:[%s136 + $0x20] sm:$0xff]
                %147 = vst [vmem:[%s137 + $0x20] sm:$0xff] %v146
                %v148 = vld [vmem:[%s136 + $0x28] sm:$0xff]
                %149 = vst [vmem:[%s137 + $0x28] sm:$0xff] %v148
                %v150 = vld [vmem:[%s136 + $0x30] sm:$0xff]
                %151 = vst [vmem:[%s137 + $0x30] sm:$0xff] %v150
                %v152 = vld [vmem:[%s136 + $0x38] sm:$0xff]
                %153 = vst [vmem:[%s137 + $0x38] sm:$0xff] %v152
                %v154 = vld [vmem:[%s136 + $0x40] sm:$0xff]
                %155 = vst [vmem:[%s137 + $0x40] sm:$0xff] %v154
                %v156 = vld [vmem:[%s136 + $0x48] sm:$0xff]
                %157 = vst [vmem:[%s137 + $0x48] sm:$0xff] %v156
                %v158 = vld [vmem:[%s136 + $0x50] sm:$0xff]
                %159 = vst [vmem:[%s137 + $0x50] sm:$0xff] %v158
                %v160 = vld [vmem:[%s136 + $0x58] sm:$0xff]
                %161 = vst [vmem:[%s137 + $0x58] sm:$0xff] %v160
                %v162 = vld [vmem:[%s136 + $0x60] sm:$0xff]
                %163 = vst [vmem:[%s137 + $0x60] sm:$0xff] %v162
                %v164 = vld [vmem:[%s136 + $0x68] sm:$0xff]
                %165 = vst [vmem:[%s137 + $0x68] sm:$0xff] %v164
                %v166 = vld [vmem:[%s136 + $0x70] sm:$0xff]
                %167 = vst [vmem:[%s137 + $0x70] sm:$0xff] %v166
                %v168 = vld [vmem:[%s136 + $0x78] sm:$0xff]
                %169 = vst [vmem:[%s137 + $0x78] sm:$0xff] %v168
                %v170 = vld [vmem:[%s136 + $0x100] sm:$0xff]
                %171 = vst [vmem:[%s137 + $0x80] sm:$0xff] %v170
                %v172 = vld [vmem:[%s136 + $0x108] sm:$0xff]
                %173 = vst [vmem:[%s137 + $0x88] sm:$0xff] %v172
                %v174 = vld [vmem:[%s136 + $0x110] sm:$0xff]
                %175 = vst [vmem:[%s137 + $0x90] sm:$0xff] %v174
                %v176 = vld [vmem:[%s136 + $0x118] sm:$0xff]
                %177 = vst [vmem:[%s137 + $0x98] sm:$0xff] %v176
                %v178 = vld [vmem:[%s136 + $0x120] sm:$0xff]
                %179 = vst [vmem:[%s137 + $0xa0] sm:$0xff] %v178
                %v180 = vld [vmem:[%s136 + $0x128] sm:$0xff]
                %181 = vst [vmem:[%s137 + $0xa8] sm:$0xff] %v180
                %v182 = vld [vmem:[%s136 + $0x130] sm:$0xff]
                %183 = vst [vmem:[%s137 + $0xb0] sm:$0xff] %v182
                %v184 = vld [vmem:[%s136 + $0x138] sm:$0xff]
                %185 = vst [vmem:[%s137 + $0xb8] sm:$0xff] %v184
                %v186 = vld [vmem:[%s136 + $0x140] sm:$0xff]
                %187 = vst [vmem:[%s137 + $0xc0] sm:$0xff] %v186
                %v188 = vld [vmem:[%s136 + $0x148] sm:$0xff]
                %189 = vst [vmem:[%s137 + $0xc8] sm:$0xff] %v188
                %v190 = vld [vmem:[%s136 + $0x150] sm:$0xff]
                %191 = vst [vmem:[%s137 + $0xd0] sm:$0xff] %v190
                %v192 = vld [vmem:[%s136 + $0x158] sm:$0xff]
                %193 = vst [vmem:[%s137 + $0xd8] sm:$0xff] %v192
                %v194 = vld [vmem:[%s136 + $0x160] sm:$0xff]
                %195 = vst [vmem:[%s137 + $0xe0] sm:$0xff] %v194
                %v196 = vld [vmem:[%s136 + $0x168] sm:$0xff]
                %197 = vst [vmem:[%s137 + $0xe8] sm:$0xff] %v196
                %v198 = vld [vmem:[%s136 + $0x170] sm:$0xff]
                %199 = vst [vmem:[%s137 + $0xf0] sm:$0xff] %v198
                %v200 = vld [vmem:[%s136 + $0x178] sm:$0xff]
                %201 = vst [vmem:[%s137 + $0xf8] sm:$0xff] %v200
              $region37: #{_combined_loss_impl.7} parent=31 // loop_footer
                %s135 = sadd.s32 1, %s131
              $region38: #{_combined_loss_impl.7} parent=31 // loop_footer_branch
                %130 = sbr.rel target = $region34
              $region39: #{_combined_loss_impl.7} parent=31 // loop_exit
                _
            $region32: #{_combined_loss_impl.7} parent=27 // pred_fallthru
              _
            // Predicated region
            $region40: #{_combined_loss_impl.7} parent=27 // pred_check
              _
            $region41: #{_combined_loss_impl.7} parent=27 // pred_check_branch
              %203 = sbr.rel target = $region43
            $region42: #{_combined_loss_impl.7} parent=27 // pred_region
              _
            $region43: #{_combined_loss_impl.7} parent=27 // pred_fallthru
              _
          $region28: #{_combined_loss_impl.7} parent=23 // pred_fallthru
            _
          %204 = vnop
        $region24: #{_combined_loss_impl.7} parent=19 // pred_fallthru
          _
      $region20: #{_combined_loss_impl.7} parent=5 // pred_fallthru
        _
      %p205 = scmp.le.s32.totalorder 1, %s8
      %p206 = scmp.lt.s32.totalorder %s8, 17
      %p207 = pnand %p205, %p206
      %p208 = pneg %p207
      // Predicated region
      $region44: #{_combined_loss_impl.7} parent=5 // pred_check
        _
      $region45: #{_combined_loss_impl.7} parent=5 // pred_check_branch
        %210 = sbr.rel (%p207) target = $region47
      $region46: #{_combined_loss_impl.7} parent=5 // pred_region
        %s211 = ssub.s32 %s8, 1
        %s212 = sand.u32 %s33, 1
        %s213 = sand.u32 %s33, 1
        %s214 = smul.addr %s213, 256
        %s215 = scalar_lea.vmem [#allocation5], %s214
        // Predicated region
        $region48: #{_combined_loss_impl.7} parent=46 // pred_check
          %p216 = pneg %p46
        $region49: #{_combined_loss_impl.7} parent=46 // pred_check_branch
          %218 = sbr.rel (%p216) target = $region51
        $region50: #{_combined_loss_impl.7} parent=46 // pred_region
          _
        $region51: #{_combined_loss_impl.7} parent=46 // pred_fallthru
          _
        %s219 = sand.u32 %s33, 1
        %s220 = sand.u32 %s33, 1
        %s221 = smul.addr %s220, 256
        %s222 = scalar_lea.vmem [#allocation5], %s221
        %p223 = pneg %p46
        %p224 = pneg %p43
        %p225 = pneg %p67
        %p226 = pneg %p64
        %p227 = pneg %p93
        %p228 = pneg %p90
        %p229 = scmp.lt.s32.totalorder %s17, 1
        %s230 = scalar_select %p229, %s17, 1
        %s231 = smul.addr %s230, 8
        %s232 = scalar_lea.vmem %s2, %s231
        %s233 = smul.u32 2, %s17
        %p234 = scmp.lt.s32.totalorder %s17, 1
        %s235 = scalar_select %p234, %s17, 1
        %s236 = smul.addr %s235, 8
        %s237 = scalar_lea.vmem %s2, %s236
        %p238 = scmp.eq.s32.totalorder %s18, 0
        // Predicated region
        $region52: #{_combined_loss_impl.7} parent=46 // pred_check
          %p239 = pneg %p238
        $region53: #{_combined_loss_impl.7} parent=46 // pred_check_branch
          %241 = sbr.rel (%p239) target = $region55
        $region54: #{_combined_loss_impl.7} parent=46 // pred_region
          %242 = vst [vmem:[#allocation2] sm:$0xff] 0.0
          %243 = vst [vmem:[#allocation2 + $0x8] sm:$0xff] 0.0
          %244 = vst [vmem:[#allocation3] sm:$0xff] 0.0
          %245 = vst [vmem:[#allocation3 + $0x8] sm:$0xff] 0.0
          %246 = vst [vmem:[#allocation4] sm:$0xff] 0.0
          %247 = vst [vmem:[#allocation4 + $0x8] sm:$0xff] 0.0
        $region55: #{_combined_loss_impl.7} parent=46 // pred_fallthru
          _
        %s248 = smul.u32 %s18, 512
        %s249 = smul.addr %s248, 4
        %s250 = scalar_lea.vmem %s1, %s249
        %v251 = vld [vmem:[%s250] sm:$0xff]
        %v252 = vld [vmem:[%s250 + $0x8] sm:$0xff]
        %v253 = vld [vmem:[%s250 + $0x10] sm:$0xff]
        %v254 = vld [vmem:[%s250 + $0x18] sm:$0xff]
        %v255 = vld [vmem:[%s250 + $0x20] sm:$0xff]
        %v256 = vld [vmem:[%s250 + $0x28] sm:$0xff]
        %v257 = vld [vmem:[%s250 + $0x30] sm:$0xff]
        %v258 = vld [vmem:[%s250 + $0x38] sm:$0xff]
        %v259 = vld [vmem:[%s250 + $0x40] sm:$0xff]
        %v260 = vld [vmem:[%s250 + $0x48] sm:$0xff]
        %v261 = vld [vmem:[%s250 + $0x50] sm:$0xff]
        %v262 = vld [vmem:[%s250 + $0x58] sm:$0xff]
        %v263 = vld [vmem:[%s250 + $0x60] sm:$0xff]
        %v264 = vld [vmem:[%s250 + $0x68] sm:$0xff]
        %v265 = vld [vmem:[%s250 + $0x70] sm:$0xff]
        %v266 = vld [vmem:[%s250 + $0x78] sm:$0xff]
        %v267 = vld [vmem:[%s250 + $0x80] sm:$0xff]
        %v268 = vld [vmem:[%s250 + $0x88] sm:$0xff]
        %v269 = vld [vmem:[%s250 + $0x90] sm:$0xff]
        %v270 = vld [vmem:[%s250 + $0x98] sm:$0xff]
        %v271 = vld [vmem:[%s250 + $0xa0] sm:$0xff]
        %v272 = vld [vmem:[%s250 + $0xa8] sm:$0xff]
        %v273 = vld [vmem:[%s250 + $0xb0] sm:$0xff]
        %v274 = vld [vmem:[%s250 + $0xb8] sm:$0xff]
        %v275 = vld [vmem:[%s250 + $0xc0] sm:$0xff]
        %v276 = vld [vmem:[%s250 + $0xc8] sm:$0xff]
        %v277 = vld [vmem:[%s250 + $0xd0] sm:$0xff]
        %v278 = vld [vmem:[%s250 + $0xd8] sm:$0xff]
        %v279 = vld [vmem:[%s250 + $0xe0] sm:$0xff]
        %v280 = vld [vmem:[%s250 + $0xe8] sm:$0xff]
        %v281 = vld [vmem:[%s250 + $0xf0] sm:$0xff]
        %v282 = vld [vmem:[%s250 + $0xf8] sm:$0xff]
        %v283 = vld [vmem:[%s250 + $0x100] sm:$0xff]
        %v284 = vld [vmem:[%s250 + $0x108] sm:$0xff]
        %v285 = vld [vmem:[%s250 + $0x110] sm:$0xff]
        %v286 = vld [vmem:[%s250 + $0x118] sm:$0xff]
        %v287 = vld [vmem:[%s250 + $0x120] sm:$0xff]
        %v288 = vld [vmem:[%s250 + $0x128] sm:$0xff]
        %v289 = vld [vmem:[%s250 + $0x130] sm:$0xff]
        %v290 = vld [vmem:[%s250 + $0x138] sm:$0xff]
        %v291 = vld [vmem:[%s250 + $0x140] sm:$0xff]
        %v292 = vld [vmem:[%s250 + $0x148] sm:$0xff]
        %v293 = vld [vmem:[%s250 + $0x150] sm:$0xff]
        %v294 = vld [vmem:[%s250 + $0x158] sm:$0xff]
        %v295 = vld [vmem:[%s250 + $0x160] sm:$0xff]
        %v296 = vld [vmem:[%s250 + $0x168] sm:$0xff]
        %v297 = vld [vmem:[%s250 + $0x170] sm:$0xff]
        %v298 = vld [vmem:[%s250 + $0x178] sm:$0xff]
        %v299 = vld [vmem:[%s250 + $0x180] sm:$0xff]
        %v300 = vld [vmem:[%s250 + $0x188] sm:$0xff]
        %v301 = vld [vmem:[%s250 + $0x190] sm:$0xff]
        %v302 = vld [vmem:[%s250 + $0x198] sm:$0xff]
        %v303 = vld [vmem:[%s250 + $0x1a0] sm:$0xff]
        %v304 = vld [vmem:[%s250 + $0x1a8] sm:$0xff]
        %v305 = vld [vmem:[%s250 + $0x1b0] sm:$0xff]
        %v306 = vld [vmem:[%s250 + $0x1b8] sm:$0xff]
        %v307 = vld [vmem:[%s250 + $0x1c0] sm:$0xff]
        %v308 = vld [vmem:[%s250 + $0x1c8] sm:$0xff]
        %v309 = vld [vmem:[%s250 + $0x1d0] sm:$0xff]
        %v310 = vld [vmem:[%s250 + $0x1d8] sm:$0xff]
        %v311 = vld [vmem:[%s250 + $0x1e0] sm:$0xff]
        %v312 = vld [vmem:[%s250 + $0x1e8] sm:$0xff]
        %v313 = vld [vmem:[%s250 + $0x1f0] sm:$0xff]
        %v314 = vld [vmem:[%s250 + $0x1f8] sm:$0xff]
        %v315 = vld [vmem:[%s250 + $0x200] sm:$0xff]
        %v316 = vld [vmem:[%s250 + $0x208] sm:$0xff]
        %v317 = vld [vmem:[%s250 + $0x210] sm:$0xff]
        %v318 = vld [vmem:[%s250 + $0x218] sm:$0xff]
        %v319 = vld [vmem:[%s250 + $0x220] sm:$0xff]
        %v320 = vld [vmem:[%s250 + $0x228] sm:$0xff]
        %v321 = vld [vmem:[%s250 + $0x230] sm:$0xff]
        %v322 = vld [vmem:[%s250 + $0x238] sm:$0xff]
        %v323 = vld [vmem:[%s250 + $0x240] sm:$0xff]
        %v324 = vld [vmem:[%s250 + $0x248] sm:$0xff]
        %v325 = vld [vmem:[%s250 + $0x250] sm:$0xff]
        %v326 = vld [vmem:[%s250 + $0x258] sm:$0xff]
        %v327 = vld [vmem:[%s250 + $0x260] sm:$0xff]
        %v328 = vld [vmem:[%s250 + $0x268] sm:$0xff]
        %v329 = vld [vmem:[%s250 + $0x270] sm:$0xff]
        %v330 = vld [vmem:[%s250 + $0x278] sm:$0xff]
        %v331 = vld [vmem:[%s250 + $0x280] sm:$0xff]
        %v332 = vld [vmem:[%s250 + $0x288] sm:$0xff]
        %v333 = vld [vmem:[%s250 + $0x290] sm:$0xff]
        %v334 = vld [vmem:[%s250 + $0x298] sm:$0xff]
        %v335 = vld [vmem:[%s250 + $0x2a0] sm:$0xff]
        %v336 = vld [vmem:[%s250 + $0x2a8] sm:$0xff]
        %v337 = vld [vmem:[%s250 + $0x2b0] sm:$0xff]
        %v338 = vld [vmem:[%s250 + $0x2b8] sm:$0xff]
        %v339 = vld [vmem:[%s250 + $0x2c0] sm:$0xff]
        %v340 = vld [vmem:[%s250 + $0x2c8] sm:$0xff]
        %v341 = vld [vmem:[%s250 + $0x2d0] sm:$0xff]
        %v342 = vld [vmem:[%s250 + $0x2d8] sm:$0xff]
        %v343 = vld [vmem:[%s250 + $0x2e0] sm:$0xff]
        %v344 = vld [vmem:[%s250 + $0x2e8] sm:$0xff]
        %v345 = vld [vmem:[%s250 + $0x2f0] sm:$0xff]
        %v346 = vld [vmem:[%s250 + $0x2f8] sm:$0xff]
        %v347 = vld [vmem:[%s250 + $0x300] sm:$0xff]
        %v348 = vld [vmem:[%s250 + $0x308] sm:$0xff]
        %v349 = vld [vmem:[%s250 + $0x310] sm:$0xff]
        %v350 = vld [vmem:[%s250 + $0x318] sm:$0xff]
        %v351 = vld [vmem:[%s250 + $0x320] sm:$0xff]
        %v352 = vld [vmem:[%s250 + $0x328] sm:$0xff]
        %v353 = vld [vmem:[%s250 + $0x330] sm:$0xff]
        %v354 = vld [vmem:[%s250 + $0x338] sm:$0xff]
        %v355 = vld [vmem:[%s250 + $0x340] sm:$0xff]
        %v356 = vld [vmem:[%s250 + $0x348] sm:$0xff]
        %v357 = vld [vmem:[%s250 + $0x350] sm:$0xff]
        %v358 = vld [vmem:[%s250 + $0x358] sm:$0xff]
        %v359 = vld [vmem:[%s250 + $0x360] sm:$0xff]
        %v360 = vld [vmem:[%s250 + $0x368] sm:$0xff]
        %v361 = vld [vmem:[%s250 + $0x370] sm:$0xff]
        %v362 = vld [vmem:[%s250 + $0x378] sm:$0xff]
        %v363 = vld [vmem:[%s250 + $0x380] sm:$0xff]
        %v364 = vld [vmem:[%s250 + $0x388] sm:$0xff]
        %v365 = vld [vmem:[%s250 + $0x390] sm:$0xff]
        %v366 = vld [vmem:[%s250 + $0x398] sm:$0xff]
        %v367 = vld [vmem:[%s250 + $0x3a0] sm:$0xff]
        %v368 = vld [vmem:[%s250 + $0x3a8] sm:$0xff]
        %v369 = vld [vmem:[%s250 + $0x3b0] sm:$0xff]
        %v370 = vld [vmem:[%s250 + $0x3b8] sm:$0xff]
        %v371 = vld [vmem:[%s250 + $0x3c0] sm:$0xff]
        %v372 = vld [vmem:[%s250 + $0x3c8] sm:$0xff]
        %v373 = vld [vmem:[%s250 + $0x3d0] sm:$0xff]
        %v374 = vld [vmem:[%s250 + $0x3d8] sm:$0xff]
        %v375 = vld [vmem:[%s250 + $0x3e0] sm:$0xff]
        %v376 = vld [vmem:[%s250 + $0x3e8] sm:$0xff]
        %v377 = vld [vmem:[%s250 + $0x3f0] sm:$0xff]
        %v378 = vld [vmem:[%s250 + $0x3f8] sm:$0xff]
        %v379 = vld [vmem:[%s250 + $0x400] sm:$0xff]
        %v380 = vld [vmem:[%s250 + $0x408] sm:$0xff]
        %v381 = vld [vmem:[%s250 + $0x410] sm:$0xff]
        %v382 = vld [vmem:[%s250 + $0x418] sm:$0xff]
        %v383 = vld [vmem:[%s250 + $0x420] sm:$0xff]
        %v384 = vld [vmem:[%s250 + $0x428] sm:$0xff]
        %v385 = vld [vmem:[%s250 + $0x430] sm:$0xff]
        %v386 = vld [vmem:[%s250 + $0x438] sm:$0xff]
        %v387 = vld [vmem:[%s250 + $0x440] sm:$0xff]
        %v388 = vld [vmem:[%s250 + $0x448] sm:$0xff]
        %v389 = vld [vmem:[%s250 + $0x450] sm:$0xff]
        %v390 = vld [vmem:[%s250 + $0x458] sm:$0xff]
        %v391 = vld [vmem:[%s250 + $0x460] sm:$0xff]
        %v392 = vld [vmem:[%s250 + $0x468] sm:$0xff]
        %v393 = vld [vmem:[%s250 + $0x470] sm:$0xff]
        %v394 = vld [vmem:[%s250 + $0x478] sm:$0xff]
        %v395 = vld [vmem:[%s250 + $0x480] sm:$0xff]
        %v396 = vld [vmem:[%s250 + $0x488] sm:$0xff]
        %v397 = vld [vmem:[%s250 + $0x490] sm:$0xff]
        %v398 = vld [vmem:[%s250 + $0x498] sm:$0xff]
        %v399 = vld [vmem:[%s250 + $0x4a0] sm:$0xff]
        %v400 = vld [vmem:[%s250 + $0x4a8] sm:$0xff]
        %v401 = vld [vmem:[%s250 + $0x4b0] sm:$0xff]
        %v402 = vld [vmem:[%s250 + $0x4b8] sm:$0xff]
        %v403 = vld [vmem:[%s250 + $0x4c0] sm:$0xff]
        %v404 = vld [vmem:[%s250 + $0x4c8] sm:$0xff]
        %v405 = vld [vmem:[%s250 + $0x4d0] sm:$0xff]
        %v406 = vld [vmem:[%s250 + $0x4d8] sm:$0xff]
        %v407 = vld [vmem:[%s250 + $0x4e0] sm:$0xff]
        %v408 = vld [vmem:[%s250 + $0x4e8] sm:$0xff]
        %v409 = vld [vmem:[%s250 + $0x4f0] sm:$0xff]
        %v410 = vld [vmem:[%s250 + $0x4f8] sm:$0xff]
        %v411 = vld [vmem:[%s250 + $0x500] sm:$0xff]
        %v412 = vld [vmem:[%s250 + $0x508] sm:$0xff]
        %v413 = vld [vmem:[%s250 + $0x510] sm:$0xff]
        %v414 = vld [vmem:[%s250 + $0x518] sm:$0xff]
        %v415 = vld [vmem:[%s250 + $0x520] sm:$0xff]
        %v416 = vld [vmem:[%s250 + $0x528] sm:$0xff]
        %v417 = vld [vmem:[%s250 + $0x530] sm:$0xff]
        %v418 = vld [vmem:[%s250 + $0x538] sm:$0xff]
        %v419 = vld [vmem:[%s250 + $0x540] sm:$0xff]
        %v420 = vld [vmem:[%s250 + $0x548] sm:$0xff]
        %v421 = vld [vmem:[%s250 + $0x550] sm:$0xff]
        %v422 = vld [vmem:[%s250 + $0x558] sm:$0xff]
        %v423 = vld [vmem:[%s250 + $0x560] sm:$0xff]
        %v424 = vld [vmem:[%s250 + $0x568] sm:$0xff]
        %v425 = vld [vmem:[%s250 + $0x570] sm:$0xff]
        %v426 = vld [vmem:[%s250 + $0x578] sm:$0xff]
        %v427 = vld [vmem:[%s250 + $0x580] sm:$0xff]
        %v428 = vld [vmem:[%s250 + $0x588] sm:$0xff]
        %v429 = vld [vmem:[%s250 + $0x590] sm:$0xff]
        %v430 = vld [vmem:[%s250 + $0x598] sm:$0xff]
        %v431 = vld [vmem:[%s250 + $0x5a0] sm:$0xff]
        %v432 = vld [vmem:[%s250 + $0x5a8] sm:$0xff]
        %v433 = vld [vmem:[%s250 + $0x5b0] sm:$0xff]
        %v434 = vld [vmem:[%s250 + $0x5b8] sm:$0xff]
        %v435 = vld [vmem:[%s250 + $0x5c0] sm:$0xff]
        %v436 = vld [vmem:[%s250 + $0x5c8] sm:$0xff]
        %v437 = vld [vmem:[%s250 + $0x5d0] sm:$0xff]
        %v438 = vld [vmem:[%s250 + $0x5d8] sm:$0xff]
        %v439 = vld [vmem:[%s250 + $0x5e0] sm:$0xff]
        %v440 = vld [vmem:[%s250 + $0x5e8] sm:$0xff]
        %v441 = vld [vmem:[%s250 + $0x5f0] sm:$0xff]
        %v442 = vld [vmem:[%s250 + $0x5f8] sm:$0xff]
        %v443 = vld [vmem:[%s250 + $0x600] sm:$0xff]
        %v444 = vld [vmem:[%s250 + $0x608] sm:$0xff]
        %v445 = vld [vmem:[%s250 + $0x610] sm:$0xff]
        %v446 = vld [vmem:[%s250 + $0x618] sm:$0xff]
        %v447 = vld [vmem:[%s250 + $0x620] sm:$0xff]
        %v448 = vld [vmem:[%s250 + $0x628] sm:$0xff]
        %v449 = vld [vmem:[%s250 + $0x630] sm:$0xff]
        %v450 = vld [vmem:[%s250 + $0x638] sm:$0xff]
        %v451 = vld [vmem:[%s250 + $0x640] sm:$0xff]
        %v452 = vld [vmem:[%s250 + $0x648] sm:$0xff]
        %v453 = vld [vmem:[%s250 + $0x650] sm:$0xff]
        %v454 = vld [vmem:[%s250 + $0x658] sm:$0xff]
        %v455 = vld [vmem:[%s250 + $0x660] sm:$0xff]
        %v456 = vld [vmem:[%s250 + $0x668] sm:$0xff]
        %v457 = vld [vmem:[%s250 + $0x670] sm:$0xff]
        %v458 = vld [vmem:[%s250 + $0x678] sm:$0xff]
        %v459 = vld [vmem:[%s250 + $0x680] sm:$0xff]
        %v460 = vld [vmem:[%s250 + $0x688] sm:$0xff]
        %v461 = vld [vmem:[%s250 + $0x690] sm:$0xff]
        %v462 = vld [vmem:[%s250 + $0x698] sm:$0xff]
        %v463 = vld [vmem:[%s250 + $0x6a0] sm:$0xff]
        %v464 = vld [vmem:[%s250 + $0x6a8] sm:$0xff]
        %v465 = vld [vmem:[%s250 + $0x6b0] sm:$0xff]
        %v466 = vld [vmem:[%s250 + $0x6b8] sm:$0xff]
        %v467 = vld [vmem:[%s250 + $0x6c0] sm:$0xff]
        %v468 = vld [vmem:[%s250 + $0x6c8] sm:$0xff]
        %v469 = vld [vmem:[%s250 + $0x6d0] sm:$0xff]
        %v470 = vld [vmem:[%s250 + $0x6d8] sm:$0xff]
        %v471 = vld [vmem:[%s250 + $0x6e0] sm:$0xff]
        %v472 = vld [vmem:[%s250 + $0x6e8] sm:$0xff]
        %v473 = vld [vmem:[%s250 + $0x6f0] sm:$0xff]
        %v474 = vld [vmem:[%s250 + $0x6f8] sm:$0xff]
        %v475 = vld [vmem:[%s250 + $0x700] sm:$0xff]
        %v476 = vld [vmem:[%s250 + $0x708] sm:$0xff]
        %v477 = vld [vmem:[%s250 + $0x710] sm:$0xff]
        %v478 = vld [vmem:[%s250 + $0x718] sm:$0xff]
        %v479 = vld [vmem:[%s250 + $0x720] sm:$0xff]
        %v480 = vld [vmem:[%s250 + $0x728] sm:$0xff]
        %v481 = vld [vmem:[%s250 + $0x730] sm:$0xff]
        %v482 = vld [vmem:[%s250 + $0x738] sm:$0xff]
        %v483 = vld [vmem:[%s250 + $0x740] sm:$0xff]
        %v484 = vld [vmem:[%s250 + $0x748] sm:$0xff]
        %v485 = vld [vmem:[%s250 + $0x750] sm:$0xff]
        %v486 = vld [vmem:[%s250 + $0x758] sm:$0xff]
        %v487 = vld [vmem:[%s250 + $0x760] sm:$0xff]
        %v488 = vld [vmem:[%s250 + $0x768] sm:$0xff]
        %v489 = vld [vmem:[%s250 + $0x770] sm:$0xff]
        %v490 = vld [vmem:[%s250 + $0x778] sm:$0xff]
        %v491 = vld [vmem:[%s250 + $0x780] sm:$0xff]
        %v492 = vld [vmem:[%s250 + $0x788] sm:$0xff]
        %v493 = vld [vmem:[%s250 + $0x790] sm:$0xff]
        %v494 = vld [vmem:[%s250 + $0x798] sm:$0xff]
        %v495 = vld [vmem:[%s250 + $0x7a0] sm:$0xff]
        %v496 = vld [vmem:[%s250 + $0x7a8] sm:$0xff]
        %v497 = vld [vmem:[%s250 + $0x7b0] sm:$0xff]
        %v498 = vld [vmem:[%s250 + $0x7b8] sm:$0xff]
        %v499 = vld [vmem:[%s250 + $0x7c0] sm:$0xff]
        %v500 = vld [vmem:[%s250 + $0x7c8] sm:$0xff]
        %v501 = vld [vmem:[%s250 + $0x7d0] sm:$0xff]
        %v502 = vld [vmem:[%s250 + $0x7d8] sm:$0xff]
        %v503 = vld [vmem:[%s250 + $0x7e0] sm:$0xff]
        %v504 = vld [vmem:[%s250 + $0x7e8] sm:$0xff]
        %v505 = vld [vmem:[%s250 + $0x7f0] sm:$0xff]
        %v506 = vld [vmem:[%s250 + $0x7f8] sm:$0xff]
        %v507 = vld [vmem:[%s215] sm:$0xff]
        %v508 = vld [vmem:[%s215 + $0x8] sm:$0xff]
        %v509 = vld [vmem:[%s215 + $0x10] sm:$0xff]
        %v510 = vld [vmem:[%s215 + $0x18] sm:$0xff]
        %v511 = vld [vmem:[%s215 + $0x20] sm:$0xff]
        %v512 = vld [vmem:[%s215 + $0x28] sm:$0xff]
        %v513 = vld [vmem:[%s215 + $0x30] sm:$0xff]
        %v514 = vld [vmem:[%s215 + $0x38] sm:$0xff]
        %v515 = vld [vmem:[%s215 + $0x40] sm:$0xff]
        %v516 = vld [vmem:[%s215 + $0x48] sm:$0xff]
        %v517 = vld [vmem:[%s215 + $0x50] sm:$0xff]
        %v518 = vld [vmem:[%s215 + $0x58] sm:$0xff]
        %v519 = vld [vmem:[%s215 + $0x60] sm:$0xff]
        %v520 = vld [vmem:[%s215 + $0x68] sm:$0xff]
        %v521 = vld [vmem:[%s215 + $0x70] sm:$0xff]
        %v522 = vld [vmem:[%s215 + $0x78] sm:$0xff]
        %v539 = vunpack.c.l.b16 %v507
        %v540 = vunpack.c.h.b16 %v507
        %v541 = vunpack.c.l.b16 %v508
        %v542 = vunpack.c.h.b16 %v508
        %v543 = vunpack.c.l.b16 %v509
        %v544 = vunpack.c.h.b16 %v509
        %v545 = vunpack.c.l.b16 %v510
        %v546 = vunpack.c.h.b16 %v510
        %v547 = vunpack.c.l.b16 %v511
        %v548 = vunpack.c.h.b16 %v511
        %v549 = vunpack.c.l.b16 %v512
        %v550 = vunpack.c.h.b16 %v512
        %v551 = vunpack.c.l.b16 %v513
        %v552 = vunpack.c.h.b16 %v513
        %v553 = vunpack.c.l.b16 %v514
        %v554 = vunpack.c.h.b16 %v514
        %v555 = vunpack.c.l.b16 %v515
        %v556 = vunpack.c.h.b16 %v515
        %v557 = vunpack.c.l.b16 %v516
        %v558 = vunpack.c.h.b16 %v516
        %v559 = vunpack.c.l.b16 %v517
        %v560 = vunpack.c.h.b16 %v517
        %v561 = vunpack.c.l.b16 %v518
        %v562 = vunpack.c.h.b16 %v518
        %v563 = vunpack.c.l.b16 %v519
        %v564 = vunpack.c.h.b16 %v519
        %v565 = vunpack.c.l.b16 %v520
        %v566 = vunpack.c.h.b16 %v520
        %v567 = vunpack.c.l.b16 %v521
        %v568 = vunpack.c.h.b16 %v521
        %v569 = vunpack.c.l.b16 %v522
        %v570 = vunpack.c.h.b16 %v522
        %v571 = vpack.c.b16 %v555, %v539
        %v572 = vpack.c.b16 %v556, %v540
        %v573 = vpack.c.b16 %v557, %v541
        %v574 = vpack.c.b16 %v558, %v542
        %v575 = vpack.c.b16 %v559, %v543
        %v576 = vpack.c.b16 %v560, %v544
        %v577 = vpack.c.b16 %v561, %v545
        %v578 = vpack.c.b16 %v562, %v546
        %v579 = vpack.c.b16 %v563, %v547
        %v580 = vpack.c.b16 %v564, %v548
        %v581 = vpack.c.b16 %v565, %v549
        %v582 = vpack.c.b16 %v566, %v550
        %v583 = vpack.c.b16 %v567, %v551
        %v584 = vpack.c.b16 %v568, %v552
        %v585 = vpack.c.b16 %v569, %v553
        %v586 = vpack.c.b16 %v570, %v554
        %v859 = vunpack.c.l.b16 %v251
        %v860 = vunpack.c.h.b16 %v251
        %v861 = vunpack.c.l.b16 %v252
        %v862 = vunpack.c.h.b16 %v252
        %v863 = vunpack.c.l.b16 %v253
        %v864 = vunpack.c.h.b16 %v253
        %v865 = vunpack.c.l.b16 %v254
        %v866 = vunpack.c.h.b16 %v254
        %v867 = vunpack.c.l.b16 %v255
        %v868 = vunpack.c.h.b16 %v255
        %v869 = vunpack.c.l.b16 %v256
        %v870 = vunpack.c.h.b16 %v256
        %v871 = vunpack.c.l.b16 %v257
        %v872 = vunpack.c.h.b16 %v257
        %v873 = vunpack.c.l.b16 %v258
        %v874 = vunpack.c.h.b16 %v258
        %v875 = vunpack.c.l.b16 %v259
        %v876 = vunpack.c.h.b16 %v259
        %v877 = vunpack.c.l.b16 %v260
        %v878 = vunpack.c.h.b16 %v260
        %v879 = vunpack.c.l.b16 %v261
        %v880 = vunpack.c.h.b16 %v261
        %v881 = vunpack.c.l.b16 %v262
        %v882 = vunpack.c.h.b16 %v262
        %v883 = vunpack.c.l.b16 %v263
        %v884 = vunpack.c.h.b16 %v263
        %v885 = vunpack.c.l.b16 %v264
        %v886 = vunpack.c.h.b16 %v264
        %v887 = vunpack.c.l.b16 %v265
        %v888 = vunpack.c.h.b16 %v265
        %v889 = vunpack.c.l.b16 %v266
        %v890 = vunpack.c.h.b16 %v266
        %v891 = vunpack.c.l.b16 %v267
        %v892 = vunpack.c.h.b16 %v267
        %v893 = vunpack.c.l.b16 %v268
        %v894 = vunpack.c.h.b16 %v268
        %v895 = vunpack.c.l.b16 %v269
        %v896 = vunpack.c.h.b16 %v269
        %v897 = vunpack.c.l.b16 %v270
        %v898 = vunpack.c.h.b16 %v270
        %v899 = vunpack.c.l.b16 %v271
        %v900 = vunpack.c.h.b16 %v271
        %v901 = vunpack.c.l.b16 %v272
        %v902 = vunpack.c.h.b16 %v272
        %v903 = vunpack.c.l.b16 %v273
        %v904 = vunpack.c.h.b16 %v273
        %v905 = vunpack.c.l.b16 %v274
        %v906 = vunpack.c.h.b16 %v274
        %v907 = vunpack.c.l.b16 %v275
        %v908 = vunpack.c.h.b16 %v275
        %v909 = vunpack.c.l.b16 %v276
        %v910 = vunpack.c.h.b16 %v276
        %v911 = vunpack.c.l.b16 %v277
        %v912 = vunpack.c.h.b16 %v277
        %v913 = vunpack.c.l.b16 %v278
        %v914 = vunpack.c.h.b16 %v278
        %v915 = vunpack.c.l.b16 %v279
        %v916 = vunpack.c.h.b16 %v279
        %v917 = vunpack.c.l.b16 %v280
        %v918 = vunpack.c.h.b16 %v280
        %v919 = vunpack.c.l.b16 %v281
        %v920 = vunpack.c.h.b16 %v281
        %v921 = vunpack.c.l.b16 %v282
        %v922 = vunpack.c.h.b16 %v282
        %v923 = vunpack.c.l.b16 %v283
        %v924 = vunpack.c.h.b16 %v283
        %v925 = vunpack.c.l.b16 %v284
        %v926 = vunpack.c.h.b16 %v284
        %v927 = vunpack.c.l.b16 %v285
        %v928 = vunpack.c.h.b16 %v285
        %v929 = vunpack.c.l.b16 %v286
        %v930 = vunpack.c.h.b16 %v286
        %v931 = vunpack.c.l.b16 %v287
        %v932 = vunpack.c.h.b16 %v287
        %v933 = vunpack.c.l.b16 %v288
        %v934 = vunpack.c.h.b16 %v288
        %v935 = vunpack.c.l.b16 %v289
        %v936 = vunpack.c.h.b16 %v289
        %v937 = vunpack.c.l.b16 %v290
        %v938 = vunpack.c.h.b16 %v290
        %v939 = vunpack.c.l.b16 %v291
        %v940 = vunpack.c.h.b16 %v291
        %v941 = vunpack.c.l.b16 %v292
        %v942 = vunpack.c.h.b16 %v292
        %v943 = vunpack.c.l.b16 %v293
        %v944 = vunpack.c.h.b16 %v293
        %v945 = vunpack.c.l.b16 %v294
        %v946 = vunpack.c.h.b16 %v294
        %v947 = vunpack.c.l.b16 %v295
        %v948 = vunpack.c.h.b16 %v295
        %v949 = vunpack.c.l.b16 %v296
        %v950 = vunpack.c.h.b16 %v296
        %v951 = vunpack.c.l.b16 %v297
        %v952 = vunpack.c.h.b16 %v297
        %v953 = vunpack.c.l.b16 %v298
        %v954 = vunpack.c.h.b16 %v298
        %v955 = vunpack.c.l.b16 %v299
        %v956 = vunpack.c.h.b16 %v299
        %v957 = vunpack.c.l.b16 %v300
        %v958 = vunpack.c.h.b16 %v300
        %v959 = vunpack.c.l.b16 %v301
        %v960 = vunpack.c.h.b16 %v301
        %v961 = vunpack.c.l.b16 %v302
        %v962 = vunpack.c.h.b16 %v302
        %v963 = vunpack.c.l.b16 %v303
        %v964 = vunpack.c.h.b16 %v303
        %v965 = vunpack.c.l.b16 %v304
        %v966 = vunpack.c.h.b16 %v304
        %v967 = vunpack.c.l.b16 %v305
        %v968 = vunpack.c.h.b16 %v305
        %v969 = vunpack.c.l.b16 %v306
        %v970 = vunpack.c.h.b16 %v306
        %v971 = vunpack.c.l.b16 %v307
        %v972 = vunpack.c.h.b16 %v307
        %v973 = vunpack.c.l.b16 %v308
        %v974 = vunpack.c.h.b16 %v308
        %v975 = vunpack.c.l.b16 %v309
        %v976 = vunpack.c.h.b16 %v309
        %v977 = vunpack.c.l.b16 %v310
        %v978 = vunpack.c.h.b16 %v310
        %v979 = vunpack.c.l.b16 %v311
        %v980 = vunpack.c.h.b16 %v311
        %v981 = vunpack.c.l.b16 %v312
        %v982 = vunpack.c.h.b16 %v312
        %v983 = vunpack.c.l.b16 %v313
        %v984 = vunpack.c.h.b16 %v313
        %v985 = vunpack.c.l.b16 %v314
        %v986 = vunpack.c.h.b16 %v314
        %v987 = vunpack.c.l.b16 %v315
        %v988 = vunpack.c.h.b16 %v315
        %v989 = vunpack.c.l.b16 %v316
        %v990 = vunpack.c.h.b16 %v316
        %v991 = vunpack.c.l.b16 %v317
        %v992 = vunpack.c.h.b16 %v317
        %v993 = vunpack.c.l.b16 %v318
        %v994 = vunpack.c.h.b16 %v318
        %v995 = vunpack.c.l.b16 %v319
        %v996 = vunpack.c.h.b16 %v319
        %v997 = vunpack.c.l.b16 %v320
        %v998 = vunpack.c.h.b16 %v320
        %v999 = vunpack.c.l.b16 %v321
        %v1000 = vunpack.c.h.b16 %v321
        %v1001 = vunpack.c.l.b16 %v322
        %v1002 = vunpack.c.h.b16 %v322
        %v1003 = vunpack.c.l.b16 %v323
        %v1004 = vunpack.c.h.b16 %v323
        %v1005 = vunpack.c.l.b16 %v324
        %v1006 = vunpack.c.h.b16 %v324
        %v1007 = vunpack.c.l.b16 %v325
        %v1008 = vunpack.c.h.b16 %v325
        %v1009 = vunpack.c.l.b16 %v326
        %v1010 = vunpack.c.h.b16 %v326
        %v1011 = vunpack.c.l.b16 %v327
        %v1012 = vunpack.c.h.b16 %v327
        %v1013 = vunpack.c.l.b16 %v328
        %v1014 = vunpack.c.h.b16 %v328
        %v1015 = vunpack.c.l.b16 %v329
        %v1016 = vunpack.c.h.b16 %v329
        %v1017 = vunpack.c.l.b16 %v330
        %v1018 = vunpack.c.h.b16 %v330
        %v1019 = vunpack.c.l.b16 %v331
        %v1020 = vunpack.c.h.b16 %v331
        %v1021 = vunpack.c.l.b16 %v332
        %v1022 = vunpack.c.h.b16 %v332
        %v1023 = vunpack.c.l.b16 %v333
        %v1024 = vunpack.c.h.b16 %v333
        %v1025 = vunpack.c.l.b16 %v334
        %v1026 = vunpack.c.h.b16 %v334
        %v1027 = vunpack.c.l.b16 %v335
        %v1028 = vunpack.c.h.b16 %v335
        %v1029 = vunpack.c.l.b16 %v336
        %v1030 = vunpack.c.h.b16 %v336
        %v1031 = vunpack.c.l.b16 %v337
        %v1032 = vunpack.c.h.b16 %v337
        %v1033 = vunpack.c.l.b16 %v338
        %v1034 = vunpack.c.h.b16 %v338
        %v1035 = vunpack.c.l.b16 %v339
        %v1036 = vunpack.c.h.b16 %v339
        %v1037 = vunpack.c.l.b16 %v340
        %v1038 = vunpack.c.h.b16 %v340
        %v1039 = vunpack.c.l.b16 %v341
        %v1040 = vunpack.c.h.b16 %v341
        %v1041 = vunpack.c.l.b16 %v342
        %v1042 = vunpack.c.h.b16 %v342
        %v1043 = vunpack.c.l.b16 %v343
        %v1044 = vunpack.c.h.b16 %v343
        %v1045 = vunpack.c.l.b16 %v344
        %v1046 = vunpack.c.h.b16 %v344
        %v1047 = vunpack.c.l.b16 %v345
        %v1048 = vunpack.c.h.b16 %v345
        %v1049 = vunpack.c.l.b16 %v346
        %v1050 = vunpack.c.h.b16 %v346
        %v1051 = vunpack.c.l.b16 %v347
        %v1052 = vunpack.c.h.b16 %v347
        %v1053 = vunpack.c.l.b16 %v348
        %v1054 = vunpack.c.h.b16 %v348
        %v1055 = vunpack.c.l.b16 %v349
        %v1056 = vunpack.c.h.b16 %v349
        %v1057 = vunpack.c.l.b16 %v350
        %v1058 = vunpack.c.h.b16 %v350
        %v1059 = vunpack.c.l.b16 %v351
        %v1060 = vunpack.c.h.b16 %v351
        %v1061 = vunpack.c.l.b16 %v352
        %v1062 = vunpack.c.h.b16 %v352
        %v1063 = vunpack.c.l.b16 %v353
        %v1064 = vunpack.c.h.b16 %v353
        %v1065 = vunpack.c.l.b16 %v354
        %v1066 = vunpack.c.h.b16 %v354
        %v1067 = vunpack.c.l.b16 %v355
        %v1068 = vunpack.c.h.b16 %v355
        %v1069 = vunpack.c.l.b16 %v356
        %v1070 = vunpack.c.h.b16 %v356
        %v1071 = vunpack.c.l.b16 %v357
        %v1072 = vunpack.c.h.b16 %v357
        %v1073 = vunpack.c.l.b16 %v358
        %v1074 = vunpack.c.h.b16 %v358
        %v1075 = vunpack.c.l.b16 %v359
        %v1076 = vunpack.c.h.b16 %v359
        %v1077 = vunpack.c.l.b16 %v360
        %v1078 = vunpack.c.h.b16 %v360
        %v1079 = vunpack.c.l.b16 %v361
        %v1080 = vunpack.c.h.b16 %v361
        %v1081 = vunpack.c.l.b16 %v362
        %v1082 = vunpack.c.h.b16 %v362
        %v1083 = vunpack.c.l.b16 %v363
        %v1084 = vunpack.c.h.b16 %v363
        %v1085 = vunpack.c.l.b16 %v364
        %v1086 = vunpack.c.h.b16 %v364
        %v1087 = vunpack.c.l.b16 %v365
        %v1088 = vunpack.c.h.b16 %v365
        %v1089 = vunpack.c.l.b16 %v366
        %v1090 = vunpack.c.h.b16 %v366
        %v1091 = vunpack.c.l.b16 %v367
        %v1092 = vunpack.c.h.b16 %v367
        %v1093 = vunpack.c.l.b16 %v368
        %v1094 = vunpack.c.h.b16 %v368
        %v1095 = vunpack.c.l.b16 %v369
        %v1096 = vunpack.c.h.b16 %v369
        %v1097 = vunpack.c.l.b16 %v370
        %v1098 = vunpack.c.h.b16 %v370
        %v1099 = vunpack.c.l.b16 %v371
        %v1100 = vunpack.c.h.b16 %v371
        %v1101 = vunpack.c.l.b16 %v372
        %v1102 = vunpack.c.h.b16 %v372
        %v1103 = vunpack.c.l.b16 %v373
        %v1104 = vunpack.c.h.b16 %v373
        %v1105 = vunpack.c.l.b16 %v374
        %v1106 = vunpack.c.h.b16 %v374
        %v1107 = vunpack.c.l.b16 %v375
        %v1108 = vunpack.c.h.b16 %v375
        %v1109 = vunpack.c.l.b16 %v376
        %v1110 = vunpack.c.h.b16 %v376
        %v1111 = vunpack.c.l.b16 %v377
        %v1112 = vunpack.c.h.b16 %v377
        %v1113 = vunpack.c.l.b16 %v378
        %v1114 = vunpack.c.h.b16 %v378
        %v1115 = vunpack.c.l.b16 %v379
        %v1116 = vunpack.c.h.b16 %v379
        %v1117 = vunpack.c.l.b16 %v380
        %v1118 = vunpack.c.h.b16 %v380
        %v1119 = vunpack.c.l.b16 %v381
        %v1120 = vunpack.c.h.b16 %v381
        %v1121 = vunpack.c.l.b16 %v382
        %v1122 = vunpack.c.h.b16 %v382
        %v1123 = vunpack.c.l.b16 %v383
        %v1124 = vunpack.c.h.b16 %v383
        %v1125 = vunpack.c.l.b16 %v384
        %v1126 = vunpack.c.h.b16 %v384
        %v1127 = vunpack.c.l.b16 %v385
        %v1128 = vunpack.c.h.b16 %v385
        %v1129 = vunpack.c.l.b16 %v386
        %v1130 = vunpack.c.h.b16 %v386
        %v1131 = vunpack.c.l.b16 %v387
        %v1132 = vunpack.c.h.b16 %v387
        %v1133 = vunpack.c.l.b16 %v388
        %v1134 = vunpack.c.h.b16 %v388
        %v1135 = vunpack.c.l.b16 %v389
        %v1136 = vunpack.c.h.b16 %v389
        %v1137 = vunpack.c.l.b16 %v390
        %v1138 = vunpack.c.h.b16 %v390
        %v1139 = vunpack.c.l.b16 %v391
        %v1140 = vunpack.c.h.b16 %v391
        %v1141 = vunpack.c.l.b16 %v392
        %v1142 = vunpack.c.h.b16 %v392
        %v1143 = vunpack.c.l.b16 %v393
        %v1144 = vunpack.c.h.b16 %v393
        %v1145 = vunpack.c.l.b16 %v394
        %v1146 = vunpack.c.h.b16 %v394
        %v1147 = vunpack.c.l.b16 %v395
        %v1148 = vunpack.c.h.b16 %v395
        %v1149 = vunpack.c.l.b16 %v396
        %v1150 = vunpack.c.h.b16 %v396
        %v1151 = vunpack.c.l.b16 %v397
        %v1152 = vunpack.c.h.b16 %v397
        %v1153 = vunpack.c.l.b16 %v398
        %v1154 = vunpack.c.h.b16 %v398
        %v1155 = vunpack.c.l.b16 %v399
        %v1156 = vunpack.c.h.b16 %v399
        %v1157 = vunpack.c.l.b16 %v400
        %v1158 = vunpack.c.h.b16 %v400
        %v1159 = vunpack.c.l.b16 %v401
        %v1160 = vunpack.c.h.b16 %v401
        %v1161 = vunpack.c.l.b16 %v402
        %v1162 = vunpack.c.h.b16 %v402
        %v1163 = vunpack.c.l.b16 %v403
        %v1164 = vunpack.c.h.b16 %v403
        %v1165 = vunpack.c.l.b16 %v404
        %v1166 = vunpack.c.h.b16 %v404
        %v1167 = vunpack.c.l.b16 %v405
        %v1168 = vunpack.c.h.b16 %v405
        %v1169 = vunpack.c.l.b16 %v406
        %v1170 = vunpack.c.h.b16 %v406
        %v1171 = vunpack.c.l.b16 %v407
        %v1172 = vunpack.c.h.b16 %v407
        %v1173 = vunpack.c.l.b16 %v408
        %v1174 = vunpack.c.h.b16 %v408
        %v1175 = vunpack.c.l.b16 %v409
        %v1176 = vunpack.c.h.b16 %v409
        %v1177 = vunpack.c.l.b16 %v410
        %v1178 = vunpack.c.h.b16 %v410
        %v1179 = vunpack.c.l.b16 %v411
        %v1180 = vunpack.c.h.b16 %v411
        %v1181 = vunpack.c.l.b16 %v412
        %v1182 = vunpack.c.h.b16 %v412
        %v1183 = vunpack.c.l.b16 %v413
        %v1184 = vunpack.c.h.b16 %v413
        %v1185 = vunpack.c.l.b16 %v414
        %v1186 = vunpack.c.h.b16 %v414
        %v1187 = vunpack.c.l.b16 %v415
        %v1188 = vunpack.c.h.b16 %v415
        %v1189 = vunpack.c.l.b16 %v416
        %v1190 = vunpack.c.h.b16 %v416
        %v1191 = vunpack.c.l.b16 %v417
        %v1192 = vunpack.c.h.b16 %v417
        %v1193 = vunpack.c.l.b16 %v418
        %v1194 = vunpack.c.h.b16 %v418
        %v1195 = vunpack.c.l.b16 %v419
        %v1196 = vunpack.c.h.b16 %v419
        %v1197 = vunpack.c.l.b16 %v420
        %v1198 = vunpack.c.h.b16 %v420
        %v1199 = vunpack.c.l.b16 %v421
        %v1200 = vunpack.c.h.b16 %v421
        %v1201 = vunpack.c.l.b16 %v422
        %v1202 = vunpack.c.h.b16 %v422
        %v1203 = vunpack.c.l.b16 %v423
        %v1204 = vunpack.c.h.b16 %v423
        %v1205 = vunpack.c.l.b16 %v424
        %v1206 = vunpack.c.h.b16 %v424
        %v1207 = vunpack.c.l.b16 %v425
        %v1208 = vunpack.c.h.b16 %v425
        %v1209 = vunpack.c.l.b16 %v426
        %v1210 = vunpack.c.h.b16 %v426
        %v1211 = vunpack.c.l.b16 %v427
        %v1212 = vunpack.c.h.b16 %v427
        %v1213 = vunpack.c.l.b16 %v428
        %v1214 = vunpack.c.h.b16 %v428
        %v1215 = vunpack.c.l.b16 %v429
        %v1216 = vunpack.c.h.b16 %v429
        %v1217 = vunpack.c.l.b16 %v430
        %v1218 = vunpack.c.h.b16 %v430
        %v1219 = vunpack.c.l.b16 %v431
        %v1220 = vunpack.c.h.b16 %v431
        %v1221 = vunpack.c.l.b16 %v432
        %v1222 = vunpack.c.h.b16 %v432
        %v1223 = vunpack.c.l.b16 %v433
        %v1224 = vunpack.c.h.b16 %v433
        %v1225 = vunpack.c.l.b16 %v434
        %v1226 = vunpack.c.h.b16 %v434
        %v1227 = vunpack.c.l.b16 %v435
        %v1228 = vunpack.c.h.b16 %v435
        %v1229 = vunpack.c.l.b16 %v436
        %v1230 = vunpack.c.h.b16 %v436
        %v1231 = vunpack.c.l.b16 %v437
        %v1232 = vunpack.c.h.b16 %v437
        %v1233 = vunpack.c.l.b16 %v438
        %v1234 = vunpack.c.h.b16 %v438
        %v1235 = vunpack.c.l.b16 %v439
        %v1236 = vunpack.c.h.b16 %v439
        %v1237 = vunpack.c.l.b16 %v440
        %v1238 = vunpack.c.h.b16 %v440
        %v1239 = vunpack.c.l.b16 %v441
        %v1240 = vunpack.c.h.b16 %v441
        %v1241 = vunpack.c.l.b16 %v442
        %v1242 = vunpack.c.h.b16 %v442
        %v1243 = vunpack.c.l.b16 %v443
        %v1244 = vunpack.c.h.b16 %v443
        %v1245 = vunpack.c.l.b16 %v444
        %v1246 = vunpack.c.h.b16 %v444
        %v1247 = vunpack.c.l.b16 %v445
        %v1248 = vunpack.c.h.b16 %v445
        %v1249 = vunpack.c.l.b16 %v446
        %v1250 = vunpack.c.h.b16 %v446
        %v1251 = vunpack.c.l.b16 %v447
        %v1252 = vunpack.c.h.b16 %v447
        %v1253 = vunpack.c.l.b16 %v448
        %v1254 = vunpack.c.h.b16 %v448
        %v1255 = vunpack.c.l.b16 %v449
        %v1256 = vunpack.c.h.b16 %v449
        %v1257 = vunpack.c.l.b16 %v450
        %v1258 = vunpack.c.h.b16 %v450
        %v1259 = vunpack.c.l.b16 %v451
        %v1260 = vunpack.c.h.b16 %v451
        %v1261 = vunpack.c.l.b16 %v452
        %v1262 = vunpack.c.h.b16 %v452
        %v1263 = vunpack.c.l.b16 %v453
        %v1264 = vunpack.c.h.b16 %v453
        %v1265 = vunpack.c.l.b16 %v454
        %v1266 = vunpack.c.h.b16 %v454
        %v1267 = vunpack.c.l.b16 %v455
        %v1268 = vunpack.c.h.b16 %v455
        %v1269 = vunpack.c.l.b16 %v456
        %v1270 = vunpack.c.h.b16 %v456
        %v1271 = vunpack.c.l.b16 %v457
        %v1272 = vunpack.c.h.b16 %v457
        %v1273 = vunpack.c.l.b16 %v458
        %v1274 = vunpack.c.h.b16 %v458
        %v1275 = vunpack.c.l.b16 %v459
        %v1276 = vunpack.c.h.b16 %v459
        %v1277 = vunpack.c.l.b16 %v460
        %v1278 = vunpack.c.h.b16 %v460
        %v1279 = vunpack.c.l.b16 %v461
        %v1280 = vunpack.c.h.b16 %v461
        %v1281 = vunpack.c.l.b16 %v462
        %v1282 = vunpack.c.h.b16 %v462
        %v1283 = vunpack.c.l.b16 %v463
        %v1284 = vunpack.c.h.b16 %v463
        %v1285 = vunpack.c.l.b16 %v464
        %v1286 = vunpack.c.h.b16 %v464
        %v1287 = vunpack.c.l.b16 %v465
        %v1288 = vunpack.c.h.b16 %v465
        %v1289 = vunpack.c.l.b16 %v466
        %v1290 = vunpack.c.h.b16 %v466
        %v1291 = vunpack.c.l.b16 %v467
        %v1292 = vunpack.c.h.b16 %v467
        %v1293 = vunpack.c.l.b16 %v468
        %v1294 = vunpack.c.h.b16 %v468
        %v1295 = vunpack.c.l.b16 %v469
        %v1296 = vunpack.c.h.b16 %v469
        %v1297 = vunpack.c.l.b16 %v470
        %v1298 = vunpack.c.h.b16 %v470
        %v1299 = vunpack.c.l.b16 %v471
        %v1300 = vunpack.c.h.b16 %v471
        %v1301 = vunpack.c.l.b16 %v472
        %v1302 = vunpack.c.h.b16 %v472
        %v1303 = vunpack.c.l.b16 %v473
        %v1304 = vunpack.c.h.b16 %v473
        %v1305 = vunpack.c.l.b16 %v474
        %v1306 = vunpack.c.h.b16 %v474
        %v1307 = vunpack.c.l.b16 %v475
        %v1308 = vunpack.c.h.b16 %v475
        %v1309 = vunpack.c.l.b16 %v476
        %v1310 = vunpack.c.h.b16 %v476
        %v1311 = vunpack.c.l.b16 %v477
        %v1312 = vunpack.c.h.b16 %v477
        %v1313 = vunpack.c.l.b16 %v478
        %v1314 = vunpack.c.h.b16 %v478
        %v1315 = vunpack.c.l.b16 %v479
        %v1316 = vunpack.c.h.b16 %v479
        %v1317 = vunpack.c.l.b16 %v480
        %v1318 = vunpack.c.h.b16 %v480
        %v1319 = vunpack.c.l.b16 %v481
        %v1320 = vunpack.c.h.b16 %v481
        %v1321 = vunpack.c.l.b16 %v482
        %v1322 = vunpack.c.h.b16 %v482
        %v1323 = vunpack.c.l.b16 %v483
        %v1324 = vunpack.c.h.b16 %v483
        %v1325 = vunpack.c.l.b16 %v484
        %v1326 = vunpack.c.h.b16 %v484
        %v1327 = vunpack.c.l.b16 %v485
        %v1328 = vunpack.c.h.b16 %v485
        %v1329 = vunpack.c.l.b16 %v486
        %v1330 = vunpack.c.h.b16 %v486
        %v1331 = vunpack.c.l.b16 %v487
        %v1332 = vunpack.c.h.b16 %v487
        %v1333 = vunpack.c.l.b16 %v488
        %v1334 = vunpack.c.h.b16 %v488
        %v1335 = vunpack.c.l.b16 %v489
        %v1336 = vunpack.c.h.b16 %v489
        %v1337 = vunpack.c.l.b16 %v490
        %v1338 = vunpack.c.h.b16 %v490
        %v1339 = vunpack.c.l.b16 %v491
        %v1340 = vunpack.c.h.b16 %v491
        %v1341 = vunpack.c.l.b16 %v492
        %v1342 = vunpack.c.h.b16 %v492
        %v1343 = vunpack.c.l.b16 %v493
        %v1344 = vunpack.c.h.b16 %v493
        %v1345 = vunpack.c.l.b16 %v494
        %v1346 = vunpack.c.h.b16 %v494
        %v1347 = vunpack.c.l.b16 %v495
        %v1348 = vunpack.c.h.b16 %v495
        %v1349 = vunpack.c.l.b16 %v496
        %v1350 = vunpack.c.h.b16 %v496
        %v1351 = vunpack.c.l.b16 %v497
        %v1352 = vunpack.c.h.b16 %v497
        %v1353 = vunpack.c.l.b16 %v498
        %v1354 = vunpack.c.h.b16 %v498
        %v1355 = vunpack.c.l.b16 %v499
        %v1356 = vunpack.c.h.b16 %v499
        %v1357 = vunpack.c.l.b16 %v500
        %v1358 = vunpack.c.h.b16 %v500
        %v1359 = vunpack.c.l.b16 %v501
        %v1360 = vunpack.c.h.b16 %v501
        %v1361 = vunpack.c.l.b16 %v502
        %v1362 = vunpack.c.h.b16 %v502
        %v1363 = vunpack.c.l.b16 %v503
        %v1364 = vunpack.c.h.b16 %v503
        %v1365 = vunpack.c.l.b16 %v504
        %v1366 = vunpack.c.h.b16 %v504
        %v1367 = vunpack.c.l.b16 %v505
        %v1368 = vunpack.c.h.b16 %v505
        %v1369 = vunpack.c.l.b16 %v506
        %v1370 = vunpack.c.h.b16 %v506
        %v1371 = vpack.c.b16 %v861, %v859
        %v1372 = vpack.c.b16 %v862, %v860
        %v1373 = vpack.c.b16 %v865, %v863
        %v1374 = vpack.c.b16 %v866, %v864
        %v1375 = vpack.c.b16 %v869, %v867
        %v1376 = vpack.c.b16 %v870, %v868
        %v1377 = vpack.c.b16 %v873, %v871
        %v1378 = vpack.c.b16 %v874, %v872
        %v1379 = vpack.c.b16 %v877, %v875
        %v1380 = vpack.c.b16 %v878, %v876
        %v1381 = vpack.c.b16 %v881, %v879
        %v1382 = vpack.c.b16 %v882, %v880
        %v1383 = vpack.c.b16 %v885, %v883
        %v1384 = vpack.c.b16 %v886, %v884
        %v1385 = vpack.c.b16 %v889, %v887
        %v1386 = vpack.c.b16 %v890, %v888
        %v1387 = vpack.c.b16 %v893, %v891
        %v1388 = vpack.c.b16 %v894, %v892
        %v1389 = vpack.c.b16 %v897, %v895
        %v1390 = vpack.c.b16 %v898, %v896
        %v1391 = vpack.c.b16 %v901, %v899
        %v1392 = vpack.c.b16 %v902, %v900
        %v1393 = vpack.c.b16 %v905, %v903
        %v1394 = vpack.c.b16 %v906, %v904
        %v1395 = vpack.c.b16 %v909, %v907
        %v1396 = vpack.c.b16 %v910, %v908
        %v1397 = vpack.c.b16 %v913, %v911
        %v1398 = vpack.c.b16 %v914, %v912
        %v1399 = vpack.c.b16 %v917, %v915
        %v1400 = vpack.c.b16 %v918, %v916
        %v1401 = vpack.c.b16 %v921, %v919
        %v1402 = vpack.c.b16 %v922, %v920
        %v1403 = vpack.c.b16 %v925, %v923
        %v1404 = vpack.c.b16 %v926, %v924
        %v1405 = vpack.c.b16 %v929, %v927
        %v1406 = vpack.c.b16 %v930, %v928
        %v1407 = vpack.c.b16 %v933, %v931
        %v1408 = vpack.c.b16 %v934, %v932
        %v1409 = vpack.c.b16 %v937, %v935
        %v1410 = vpack.c.b16 %v938, %v936
        %v1411 = vpack.c.b16 %v941, %v939
        %v1412 = vpack.c.b16 %v942, %v940
        %v1413 = vpack.c.b16 %v945, %v943
        %v1414 = vpack.c.b16 %v946, %v944
        %v1415 = vpack.c.b16 %v949, %v947
        %v1416 = vpack.c.b16 %v950, %v948
        %v1417 = vpack.c.b16 %v953, %v951
        %v1418 = vpack.c.b16 %v954, %v952
        %v1419 = vpack.c.b16 %v957, %v955
        %v1420 = vpack.c.b16 %v958, %v956
        %v1421 = vpack.c.b16 %v961, %v959
        %v1422 = vpack.c.b16 %v962, %v960
        %v1423 = vpack.c.b16 %v965, %v963
        %v1424 = vpack.c.b16 %v966, %v964
        %v1425 = vpack.c.b16 %v969, %v967
        %v1426 = vpack.c.b16 %v970, %v968
        %v1427 = vpack.c.b16 %v973, %v971
        %v1428 = vpack.c.b16 %v974, %v972
        %v1429 = vpack.c.b16 %v977, %v975
        %v1430 = vpack.c.b16 %v978, %v976
        %v1431 = vpack.c.b16 %v981, %v979
        %v1432 = vpack.c.b16 %v982, %v980
        %v1433 = vpack.c.b16 %v985, %v983
        %v1434 = vpack.c.b16 %v986, %v984
        %v1435 = vpack.c.b16 %v989, %v987
        %v1436 = vpack.c.b16 %v990, %v988
        %v1437 = vpack.c.b16 %v993, %v991
        %v1438 = vpack.c.b16 %v994, %v992
        %v1439 = vpack.c.b16 %v997, %v995
        %v1440 = vpack.c.b16 %v998, %v996
        %v1441 = vpack.c.b16 %v1001, %v999
        %v1442 = vpack.c.b16 %v1002, %v1000
        %v1443 = vpack.c.b16 %v1005, %v1003
        %v1444 = vpack.c.b16 %v1006, %v1004
        %v1445 = vpack.c.b16 %v1009, %v1007
        %v1446 = vpack.c.b16 %v1010, %v1008
        %v1447 = vpack.c.b16 %v1013, %v1011
        %v1448 = vpack.c.b16 %v1014, %v1012
        %v1449 = vpack.c.b16 %v1017, %v1015
        %v1450 = vpack.c.b16 %v1018, %v1016
        %v1451 = vpack.c.b16 %v1021, %v1019
        %v1452 = vpack.c.b16 %v1022, %v1020
        %v1453 = vpack.c.b16 %v1025, %v1023
        %v1454 = vpack.c.b16 %v1026, %v1024
        %v1455 = vpack.c.b16 %v1029, %v1027
        %v1456 = vpack.c.b16 %v1030, %v1028
        %v1457 = vpack.c.b16 %v1033, %v1031
        %v1458 = vpack.c.b16 %v1034, %v1032
        %v1459 = vpack.c.b16 %v1037, %v1035
        %v1460 = vpack.c.b16 %v1038, %v1036
        %v1461 = vpack.c.b16 %v1041, %v1039
        %v1462 = vpack.c.b16 %v1042, %v1040
        %v1463 = vpack.c.b16 %v1045, %v1043
        %v1464 = vpack.c.b16 %v1046, %v1044
        %v1465 = vpack.c.b16 %v1049, %v1047
        %v1466 = vpack.c.b16 %v1050, %v1048
        %v1467 = vpack.c.b16 %v1053, %v1051
        %v1468 = vpack.c.b16 %v1054, %v1052
        %v1469 = vpack.c.b16 %v1057, %v1055
        %v1470 = vpack.c.b16 %v1058, %v1056
        %v1471 = vpack.c.b16 %v1061, %v1059
        %v1472 = vpack.c.b16 %v1062, %v1060
        %v1473 = vpack.c.b16 %v1065, %v1063
        %v1474 = vpack.c.b16 %v1066, %v1064
        %v1475 = vpack.c.b16 %v1069, %v1067
        %v1476 = vpack.c.b16 %v1070, %v1068
        %v1477 = vpack.c.b16 %v1073, %v1071
        %v1478 = vpack.c.b16 %v1074, %v1072
        %v1479 = vpack.c.b16 %v1077, %v1075
        %v1480 = vpack.c.b16 %v1078, %v1076
        %v1481 = vpack.c.b16 %v1081, %v1079
        %v1482 = vpack.c.b16 %v1082, %v1080
        %v1483 = vpack.c.b16 %v1085, %v1083
        %v1484 = vpack.c.b16 %v1086, %v1084
        %v1485 = vpack.c.b16 %v1089, %v1087
        %v1486 = vpack.c.b16 %v1090, %v1088
        %v1487 = vpack.c.b16 %v1093, %v1091
        %v1488 = vpack.c.b16 %v1094, %v1092
        %v1489 = vpack.c.b16 %v1097, %v1095
        %v1490 = vpack.c.b16 %v1098, %v1096
        %v1491 = vpack.c.b16 %v1101, %v1099
        %v1492 = vpack.c.b16 %v1102, %v1100
        %v1493 = vpack.c.b16 %v1105, %v1103
        %v1494 = vpack.c.b16 %v1106, %v1104
        %v1495 = vpack.c.b16 %v1109, %v1107
        %v1496 = vpack.c.b16 %v1110, %v1108
        %v1497 = vpack.c.b16 %v1113, %v1111
        %v1498 = vpack.c.b16 %v1114, %v1112
        %v1499 = vpack.c.b16 %v1117, %v1115
        %v1500 = vpack.c.b16 %v1118, %v1116
        %v1501 = vpack.c.b16 %v1121, %v1119
        %v1502 = vpack.c.b16 %v1122, %v1120
        %v1503 = vpack.c.b16 %v1125, %v1123
        %v1504 = vpack.c.b16 %v1126, %v1124
        %v1505 = vpack.c.b16 %v1129, %v1127
        %v1506 = vpack.c.b16 %v1130, %v1128
        %v1507 = vpack.c.b16 %v1133, %v1131
        %v1508 = vpack.c.b16 %v1134, %v1132
        %v1509 = vpack.c.b16 %v1137, %v1135
        %v1510 = vpack.c.b16 %v1138, %v1136
        %v1511 = vpack.c.b16 %v1141, %v1139
        %v1512 = vpack.c.b16 %v1142, %v1140
        %v1513 = vpack.c.b16 %v1145, %v1143
        %v1514 = vpack.c.b16 %v1146, %v1144
        %v1515 = vpack.c.b16 %v1149, %v1147
        %v1516 = vpack.c.b16 %v1150, %v1148
        %v1517 = vpack.c.b16 %v1153, %v1151
        %v1518 = vpack.c.b16 %v1154, %v1152
        %v1519 = vpack.c.b16 %v1157, %v1155
        %v1520 = vpack.c.b16 %v1158, %v1156
        %v1521 = vpack.c.b16 %v1161, %v1159
        %v1522 = vpack.c.b16 %v1162, %v1160
        %v1523 = vpack.c.b16 %v1165, %v1163
        %v1524 = vpack.c.b16 %v1166, %v1164
        %v1525 = vpack.c.b16 %v1169, %v1167
        %v1526 = vpack.c.b16 %v1170, %v1168
        %v1527 = vpack.c.b16 %v1173, %v1171
        %v1528 = vpack.c.b16 %v1174, %v1172
        %v1529 = vpack.c.b16 %v1177, %v1175
        %v1530 = vpack.c.b16 %v1178, %v1176
        %v1531 = vpack.c.b16 %v1181, %v1179
        %v1532 = vpack.c.b16 %v1182, %v1180
        %v1533 = vpack.c.b16 %v1185, %v1183
        %v1534 = vpack.c.b16 %v1186, %v1184
        %v1535 = vpack.c.b16 %v1189, %v1187
        %v1536 = vpack.c.b16 %v1190, %v1188
        %v1537 = vpack.c.b16 %v1193, %v1191
        %v1538 = vpack.c.b16 %v1194, %v1192
        %v1539 = vpack.c.b16 %v1197, %v1195
        %v1540 = vpack.c.b16 %v1198, %v1196
        %v1541 = vpack.c.b16 %v1201, %v1199
        %v1542 = vpack.c.b16 %v1202, %v1200
        %v1543 = vpack.c.b16 %v1205, %v1203
        %v1544 = vpack.c.b16 %v1206, %v1204
        %v1545 = vpack.c.b16 %v1209, %v1207
        %v1546 = vpack.c.b16 %v1210, %v1208
        %v1547 = vpack.c.b16 %v1213, %v1211
        %v1548 = vpack.c.b16 %v1214, %v1212
        %v1549 = vpack.c.b16 %v1217, %v1215
        %v1550 = vpack.c.b16 %v1218, %v1216
        %v1551 = vpack.c.b16 %v1221, %v1219
        %v1552 = vpack.c.b16 %v1222, %v1220
        %v1553 = vpack.c.b16 %v1225, %v1223
        %v1554 = vpack.c.b16 %v1226, %v1224
        %v1555 = vpack.c.b16 %v1229, %v1227
        %v1556 = vpack.c.b16 %v1230, %v1228
        %v1557 = vpack.c.b16 %v1233, %v1231
        %v1558 = vpack.c.b16 %v1234, %v1232
        %v1559 = vpack.c.b16 %v1237, %v1235
        %v1560 = vpack.c.b16 %v1238, %v1236
        %v1561 = vpack.c.b16 %v1241, %v1239
        %v1562 = vpack.c.b16 %v1242, %v1240
        %v1563 = vpack.c.b16 %v1245, %v1243
        %v1564 = vpack.c.b16 %v1246, %v1244
        %v1565 = vpack.c.b16 %v1249, %v1247
        %v1566 = vpack.c.b16 %v1250, %v1248
        %v1567 = vpack.c.b16 %v1253, %v1251
        %v1568 = vpack.c.b16 %v1254, %v1252
        %v1569 = vpack.c.b16 %v1257, %v1255
        %v1570 = vpack.c.b16 %v1258, %v1256
        %v1571 = vpack.c.b16 %v1261, %v1259
        %v1572 = vpack.c.b16 %v1262, %v1260
        %v1573 = vpack.c.b16 %v1265, %v1263
        %v1574 = vpack.c.b16 %v1266, %v1264
        %v1575 = vpack.c.b16 %v1269, %v1267
        %v1576 = vpack.c.b16 %v1270, %v1268
        %v1577 = vpack.c.b16 %v1273, %v1271
        %v1578 = vpack.c.b16 %v1274, %v1272
        %v1579 = vpack.c.b16 %v1277, %v1275
        %v1580 = vpack.c.b16 %v1278, %v1276
        %v1581 = vpack.c.b16 %v1281, %v1279
        %v1582 = vpack.c.b16 %v1282, %v1280
        %v1583 = vpack.c.b16 %v1285, %v1283
        %v1584 = vpack.c.b16 %v1286, %v1284
        %v1585 = vpack.c.b16 %v1289, %v1287
        %v1586 = vpack.c.b16 %v1290, %v1288
        %v1587 = vpack.c.b16 %v1293, %v1291
        %v1588 = vpack.c.b16 %v1294, %v1292
        %v1589 = vpack.c.b16 %v1297, %v1295
        %v1590 = vpack.c.b16 %v1298, %v1296
        %v1591 = vpack.c.b16 %v1301, %v1299
        %v1592 = vpack.c.b16 %v1302, %v1300
        %v1593 = vpack.c.b16 %v1305, %v1303
        %v1594 = vpack.c.b16 %v1306, %v1304
        %v1595 = vpack.c.b16 %v1309, %v1307
        %v1596 = vpack.c.b16 %v1310, %v1308
        %v1597 = vpack.c.b16 %v1313, %v1311
        %v1598 = vpack.c.b16 %v1314, %v1312
        %v1599 = vpack.c.b16 %v1317, %v1315
        %v1600 = vpack.c.b16 %v1318, %v1316
        %v1601 = vpack.c.b16 %v1321, %v1319
        %v1602 = vpack.c.b16 %v1322, %v1320
        %v1603 = vpack.c.b16 %v1325, %v1323
        %v1604 = vpack.c.b16 %v1326, %v1324
        %v1605 = vpack.c.b16 %v1329, %v1327
        %v1606 = vpack.c.b16 %v1330, %v1328
        %v1607 = vpack.c.b16 %v1333, %v1331
        %v1608 = vpack.c.b16 %v1334, %v1332
        %v1609 = vpack.c.b16 %v1337, %v1335
        %v1610 = vpack.c.b16 %v1338, %v1336
        %v1611 = vpack.c.b16 %v1341, %v1339
        %v1612 = vpack.c.b16 %v1342, %v1340
        %v1613 = vpack.c.b16 %v1345, %v1343
        %v1614 = vpack.c.b16 %v1346, %v1344
        %v1615 = vpack.c.b16 %v1349, %v1347
        %v1616 = vpack.c.b16 %v1350, %v1348
        %v1617 = vpack.c.b16 %v1353, %v1351
        %v1618 = vpack.c.b16 %v1354, %v1352
        %v1619 = vpack.c.b16 %v1357, %v1355
        %v1620 = vpack.c.b16 %v1358, %v1356
        %v1621 = vpack.c.b16 %v1361, %v1359
        %v1622 = vpack.c.b16 %v1362, %v1360
        %v1623 = vpack.c.b16 %v1365, %v1363
        %v1624 = vpack.c.b16 %v1366, %v1364
        %v1625 = vpack.c.b16 %v1369, %v1367
        %v1626 = vpack.c.b16 %v1370, %v1368
        %1883 = vmatprep.subr.bf16.mxu0 %v1372
        %1884 = vmatpush1.bf16.msra.mxu0 %v1371
        %1885 = vmatprep.subr.bf16.mxu0 %v1374
        %1886 = vmatpush1.bf16.msra.mxu0 %v1373
        %1887 = vmatprep.subr.bf16.mxu0 %v1376
        %1888 = vmatpush1.bf16.msra.mxu0 %v1375
        %1889 = vmatprep.subr.bf16.mxu0 %v1378
        %1890 = vmatpush1.bf16.msra.mxu0 %v1377
        %1891 = vmatprep.subr.bf16.mxu0 %v1380
        %1892 = vmatpush1.bf16.msra.mxu0 %v1379
        %1893 = vmatprep.subr.bf16.mxu0 %v1382
        %1894 = vmatpush1.bf16.msra.mxu0 %v1381
        %1895 = vmatprep.subr.bf16.mxu0 %v1384
        %1896 = vmatpush1.bf16.msra.mxu0 %v1383
        %1897 = vmatprep.subr.bf16.mxu0 %v1386
        %1898 = vmatpush1.bf16.msra.mxu0 %v1385
        %1899 = vmatprep.subr.bf16.mxu0 %v1388
        %1900 = vmatpush1.bf16.msra.mxu0 %v1387
        %1901 = vmatprep.subr.bf16.mxu0 %v1390
        %1902 = vmatpush1.bf16.msra.mxu0 %v1389
        %1903 = vmatprep.subr.bf16.mxu0 %v1392
        %1904 = vmatpush1.bf16.msra.mxu0 %v1391
        %1905 = vmatprep.subr.bf16.mxu0 %v1394
        %1906 = vmatpush1.bf16.msra.mxu0 %v1393
        %1907 = vmatprep.subr.bf16.mxu0 %v1396
        %1908 = vmatpush1.bf16.msra.mxu0 %v1395
        %1909 = vmatprep.subr.bf16.mxu0 %v1398
        %1910 = vmatpush1.bf16.msra.mxu0 %v1397
        %1911 = vmatprep.subr.bf16.mxu0 %v1400
        %1912 = vmatpush1.bf16.msra.mxu0 %v1399
        %1913 = vmatprep.subr.bf16.mxu0 %v1402
        %1914 = vmatpush1.bf16.msra.mxu0 %v1401
        %1915 = vmatprep.mubr.bf16.mxu0 %v572
        %1916 = vmatmul.mubr.bf16.gmra.mrb[0].mxu0 %v571
        %v1917 = vpop.f32.mrb[0].mxu0
        %v1918 = vadd.f32 0.0, %v1917
        %v1919 = vpop.f32.mrb[0].mxu0
        %v1920 = vadd.f32 0.0, %v1919
        %v1921 = vpop.f32.mrb[0].mxu0
        %v1922 = vadd.f32 0.0, %v1921
        %v1923 = vpop.f32.mrb[0].mxu0
        %v1924 = vadd.f32 0.0, %v1923
        %1925 = vdwg.mxu0
        %1926 = vmatprep.subr.bf16.mxu0 %v1404
        %1927 = vmatpush1.bf16.msra.mxu0 %v1403
        %1928 = vmatprep.subr.bf16.mxu0 %v1406
        %1929 = vmatpush1.bf16.msra.mxu0 %v1405
        %1930 = vmatprep.subr.bf16.mxu0 %v1408
        %1931 = vmatpush1.bf16.msra.mxu0 %v1407
        %1932 = vmatprep.subr.bf16.mxu0 %v1410
        %1933 = vmatpush1.bf16.msra.mxu0 %v1409
        %1934 = vmatprep.subr.bf16.mxu0 %v1412
        %1935 = vmatpush1.bf16.msra.mxu0 %v1411
        %1936 = vmatprep.subr.bf16.mxu0 %v1414
        %1937 = vmatpush1.bf16.msra.mxu0 %v1413
        %1938 = vmatprep.subr.bf16.mxu0 %v1416
        %1939 = vmatpush1.bf16.msra.mxu0 %v1415
        %1940 = vmatprep.subr.bf16.mxu0 %v1418
        %1941 = vmatpush1.bf16.msra.mxu0 %v1417
        %1942 = vmatprep.subr.bf16.mxu0 %v1420
        %1943 = vmatpush1.bf16.msra.mxu0 %v1419
        %1944 = vmatprep.subr.bf16.mxu0 %v1422
        %1945 = vmatpush1.bf16.msra.mxu0 %v1421
        %1946 = vmatprep.subr.bf16.mxu0 %v1424
        %1947 = vmatpush1.bf16.msra.mxu0 %v1423
        %1948 = vmatprep.subr.bf16.mxu0 %v1426
        %1949 = vmatpush1.bf16.msra.mxu0 %v1425
        %1950 = vmatprep.subr.bf16.mxu0 %v1428
        %1951 = vmatpush1.bf16.msra.mxu0 %v1427
        %1952 = vmatprep.subr.bf16.mxu0 %v1430
        %1953 = vmatpush1.bf16.msra.mxu0 %v1429
        %1954 = vmatprep.subr.bf16.mxu0 %v1432
        %1955 = vmatpush1.bf16.msra.mxu0 %v1431
        %1956 = vmatprep.subr.bf16.mxu0 %v1434
        %1957 = vmatpush1.bf16.msra.mxu0 %v1433
        %1958 = vmatprep.mubr.bf16.mxu0 %v574
        %1959 = vmatmul.mubr.bf16.gmra.mrb[0].mxu0 %v573
        %v1960 = vpop.f32.mrb[0].mxu0
        %v1961 = vadd.f32 %v1918, %v1960
        %v1962 = vpop.f32.mrb[0].mxu0
        %v1963 = vadd.f32 %v1920, %v1962
        %v1964 = vpop.f32.mrb[0].mxu0
        %v1965 = vadd.f32 %v1922, %v1964
        %v1966 = vpop.f32.mrb[0].mxu0
        %v1967 = vadd.f32 %v1924, %v1966
        %1968 = vdwg.mxu0
        %1969 = vmatprep.subr.bf16.mxu0 %v1436
        %1970 = vmatpush1.bf16.msra.mxu0 %v1435
        %1971 = vmatprep.subr.bf16.mxu0 %v1438
        %1972 = vmatpush1.bf16.msra.mxu0 %v1437
        %1973 = vmatprep.subr.bf16.mxu0 %v1440
        %1974 = vmatpush1.bf16.msra.mxu0 %v1439
        %1975 = vmatprep.subr.bf16.mxu0 %v1442
        %1976 = vmatpush1.bf16.msra.mxu0 %v1441
        %1977 = vmatprep.subr.bf16.mxu0 %v1444
        %1978 = vmatpush1.bf16.msra.mxu0 %v1443
        %1979 = vmatprep.subr.bf16.mxu0 %v1446
        %1980 = vmatpush1.bf16.msra.mxu0 %v1445
        %1981 = vmatprep.subr.bf16.mxu0 %v1448
        %1982 = vmatpush1.bf16.msra.mxu0 %v1447
        %1983 = vmatprep.subr.bf16.mxu0 %v1450
        %1984 = vmatpush1.bf16.msra.mxu0 %v1449
        %1985 = vmatprep.subr.bf16.mxu0 %v1452
        %1986 = vmatpush1.bf16.msra.mxu0 %v1451
        %1987 = vmatprep.subr.bf16.mxu0 %v1454
        %1988 = vmatpush1.bf16.msra.mxu0 %v1453
        %1989 = vmatprep.subr.bf16.mxu0 %v1456
        %1990 = vmatpush1.bf16.msra.mxu0 %v1455
        %1991 = vmatprep.subr.bf16.mxu0 %v1458
        %1992 = vmatpush1.bf16.msra.mxu0 %v1457
        %1993 = vmatprep.subr.bf16.mxu0 %v1460
        %1994 = vmatpush1.bf16.msra.mxu0 %v1459
        %1995 = vmatprep.subr.bf16.mxu0 %v1462
        %1996 = vmatpush1.bf16.msra.mxu0 %v1461
        %1997 = vmatprep.subr.bf16.mxu0 %v1464
        %1998 = vmatpush1.bf16.msra.mxu0 %v1463
        %1999 = vmatprep.subr.bf16.mxu0 %v1466
        %2000 = vmatpush1.bf16.msra.mxu0 %v1465
        %2001 = vmatprep.mubr.bf16.mxu0 %v576
        %2002 = vmatmul.mubr.bf16.gmra.mrb[0].mxu0 %v575
        %v2003 = vpop.f32.mrb[0].mxu0
        %v2004 = vadd.f32 %v1961, %v2003
        %v2005 = vpop.f32.mrb[0].mxu0
        %v2006 = vadd.f32 %v1963, %v2005
        %v2007 = vpop.f32.mrb[0].mxu0
        %v2008 = vadd.f32 %v1965, %v2007
        %v2009 = vpop.f32.mrb[0].mxu0
        %v2010 = vadd.f32 %v1967, %v2009
        %2011 = vdwg.mxu0
        %2012 = vmatprep.subr.bf16.mxu0 %v1468
        %2013 = vmatpush1.bf16.msra.mxu0 %v1467
        %2014 = vmatprep.subr.bf16.mxu0 %v1470
        %2015 = vmatpush1.bf16.msra.mxu0 %v1469
        %2016 = vmatprep.subr.bf16.mxu0 %v1472
        %2017 = vmatpush1.bf16.msra.mxu0 %v1471
        %2018 = vmatprep.subr.bf16.mxu0 %v1474
        %2019 = vmatpush1.bf16.msra.mxu0 %v1473
        %2020 = vmatprep.subr.bf16.mxu0 %v1476
        %2021 = vmatpush1.bf16.msra.mxu0 %v1475
        %2022 = vmatprep.subr.bf16.mxu0 %v1478
        %2023 = vmatpush1.bf16.msra.mxu0 %v1477
        %2024 = vmatprep.subr.bf16.mxu0 %v1480
        %2025 = vmatpush1.bf16.msra.mxu0 %v1479
        %2026 = vmatprep.subr.bf16.mxu0 %v1482
        %2027 = vmatpush1.bf16.msra.mxu0 %v1481
        %2028 = vmatprep.subr.bf16.mxu0 %v1484
        %2029 = vmatpush1.bf16.msra.mxu0 %v1483
        %2030 = vmatprep.subr.bf16.mxu0 %v1486
        %2031 = vmatpush1.bf16.msra.mxu0 %v1485
        %2032 = vmatprep.subr.bf16.mxu0 %v1488
        %2033 = vmatpush1.bf16.msra.mxu0 %v1487
        %2034 = vmatprep.subr.bf16.mxu0 %v1490
        %2035 = vmatpush1.bf16.msra.mxu0 %v1489
        %2036 = vmatprep.subr.bf16.mxu0 %v1492
        %2037 = vmatpush1.bf16.msra.mxu0 %v1491
        %2038 = vmatprep.subr.bf16.mxu0 %v1494
        %2039 = vmatpush1.bf16.msra.mxu0 %v1493
        %2040 = vmatprep.subr.bf16.mxu0 %v1496
        %2041 = vmatpush1.bf16.msra.mxu0 %v1495
        %2042 = vmatprep.subr.bf16.mxu0 %v1498
        %2043 = vmatpush1.bf16.msra.mxu0 %v1497
        %2044 = vmatprep.mubr.bf16.mxu0 %v578
        %2045 = vmatmul.mubr.bf16.gmra.mrb[0].mxu0 %v577
        %v2046 = vpop.f32.mrb[0].mxu0
        %v2047 = vadd.f32 %v2004, %v2046
        %v2048 = vpop.f32.mrb[0].mxu0
        %v2049 = vadd.f32 %v2006, %v2048
        %v2050 = vpop.f32.mrb[0].mxu0
        %v2051 = vadd.f32 %v2008, %v2050
        %v2052 = vpop.f32.mrb[0].mxu0
        %v2053 = vadd.f32 %v2010, %v2052
        %2054 = vdwg.mxu0
        %2055 = vmatprep.subr.bf16.mxu0 %v1500
        %2056 = vmatpush1.bf16.msra.mxu0 %v1499
        %2057 = vmatprep.subr.bf16.mxu0 %v1502
        %2058 = vmatpush1.bf16.msra.mxu0 %v1501
        %2059 = vmatprep.subr.bf16.mxu0 %v1504
        %2060 = vmatpush1.bf16.msra.mxu0 %v1503
        %2061 = vmatprep.subr.bf16.mxu0 %v1506
        %2062 = vmatpush1.bf16.msra.mxu0 %v1505
        %2063 = vmatprep.subr.bf16.mxu0 %v1508
        %2064 = vmatpush1.bf16.msra.mxu0 %v1507
        %2065 = vmatprep.subr.bf16.mxu0 %v1510
        %2066 = vmatpush1.bf16.msra.mxu0 %v1509
        %2067 = vmatprep.subr.bf16.mxu0 %v1512
        %2068 = vmatpush1.bf16.msra.mxu0 %v1511
        %2069 = vmatprep.subr.bf16.mxu0 %v1514
        %2070 = vmatpush1.bf16.msra.mxu0 %v1513
        %2071 = vmatprep.subr.bf16.mxu0 %v1516
        %2072 = vmatpush1.bf16.msra.mxu0 %v1515
        %2073 = vmatprep.subr.bf16.mxu0 %v1518
        %2074 = vmatpush1.bf16.msra.mxu0 %v1517
        %2075 = vmatprep.subr.bf16.mxu0 %v1520
        %2076 = vmatpush1.bf16.msra.mxu0 %v1519
        %2077 = vmatprep.subr.bf16.mxu0 %v1522
        %2078 = vmatpush1.bf16.msra.mxu0 %v1521
        %2079 = vmatprep.subr.bf16.mxu0 %v1524
        %2080 = vmatpush1.bf16.msra.mxu0 %v1523
        %2081 = vmatprep.subr.bf16.mxu0 %v1526
        %2082 = vmatpush1.bf16.msra.mxu0 %v1525
        %2083 = vmatprep.subr.bf16.mxu0 %v1528
        %2084 = vmatpush1.bf16.msra.mxu0 %v1527
        %2085 = vmatprep.subr.bf16.mxu0 %v1530
        %2086 = vmatpush1.bf16.msra.mxu0 %v1529
        %2087 = vmatprep.mubr.bf16.mxu0 %v580
        %2088 = vmatmul.mubr.bf16.gmra.mrb[0].mxu0 %v579
        %v2089 = vpop.f32.mrb[0].mxu0
        %v2090 = vadd.f32 %v2047, %v2089
        %v2091 = vpop.f32.mrb[0].mxu0
        %v2092 = vadd.f32 %v2049, %v2091
        %v2093 = vpop.f32.mrb[0].mxu0
        %v2094 = vadd.f32 %v2051, %v2093
        %v2095 = vpop.f32.mrb[0].mxu0
        %v2096 = vadd.f32 %v2053, %v2095
        %2097 = vdwg.mxu0
        %2098 = vmatprep.subr.bf16.mxu0 %v1532
        %2099 = vmatpush1.bf16.msra.mxu0 %v1531
        %2100 = vmatprep.subr.bf16.mxu0 %v1534
        %2101 = vmatpush1.bf16.msra.mxu0 %v1533
        %2102 = vmatprep.subr.bf16.mxu0 %v1536
        %2103 = vmatpush1.bf16.msra.mxu0 %v1535
        %2104 = vmatprep.subr.bf16.mxu0 %v1538
        %2105 = vmatpush1.bf16.msra.mxu0 %v1537
        %2106 = vmatprep.subr.bf16.mxu0 %v1540
        %2107 = vmatpush1.bf16.msra.mxu0 %v1539
        %2108 = vmatprep.subr.bf16.mxu0 %v1542
        %2109 = vmatpush1.bf16.msra.mxu0 %v1541
        %2110 = vmatprep.subr.bf16.mxu0 %v1544
        %2111 = vmatpush1.bf16.msra.mxu0 %v1543
        %2112 = vmatprep.subr.bf16.mxu0 %v1546
        %2113 = vmatpush1.bf16.msra.mxu0 %v1545
        %2114 = vmatprep.subr.bf16.mxu0 %v1548
        %2115 = vmatpush1.bf16.msra.mxu0 %v1547
        %2116 = vmatprep.subr.bf16.mxu0 %v1550
        %2117 = vmatpush1.bf16.msra.mxu0 %v1549
        %2118 = vmatprep.subr.bf16.mxu0 %v1552
        %2119 = vmatpush1.bf16.msra.mxu0 %v1551
        %2120 = vmatprep.subr.bf16.mxu0 %v1554
        %2121 = vmatpush1.bf16.msra.mxu0 %v1553
        %2122 = vmatprep.subr.bf16.mxu0 %v1556
        %2123 = vmatpush1.bf16.msra.mxu0 %v1555
        %2124 = vmatprep.subr.bf16.mxu0 %v1558
        %2125 = vmatpush1.bf16.msra.mxu0 %v1557
        %2126 = vmatprep.subr.bf16.mxu0 %v1560
        %2127 = vmatpush1.bf16.msra.mxu0 %v1559
        %2128 = vmatprep.subr.bf16.mxu0 %v1562
        %2129 = vmatpush1.bf16.msra.mxu0 %v1561
        %2130 = vmatprep.mubr.bf16.mxu0 %v582
        %2131 = vmatmul.mubr.bf16.gmra.mrb[0].mxu0 %v581
        %v2132 = vpop.f32.mrb[0].mxu0
        %v2133 = vadd.f32 %v2090, %v2132
        %v2134 = vpop.f32.mrb[0].mxu0
        %v2135 = vadd.f32 %v2092, %v2134
        %v2136 = vpop.f32.mrb[0].mxu0
        %v2137 = vadd.f32 %v2094, %v2136
        %v2138 = vpop.f32.mrb[0].mxu0
        %v2139 = vadd.f32 %v2096, %v2138
        %2140 = vdwg.mxu0
        %2141 = vmatprep.subr.bf16.mxu0 %v1564
        %2142 = vmatpush1.bf16.msra.mxu0 %v1563
        %2143 = vmatprep.subr.bf16.mxu0 %v1566
        %2144 = vmatpush1.bf16.msra.mxu0 %v1565
        %2145 = vmatprep.subr.bf16.mxu0 %v1568
        %2146 = vmatpush1.bf16.msra.mxu0 %v1567
        %2147 = vmatprep.subr.bf16.mxu0 %v1570
        %2148 = vmatpush1.bf16.msra.mxu0 %v1569
        %2149 = vmatprep.subr.bf16.mxu0 %v1572
        %2150 = vmatpush1.bf16.msra.mxu0 %v1571
        %2151 = vmatprep.subr.bf16.mxu0 %v1574
        %2152 = vmatpush1.bf16.msra.mxu0 %v1573
        %2153 = vmatprep.subr.bf16.mxu0 %v1576
        %2154 = vmatpush1.bf16.msra.mxu0 %v1575
        %2155 = vmatprep.subr.bf16.mxu0 %v1578
        %2156 = vmatpush1.bf16.msra.mxu0 %v1577
        %2157 = vmatprep.subr.bf16.mxu0 %v1580
        %2158 = vmatpush1.bf16.msra.mxu0 %v1579
        %2159 = vmatprep.subr.bf16.mxu0 %v1582
        %2160 = vmatpush1.bf16.msra.mxu0 %v1581
        %2161 = vmatprep.subr.bf16.mxu0 %v1584
        %2162 = vmatpush1.bf16.msra.mxu0 %v1583
        %2163 = vmatprep.subr.bf16.mxu0 %v1586
        %2164 = vmatpush1.bf16.msra.mxu0 %v1585
        %2165 = vmatprep.subr.bf16.mxu0 %v1588
        %2166 = vmatpush1.bf16.msra.mxu0 %v1587
        %2167 = vmatprep.subr.bf16.mxu0 %v1590
        %2168 = vmatpush1.bf16.msra.mxu0 %v1589
        %2169 = vmatprep.subr.bf16.mxu0 %v1592
        %2170 = vmatpush1.bf16.msra.mxu0 %v1591
        %2171 = vmatprep.subr.bf16.mxu0 %v1594
        %2172 = vmatpush1.bf16.msra.mxu0 %v1593
        %2173 = vmatprep.mubr.bf16.mxu0 %v584
        %2174 = vmatmul.mubr.bf16.gmra.mrb[0].mxu0 %v583
        %v2175 = vpop.f32.mrb[0].mxu0
        %v2176 = vadd.f32 %v2133, %v2175
        %v2177 = vpop.f32.mrb[0].mxu0
        %v2178 = vadd.f32 %v2135, %v2177
        %v2179 = vpop.f32.mrb[0].mxu0
        %v2180 = vadd.f32 %v2137, %v2179
        %v2181 = vpop.f32.mrb[0].mxu0
        %v2182 = vadd.f32 %v2139, %v2181
        %2183 = vdwg.mxu0
        %2184 = vmatprep.subr.bf16.mxu0 %v1596
        %2185 = vmatpush1.bf16.msra.mxu0 %v1595
        %2186 = vmatprep.subr.bf16.mxu0 %v1598
        %2187 = vmatpush1.bf16.msra.mxu0 %v1597
        %2188 = vmatprep.subr.bf16.mxu0 %v1600
        %2189 = vmatpush1.bf16.msra.mxu0 %v1599
        %2190 = vmatprep.subr.bf16.mxu0 %v1602
        %2191 = vmatpush1.bf16.msra.mxu0 %v1601
        %2192 = vmatprep.subr.bf16.mxu0 %v1604
        %2193 = vmatpush1.bf16.msra.mxu0 %v1603
        %2194 = vmatprep.subr.bf16.mxu0 %v1606
        %2195 = vmatpush1.bf16.msra.mxu0 %v1605
        %2196 = vmatprep.subr.bf16.mxu0 %v1608
        %2197 = vmatpush1.bf16.msra.mxu0 %v1607
        %2198 = vmatprep.subr.bf16.mxu0 %v1610
        %2199 = vmatpush1.bf16.msra.mxu0 %v1609
        %2200 = vmatprep.subr.bf16.mxu0 %v1612
        %2201 = vmatpush1.bf16.msra.mxu0 %v1611
        %2202 = vmatprep.subr.bf16.mxu0 %v1614
        %2203 = vmatpush1.bf16.msra.mxu0 %v1613
        %2204 = vmatprep.subr.bf16.mxu0 %v1616
        %2205 = vmatpush1.bf16.msra.mxu0 %v1615
        %2206 = vmatprep.subr.bf16.mxu0 %v1618
        %2207 = vmatpush1.bf16.msra.mxu0 %v1617
        %2208 = vmatprep.subr.bf16.mxu0 %v1620
        %2209 = vmatpush1.bf16.msra.mxu0 %v1619
        %2210 = vmatprep.subr.bf16.mxu0 %v1622
        %2211 = vmatpush1.bf16.msra.mxu0 %v1621
        %2212 = vmatprep.subr.bf16.mxu0 %v1624
        %2213 = vmatpush1.bf16.msra.mxu0 %v1623
        %2214 = vmatprep.subr.bf16.mxu0 %v1626
        %2215 = vmatpush1.bf16.msra.mxu0 %v1625
        %2216 = vmatprep.mubr.bf16.mxu0 %v586
        %2217 = vmatmul.mubr.bf16.gmra.mrb[0].mxu0 %v585
        %v2218 = vpop.f32.mrb[0].mxu0
        %v2219 = vadd.f32 %v2176, %v2218
        %v2220 = vpop.f32.mrb[0].mxu0
        %v2221 = vadd.f32 %v2178, %v2220
        %v2222 = vpop.f32.mrb[0].mxu0
        %v2223 = vadd.f32 %v2180, %v2222
        %v2224 = vpop.f32.mrb[0].mxu0
        %v2225 = vadd.f32 %v2182, %v2224
        %2226 = vdwg.mxu0
        %s2227 = scalar_lea.vmem %s215, 128 [#allocation5]
        %v2228 = vld [vmem:[%s2227] sm:$0xff]
        %v2229 = vld [vmem:[%s2227 + $0x8] sm:$0xff]
        %v2230 = vld [vmem:[%s2227 + $0x10] sm:$0xff]
        %v2231 = vld [vmem:[%s2227 + $0x18] sm:$0xff]
        %v2232 = vld [vmem:[%s2227 + $0x20] sm:$0xff]
        %v2233 = vld [vmem:[%s2227 + $0x28] sm:$0xff]
        %v2234 = vld [vmem:[%s2227 + $0x30] sm:$0xff]
        %v2235 = vld [vmem:[%s2227 + $0x38] sm:$0xff]
        %v2236 = vld [vmem:[%s2227 + $0x40] sm:$0xff]
        %v2237 = vld [vmem:[%s2227 + $0x48] sm:$0xff]
        %v2238 = vld [vmem:[%s2227 + $0x50] sm:$0xff]
        %v2239 = vld [vmem:[%s2227 + $0x58] sm:$0xff]
        %v2240 = vld [vmem:[%s2227 + $0x60] sm:$0xff]
        %v2241 = vld [vmem:[%s2227 + $0x68] sm:$0xff]
        %v2242 = vld [vmem:[%s2227 + $0x70] sm:$0xff]
        %v2243 = vld [vmem:[%s2227 + $0x78] sm:$0xff]
        %v2260 = vunpack.c.l.b16 %v2228
        %v2261 = vunpack.c.h.b16 %v2228
        %v2262 = vunpack.c.l.b16 %v2229
        %v2263 = vunpack.c.h.b16 %v2229
        %v2264 = vunpack.c.l.b16 %v2230
        %v2265 = vunpack.c.h.b16 %v2230
        %v2266 = vunpack.c.l.b16 %v2231
        %v2267 = vunpack.c.h.b16 %v2231
        %v2268 = vunpack.c.l.b16 %v2232
        %v2269 = vunpack.c.h.b16 %v2232
        %v2270 = vunpack.c.l.b16 %v2233
        %v2271 = vunpack.c.h.b16 %v2233
        %v2272 = vunpack.c.l.b16 %v2234
        %v2273 = vunpack.c.h.b16 %v2234
        %v2274 = vunpack.c.l.b16 %v2235
        %v2275 = vunpack.c.h.b16 %v2235
        %v2276 = vunpack.c.l.b16 %v2236
        %v2277 = vunpack.c.h.b16 %v2236
        %v2278 = vunpack.c.l.b16 %v2237
        %v2279 = vunpack.c.h.b16 %v2237
        %v2280 = vunpack.c.l.b16 %v2238
        %v2281 = vunpack.c.h.b16 %v2238
        %v2282 = vunpack.c.l.b16 %v2239
        %v2283 = vunpack.c.h.b16 %v2239
        %v2284 = vunpack.c.l.b16 %v2240
        %v2285 = vunpack.c.h.b16 %v2240
        %v2286 = vunpack.c.l.b16 %v2241
        %v2287 = vunpack.c.h.b16 %v2241
        %v2288 = vunpack.c.l.b16 %v2242
        %v2289 = vunpack.c.h.b16 %v2242
        %v2290 = vunpack.c.l.b16 %v2243
        %v2291 = vunpack.c.h.b16 %v2243
        %v2292 = vpack.c.b16 %v2276, %v2260
        %v2293 = vpack.c.b16 %v2277, %v2261
        %v2294 = vpack.c.b16 %v2278, %v2262
        %v2295 = vpack.c.b16 %v2279, %v2263
        %v2296 = vpack.c.b16 %v2280, %v2264
        %v2297 = vpack.c.b16 %v2281, %v2265
        %v2298 = vpack.c.b16 %v2282, %v2266
        %v2299 = vpack.c.b16 %v2283, %v2267
        %v2300 = vpack.c.b16 %v2284, %v2268
        %v2301 = vpack.c.b16 %v2285, %v2269
        %v2302 = vpack.c.b16 %v2286, %v2270
        %v2303 = vpack.c.b16 %v2287, %v2271
        %v2304 = vpack.c.b16 %v2288, %v2272
        %v2305 = vpack.c.b16 %v2289, %v2273
        %v2306 = vpack.c.b16 %v2290, %v2274
        %v2307 = vpack.c.b16 %v2291, %v2275
        %2324 = vmatprep.subr.bf16.mxu0 %v1372
        %2325 = vmatpush1.bf16.msra.mxu0 %v1371
        %2326 = vmatprep.subr.bf16.mxu0 %v1374
        %2327 = vmatpush1.bf16.msra.mxu0 %v1373
        %2328 = vmatprep.subr.bf16.mxu0 %v1376
        %2329 = vmatpush1.bf16.msra.mxu0 %v1375
        %2330 = vmatprep.subr.bf16.mxu0 %v1378
        %2331 = vmatpush1.bf16.msra.mxu0 %v1377
        %2332 = vmatprep.subr.bf16.mxu0 %v1380
        %2333 = vmatpush1.bf16.msra.mxu0 %v1379
        %2334 = vmatprep.subr.bf16.mxu0 %v1382
        %2335 = vmatpush1.bf16.msra.mxu0 %v1381
        %2336 = vmatprep.subr.bf16.mxu0 %v1384
        %2337 = vmatpush1.bf16.msra.mxu0 %v1383
        %2338 = vmatprep.subr.bf16.mxu0 %v1386
        %2339 = vmatpush1.bf16.msra.mxu0 %v1385
        %2340 = vmatprep.subr.bf16.mxu0 %v1388
        %2341 = vmatpush1.bf16.msra.mxu0 %v1387
        %2342 = vmatprep.subr.bf16.mxu0 %v1390
        %2343 = vmatpush1.bf16.msra.mxu0 %v1389
        %2344 = vmatprep.subr.bf16.mxu0 %v1392
        %2345 = vmatpush1.bf16.msra.mxu0 %v1391
        %2346 = vmatprep.subr.bf16.mxu0 %v1394
        %2347 = vmatpush1.bf16.msra.mxu0 %v1393
        %2348 = vmatprep.subr.bf16.mxu0 %v1396
        %2349 = vmatpush1.bf16.msra.mxu0 %v1395
        %2350 = vmatprep.subr.bf16.mxu0 %v1398
        %2351 = vmatpush1.bf16.msra.mxu0 %v1397
        %2352 = vmatprep.subr.bf16.mxu0 %v1400
        %2353 = vmatpush1.bf16.msra.mxu0 %v1399
        %2354 = vmatprep.subr.bf16.mxu0 %v1402
        %2355 = vmatpush1.bf16.msra.mxu0 %v1401
        %2356 = vmatprep.mubr.bf16.mxu0 %v2293
        %2357 = vmatmul.mubr.bf16.gmra.mrb[0].mxu0 %v2292
        %v2358 = vpop.f32.mrb[0].mxu0
        %v2359 = vadd.f32 0.0, %v2358
        %v2360 = vpop.f32.mrb[0].mxu0
        %v2361 = vadd.f32 0.0, %v2360
        %v2362 = vpop.f32.mrb[0].mxu0
        %v2363 = vadd.f32 0.0, %v2362
        %v2364 = vpop.f32.mrb[0].mxu0
        %v2365 = vadd.f32 0.0, %v2364
        %2366 = vdwg.mxu0
        %2367 = vmatprep.subr.bf16.mxu0 %v1404
        %2368 = vmatpush1.bf16.msra.mxu0 %v1403
        %2369 = vmatprep.subr.bf16.mxu0 %v1406
        %2370 = vmatpush1.bf16.msra.mxu0 %v1405
        %2371 = vmatprep.subr.bf16.mxu0 %v1408
        %2372 = vmatpush1.bf16.msra.mxu0 %v1407
        %2373 = vmatprep.subr.bf16.mxu0 %v1410
        %2374 = vmatpush1.bf16.msra.mxu0 %v1409
        %2375 = vmatprep.subr.bf16.mxu0 %v1412
        %2376 = vmatpush1.bf16.msra.mxu0 %v1411
        %2377 = vmatprep.subr.bf16.mxu0 %v1414
        %2378 = vmatpush1.bf16.msra.mxu0 %v1413
        %2379 = vmatprep.subr.bf16.mxu0 %v1416
        %2380 = vmatpush1.bf16.msra.mxu0 %v1415
        %2381 = vmatprep.subr.bf16.mxu0 %v1418
        %2382 = vmatpush1.bf16.msra.mxu0 %v1417
        %2383 = vmatprep.subr.bf16.mxu0 %v1420
        %2384 = vmatpush1.bf16.msra.mxu0 %v1419
        %2385 = vmatprep.subr.bf16.mxu0 %v1422
        %2386 = vmatpush1.bf16.msra.mxu0 %v1421
        %2387 = vmatprep.subr.bf16.mxu0 %v1424
        %2388 = vmatpush1.bf16.msra.mxu0 %v1423
        %2389 = vmatprep.subr.bf16.mxu0 %v1426
        %2390 = vmatpush1.bf16.msra.mxu0 %v1425
        %2391 = vmatprep.subr.bf16.mxu0 %v1428
        %2392 = vmatpush1.bf16.msra.mxu0 %v1427
        %2393 = vmatprep.subr.bf16.mxu0 %v1430
        %2394 = vmatpush1.bf16.msra.mxu0 %v1429
        %2395 = vmatprep.subr.bf16.mxu0 %v1432
        %2396 = vmatpush1.bf16.msra.mxu0 %v1431
        %2397 = vmatprep.subr.bf16.mxu0 %v1434
        %2398 = vmatpush1.bf16.msra.mxu0 %v1433
        %2399 = vmatprep.mubr.bf16.mxu0 %v2295
        %2400 = vmatmul.mubr.bf16.gmra.mrb[0].mxu0 %v2294
        %v2401 = vpop.f32.mrb[0].mxu0
        %v2402 = vadd.f32 %v2359, %v2401
        %v2403 = vpop.f32.mrb[0].mxu0
        %v2404 = vadd.f32 %v2361, %v2403
        %v2405 = vpop.f32.mrb[0].mxu0
        %v2406 = vadd.f32 %v2363, %v2405
        %v2407 = vpop.f32.mrb[0].mxu0
        %v2408 = vadd.f32 %v2365, %v2407
        %2409 = vdwg.mxu0
        %2410 = vmatprep.subr.bf16.mxu0 %v1436
        %2411 = vmatpush1.bf16.msra.mxu0 %v1435
        %2412 = vmatprep.subr.bf16.mxu0 %v1438
        %2413 = vmatpush1.bf16.msra.mxu0 %v1437
        %2414 = vmatprep.subr.bf16.mxu0 %v1440
        %2415 = vmatpush1.bf16.msra.mxu0 %v1439
        %2416 = vmatprep.subr.bf16.mxu0 %v1442
        %2417 = vmatpush1.bf16.msra.mxu0 %v1441
        %2418 = vmatprep.subr.bf16.mxu0 %v1444
        %2419 = vmatpush1.bf16.msra.mxu0 %v1443
        %2420 = vmatprep.subr.bf16.mxu0 %v1446
        %2421 = vmatpush1.bf16.msra.mxu0 %v1445
        %2422 = vmatprep.subr.bf16.mxu0 %v1448
        %2423 = vmatpush1.bf16.msra.mxu0 %v1447
        %2424 = vmatprep.subr.bf16.mxu0 %v1450
        %2425 = vmatpush1.bf16.msra.mxu0 %v1449
        %2426 = vmatprep.subr.bf16.mxu0 %v1452
        %2427 = vmatpush1.bf16.msra.mxu0 %v1451
        %2428 = vmatprep.subr.bf16.mxu0 %v1454
        %2429 = vmatpush1.bf16.msra.mxu0 %v1453
        %2430 = vmatprep.subr.bf16.mxu0 %v1456
        %2431 = vmatpush1.bf16.msra.mxu0 %v1455
        %2432 = vmatprep.subr.bf16.mxu0 %v1458
        %2433 = vmatpush1.bf16.msra.mxu0 %v1457
        %2434 = vmatprep.subr.bf16.mxu0 %v1460
        %2435 = vmatpush1.bf16.msra.mxu0 %v1459
        %2436 = vmatprep.subr.bf16.mxu0 %v1462
        %2437 = vmatpush1.bf16.msra.mxu0 %v1461
        %2438 = vmatprep.subr.bf16.mxu0 %v1464
        %2439 = vmatpush1.bf16.msra.mxu0 %v1463
        %2440 = vmatprep.subr.bf16.mxu0 %v1466
        %2441 = vmatpush1.bf16.msra.mxu0 %v1465
        %2442 = vmatprep.mubr.bf16.mxu0 %v2297
        %2443 = vmatmul.mubr.bf16.gmra.mrb[0].mxu0 %v2296
        %v2444 = vpop.f32.mrb[0].mxu0
        %v2445 = vadd.f32 %v2402, %v2444
        %v2446 = vpop.f32.mrb[0].mxu0
        %v2447 = vadd.f32 %v2404, %v2446
        %v2448 = vpop.f32.mrb[0].mxu0
        %v2449 = vadd.f32 %v2406, %v2448
        %v2450 = vpop.f32.mrb[0].mxu0
        %v2451 = vadd.f32 %v2408, %v2450
        %2452 = vdwg.mxu0
        %2453 = vmatprep.subr.bf16.mxu0 %v1468
        %2454 = vmatpush1.bf16.msra.mxu0 %v1467
        %2455 = vmatprep.subr.bf16.mxu0 %v1470
        %2456 = vmatpush1.bf16.msra.mxu0 %v1469
        %2457 = vmatprep.subr.bf16.mxu0 %v1472
        %2458 = vmatpush1.bf16.msra.mxu0 %v1471
        %2459 = vmatprep.subr.bf16.mxu0 %v1474
        %2460 = vmatpush1.bf16.msra.mxu0 %v1473
        %2461 = vmatprep.subr.bf16.mxu0 %v1476
        %2462 = vmatpush1.bf16.msra.mxu0 %v1475
        %2463 = vmatprep.subr.bf16.mxu0 %v1478
        %2464 = vmatpush1.bf16.msra.mxu0 %v1477
        %2465 = vmatprep.subr.bf16.mxu0 %v1480
        %2466 = vmatpush1.bf16.msra.mxu0 %v1479
        %2467 = vmatprep.subr.bf16.mxu0 %v1482
        %2468 = vmatpush1.bf16.msra.mxu0 %v1481
        %2469 = vmatprep.subr.bf16.mxu0 %v1484
        %2470 = vmatpush1.bf16.msra.mxu0 %v1483
        %2471 = vmatprep.subr.bf16.mxu0 %v1486
        %2472 = vmatpush1.bf16.msra.mxu0 %v1485
        %2473 = vmatprep.subr.bf16.mxu0 %v1488
        %2474 = vmatpush1.bf16.msra.mxu0 %v1487
        %2475 = vmatprep.subr.bf16.mxu0 %v1490
        %2476 = vmatpush1.bf16.msra.mxu0 %v1489
        %2477 = vmatprep.subr.bf16.mxu0 %v1492
        %2478 = vmatpush1.bf16.msra.mxu0 %v1491
        %2479 = vmatprep.subr.bf16.mxu0 %v1494
        %2480 = vmatpush1.bf16.msra.mxu0 %v1493
        %2481 = vmatprep.subr.bf16.mxu0 %v1496
        %2482 = vmatpush1.bf16.msra.mxu0 %v1495
        %2483 = vmatprep.subr.bf16.mxu0 %v1498
        %2484 = vmatpush1.bf16.msra.mxu0 %v1497
        %2485 = vmatprep.mubr.bf16.mxu0 %v2299
        %2486 = vmatmul.mubr.bf16.gmra.mrb[0].mxu0 %v2298
        %v2487 = vpop.f32.mrb[0].mxu0
        %v2488 = vadd.f32 %v2445, %v2487
        %v2489 = vpop.f32.mrb[0].mxu0
        %v2490 = vadd.f32 %v2447, %v2489
        %v2491 = vpop.f32.mrb[0].mxu0
        %v2492 = vadd.f32 %v2449, %v2491
        %v2493 = vpop.f32.mrb[0].mxu0
        %v2494 = vadd.f32 %v2451, %v2493
        %2495 = vdwg.mxu0
        %2496 = vmatprep.subr.bf16.mxu0 %v1500
        %2497 = vmatpush1.bf16.msra.mxu0 %v1499
        %2498 = vmatprep.subr.bf16.mxu0 %v1502
        %2499 = vmatpush1.bf16.msra.mxu0 %v1501
        %2500 = vmatprep.subr.bf16.mxu0 %v1504
        %2501 = vmatpush1.bf16.msra.mxu0 %v1503
        %2502 = vmatprep.subr.bf16.mxu0 %v1506
        %2503 = vmatpush1.bf16.msra.mxu0 %v1505
        %2504 = vmatprep.subr.bf16.mxu0 %v1508
        %2505 = vmatpush1.bf16.msra.mxu0 %v1507
        %2506 = vmatprep.subr.bf16.mxu0 %v1510
        %2507 = vmatpush1.bf16.msra.mxu0 %v1509
        %2508 = vmatprep.subr.bf16.mxu0 %v1512
        %2509 = vmatpush1.bf16.msra.mxu0 %v1511
        %2510 = vmatprep.subr.bf16.mxu0 %v1514
        %2511 = vmatpush1.bf16.msra.mxu0 %v1513
        %2512 = vmatprep.subr.bf16.mxu0 %v1516
        %2513 = vmatpush1.bf16.msra.mxu0 %v1515
        %2514 = vmatprep.subr.bf16.mxu0 %v1518
        %2515 = vmatpush1.bf16.msra.mxu0 %v1517
        %2516 = vmatprep.subr.bf16.mxu0 %v1520
        %2517 = vmatpush1.bf16.msra.mxu0 %v1519
        %2518 = vmatprep.subr.bf16.mxu0 %v1522
        %2519 = vmatpush1.bf16.msra.mxu0 %v1521
        %2520 = vmatprep.subr.bf16.mxu0 %v1524
        %2521 = vmatpush1.bf16.msra.mxu0 %v1523
        %2522 = vmatprep.subr.bf16.mxu0 %v1526
        %2523 = vmatpush1.bf16.msra.mxu0 %v1525
        %2524 = vmatprep.subr.bf16.mxu0 %v1528
        %2525 = vmatpush1.bf16.msra.mxu0 %v1527
        %2526 = vmatprep.subr.bf16.mxu0 %v1530
        %2527 = vmatpush1.bf16.msra.mxu0 %v1529
        %2528 = vmatprep.mubr.bf16.mxu0 %v2301
        %2529 = vmatmul.mubr.bf16.gmra.mrb[0].mxu0 %v2300
        %v2530 = vpop.f32.mrb[0].mxu0
        %v2531 = vadd.f32 %v2488, %v2530
        %v2532 = vpop.f32.mrb[0].mxu0
        %v2533 = vadd.f32 %v2490, %v2532
        %v2534 = vpop.f32.mrb[0].mxu0
        %v2535 = vadd.f32 %v2492, %v2534
        %v2536 = vpop.f32.mrb[0].mxu0
        %v2537 = vadd.f32 %v2494, %v2536
        %2538 = vdwg.mxu0
        %2539 = vmatprep.subr.bf16.mxu0 %v1532
        %2540 = vmatpush1.bf16.msra.mxu0 %v1531
        %2541 = vmatprep.subr.bf16.mxu0 %v1534
        %2542 = vmatpush1.bf16.msra.mxu0 %v1533
        %2543 = vmatprep.subr.bf16.mxu0 %v1536
        %2544 = vmatpush1.bf16.msra.mxu0 %v1535
        %2545 = vmatprep.subr.bf16.mxu0 %v1538
        %2546 = vmatpush1.bf16.msra.mxu0 %v1537
        %2547 = vmatprep.subr.bf16.mxu0 %v1540
        %2548 = vmatpush1.bf16.msra.mxu0 %v1539
        %2549 = vmatprep.subr.bf16.mxu0 %v1542
        %2550 = vmatpush1.bf16.msra.mxu0 %v1541
        %2551 = vmatprep.subr.bf16.mxu0 %v1544
        %2552 = vmatpush1.bf16.msra.mxu0 %v1543
        %2553 = vmatprep.subr.bf16.mxu0 %v1546
        %2554 = vmatpush1.bf16.msra.mxu0 %v1545
        %2555 = vmatprep.subr.bf16.mxu0 %v1548
        %2556 = vmatpush1.bf16.msra.mxu0 %v1547
        %2557 = vmatprep.subr.bf16.mxu0 %v1550
        %2558 = vmatpush1.bf16.msra.mxu0 %v1549
        %2559 = vmatprep.subr.bf16.mxu0 %v1552
        %2560 = vmatpush1.bf16.msra.mxu0 %v1551
        %2561 = vmatprep.subr.bf16.mxu0 %v1554
        %2562 = vmatpush1.bf16.msra.mxu0 %v1553
        %2563 = vmatprep.subr.bf16.mxu0 %v1556
        %2564 = vmatpush1.bf16.msra.mxu0 %v1555
        %2565 = vmatprep.subr.bf16.mxu0 %v1558
        %2566 = vmatpush1.bf16.msra.mxu0 %v1557
        %2567 = vmatprep.subr.bf16.mxu0 %v1560
        %2568 = vmatpush1.bf16.msra.mxu0 %v1559
        %2569 = vmatprep.subr.bf16.mxu0 %v1562
        %2570 = vmatpush1.bf16.msra.mxu0 %v1561
        %2571 = vmatprep.mubr.bf16.mxu0 %v2303
        %2572 = vmatmul.mubr.bf16.gmra.mrb[0].mxu0 %v2302
        %v2573 = vpop.f32.mrb[0].mxu0
        %v2574 = vadd.f32 %v2531, %v2573
        %v2575 = vpop.f32.mrb[0].mxu0
        %v2576 = vadd.f32 %v2533, %v2575
        %v2577 = vpop.f32.mrb[0].mxu0
        %v2578 = vadd.f32 %v2535, %v2577
        %v2579 = vpop.f32.mrb[0].mxu0
        %v2580 = vadd.f32 %v2537, %v2579
        %2581 = vdwg.mxu0
        %2582 = vmatprep.subr.bf16.mxu0 %v1564
        %2583 = vmatpush1.bf16.msra.mxu0 %v1563
        %2584 = vmatprep.subr.bf16.mxu0 %v1566
        %2585 = vmatpush1.bf16.msra.mxu0 %v1565
        %2586 = vmatprep.subr.bf16.mxu0 %v1568
        %2587 = vmatpush1.bf16.msra.mxu0 %v1567
        %2588 = vmatprep.subr.bf16.mxu0 %v1570
        %2589 = vmatpush1.bf16.msra.mxu0 %v1569
        %2590 = vmatprep.subr.bf16.mxu0 %v1572
        %2591 = vmatpush1.bf16.msra.mxu0 %v1571
        %2592 = vmatprep.subr.bf16.mxu0 %v1574
        %2593 = vmatpush1.bf16.msra.mxu0 %v1573
        %2594 = vmatprep.subr.bf16.mxu0 %v1576
        %2595 = vmatpush1.bf16.msra.mxu0 %v1575
        %2596 = vmatprep.subr.bf16.mxu0 %v1578
        %2597 = vmatpush1.bf16.msra.mxu0 %v1577
        %2598 = vmatprep.subr.bf16.mxu0 %v1580
        %2599 = vmatpush1.bf16.msra.mxu0 %v1579
        %2600 = vmatprep.subr.bf16.mxu0 %v1582
        %2601 = vmatpush1.bf16.msra.mxu0 %v1581
        %2602 = vmatprep.subr.bf16.mxu0 %v1584
        %2603 = vmatpush1.bf16.msra.mxu0 %v1583
        %2604 = vmatprep.subr.bf16.mxu0 %v1586
        %2605 = vmatpush1.bf16.msra.mxu0 %v1585
        %2606 = vmatprep.subr.bf16.mxu0 %v1588
        %2607 = vmatpush1.bf16.msra.mxu0 %v1587
        %2608 = vmatprep.subr.bf16.mxu0 %v1590
        %2609 = vmatpush1.bf16.msra.mxu0 %v1589
        %2610 = vmatprep.subr.bf16.mxu0 %v1592
        %2611 = vmatpush1.bf16.msra.mxu0 %v1591
        %2612 = vmatprep.subr.bf16.mxu0 %v1594
        %2613 = vmatpush1.bf16.msra.mxu0 %v1593
        %2614 = vmatprep.mubr.bf16.mxu0 %v2305
        %2615 = vmatmul.mubr.bf16.gmra.mrb[0].mxu0 %v2304
        %v2616 = vpop.f32.mrb[0].mxu0
        %v2617 = vadd.f32 %v2574, %v2616
        %v2618 = vpop.f32.mrb[0].mxu0
        %v2619 = vadd.f32 %v2576, %v2618
        %v2620 = vpop.f32.mrb[0].mxu0
        %v2621 = vadd.f32 %v2578, %v2620
        %v2622 = vpop.f32.mrb[0].mxu0
        %v2623 = vadd.f32 %v2580, %v2622
        %2624 = vdwg.mxu0
        %2625 = vmatprep.subr.bf16.mxu0 %v1596
        %2626 = vmatpush1.bf16.msra.mxu0 %v1595
        %2627 = vmatprep.subr.bf16.mxu0 %v1598
        %2628 = vmatpush1.bf16.msra.mxu0 %v1597
        %2629 = vmatprep.subr.bf16.mxu0 %v1600
        %2630 = vmatpush1.bf16.msra.mxu0 %v1599
        %2631 = vmatprep.subr.bf16.mxu0 %v1602
        %2632 = vmatpush1.bf16.msra.mxu0 %v1601
        %2633 = vmatprep.subr.bf16.mxu0 %v1604
        %2634 = vmatpush1.bf16.msra.mxu0 %v1603
        %2635 = vmatprep.subr.bf16.mxu0 %v1606
        %2636 = vmatpush1.bf16.msra.mxu0 %v1605
        %2637 = vmatprep.subr.bf16.mxu0 %v1608
        %2638 = vmatpush1.bf16.msra.mxu0 %v1607
        %2639 = vmatprep.subr.bf16.mxu0 %v1610
        %2640 = vmatpush1.bf16.msra.mxu0 %v1609
        %2641 = vmatprep.subr.bf16.mxu0 %v1612
        %2642 = vmatpush1.bf16.msra.mxu0 %v1611
        %2643 = vmatprep.subr.bf16.mxu0 %v1614
        %2644 = vmatpush1.bf16.msra.mxu0 %v1613
        %2645 = vmatprep.subr.bf16.mxu0 %v1616
        %2646 = vmatpush1.bf16.msra.mxu0 %v1615
        %2647 = vmatprep.subr.bf16.mxu0 %v1618
        %2648 = vmatpush1.bf16.msra.mxu0 %v1617
        %2649 = vmatprep.subr.bf16.mxu0 %v1620
        %2650 = vmatpush1.bf16.msra.mxu0 %v1619
        %2651 = vmatprep.subr.bf16.mxu0 %v1622
        %2652 = vmatpush1.bf16.msra.mxu0 %v1621
        %2653 = vmatprep.subr.bf16.mxu0 %v1624
        %2654 = vmatpush1.bf16.msra.mxu0 %v1623
        %2655 = vmatprep.subr.bf16.mxu0 %v1626
        %2656 = vmatpush1.bf16.msra.mxu0 %v1625
        %2657 = vmatprep.mubr.bf16.mxu0 %v2307
        %2658 = vmatmul.mubr.bf16.gmra.mrb[0].mxu0 %v2306
        %v2659 = vpop.f32.mrb[0].mxu0
        %v2660 = vadd.f32 %v2617, %v2659
        %v2661 = vpop.f32.mrb[0].mxu0
        %v2662 = vadd.f32 %v2619, %v2661
        %v2663 = vpop.f32.mrb[0].mxu0
        %v2664 = vadd.f32 %v2621, %v2663
        %v2665 = vpop.f32.mrb[0].mxu0
        %v2666 = vadd.f32 %v2623, %v2665
        %2667 = vdwg.mxu0
        %v2668 = vmul.f32 %v2219, %v2219
        %v2669 = vmul.f32 %v2223, %v2223
        %v2670 = vmul.f32 %v2221, %v2221
        %v2671 = vmul.f32 %v2225, %v2225
        %v2672 = vadd.f32 %v2668, %v2670
        %v2673 = vadd.f32 %v2669, %v2671
        %v2674 = vmax.f32 %v2672, 1e-07
        %v2675 = vmax.f32 %v2673, 1e-07
        %v2676 = vmul.f32 %v2660, %v2660
        %v2677 = vmul.f32 %v2664, %v2664
        %v2678 = vmul.f32 %v2662, %v2662
        %v2679 = vmul.f32 %v2666, %v2666
        %v2680 = vadd.f32 %v2676, %v2678
        %v2681 = vadd.f32 %v2677, %v2679
        %v2682 = vmax.f32 %v2680, 1e-07
        %v2683 = vmax.f32 %v2681, 1e-07
        %v2684 = vld [vmem:[#allocation2] sm:$0xff]
        %v2685 = vld [vmem:[#allocation2 + $0x8] sm:$0xff]
        %v2686 = vadd.f32 %v2674, %v2682
        %v2687 = vadd.f32 %v2675, %v2683
        %v2688 = vmul.f32 %v2674, %v2682
        %v2689 = vmul.f32 %v2675, %v2683
        %v2690 = vrsqrt.pop %v2688
        %v2691 = vmul.f32 %v2688, %v2690
        %vm2692 = vcmp.eq.f32.partialorder %v2688, inf
        %v2693 = vsel %vm2692, %v2688, %v2691
        %vm2694 = vcmp.eq.f32.partialorder %v2688, 0.0
        %v2695 = vand.u32 %v2688, 2147483648
        %v2696 = vsel %vm2694, %v2695, %v2693
        %v2697 = vrsqrt.pop %v2689
        %v2698 = vmul.f32 %v2689, %v2697
        %vm2699 = vcmp.eq.f32.partialorder %v2689, inf
        %v2700 = vsel %vm2699, %v2689, %v2698
        %vm2701 = vcmp.eq.f32.partialorder %v2689, 0.0
        %v2702 = vand.u32 %v2689, 2147483648
        %v2703 = vsel %vm2701, %v2702, %v2700
        %v2704 = vmul.f32 %v2696, 2.0
        %v2705 = vmul.f32 %v2703, 2.0
        %v2706 = vsub.f32 %v2686, %v2704
        %v2707 = vsub.f32 %v2687, %v2705
        %v2708 = vadd.f32 %v2684, %v2706
        %v2709 = vadd.f32 %v2685, %v2707
        %2710 = vst [vmem:[#allocation2] sm:$0xff] %v2708
        %2711 = vst [vmem:[#allocation2 + $0x8] sm:$0xff] %v2709
        %v2712 = vld [vmem:[#allocation3] sm:$0xff]
        %v2713 = vld [vmem:[#allocation3 + $0x8] sm:$0xff]
        %v2714 = vadd.f32 %v2712, %v2682
        %v2715 = vadd.f32 %v2713, %v2683
        %2716 = vst [vmem:[#allocation3] sm:$0xff] %v2714
        %2717 = vst [vmem:[#allocation3 + $0x8] sm:$0xff] %v2715
        %v2718 = vld [vmem:[#allocation4] sm:$0xff]
        %v2719 = vld [vmem:[#allocation4 + $0x8] sm:$0xff]
        %v2720 = vrcp.pop %v2674
        %v2721 = vrcp.pop %v2675
        %v2722 = vmul.f32 %v2682, %v2720
        %v2723 = vmul.f32 %v2683, %v2721
        %v2724 = vlog2.pop %v2722
        %v2725 = vmul.f32 %v2724, 0.6931472
        %v2726 = vlog2.pop %v2723
        %v2727 = vmul.f32 %v2726, 0.6931472
        %v2728 = vand.u32 2147483647, %v2725
        %v2729 = vand.u32 2147483647, %v2727
        %v2730 = vadd.f32 %v2718, %v2728
        %v2731 = vadd.f32 %v2719, %v2729
        %2732 = vst [vmem:[#allocation4] sm:$0xff] %v2730
        %2733 = vst [vmem:[#allocation4 + $0x8] sm:$0xff] %v2731
        %p2734 = scmp.eq.s32.totalorder %s18, 7
        // Predicated region
        $region56: #{_combined_loss_impl.7} parent=46 // pred_check
          %p2735 = pneg %p2734
        $region57: #{_combined_loss_impl.7} parent=46 // pred_check_branch
          %2737 = sbr.rel (%p2735) target = $region59
        $region58: #{_combined_loss_impl.7} parent=46 // pred_region
          %v2738 = vlaneseq
          %v2739 = vand.u32 %v2738, 127
          %v2740 = vld [vmem:[#allocation2] sm:$0xff]
          %v2741 = vld [vmem:[#allocation2 + $0x8] sm:$0xff]
          %v2742 = vadd.f32 %v2740, %v2741
          %2743 = vadd.xlane.f32.xlu0 %v2742
          %v2744 = vpop.xlane.xlu0 %2743
          %v2745 = vrot.slane %v2744, 4
          %v2746 = vadd.f32 %v2744, %v2745
          %v2747 = vrot.slane %v2746, 2
          %v2748 = vadd.f32 %v2746, %v2747
          %v2749 = vrot.slane %v2748, 1
          %v2750 = vadd.f32 %v2748, %v2749
          %s2751 = vtos %v2750
          %v2752 = vld [vmem:[#allocation3] sm:$0xff]
          %v2753 = vld [vmem:[#allocation3 + $0x8] sm:$0xff]
          %v2754 = vadd.f32 %v2752, %v2753
          %2755 = vadd.xlane.f32.xlu0 %v2754
          %v2756 = vpop.xlane.xlu0 %2755
          %v2757 = vrot.slane %v2756, 4
          %v2758 = vadd.f32 %v2756, %v2757
          %v2759 = vrot.slane %v2758, 2
          %v2760 = vadd.f32 %v2758, %v2759
          %v2761 = vrot.slane %v2760, 1
          %v2762 = vadd.f32 %v2760, %v2761
          %s2763 = vtos %v2762
          %v2764 = vld [vmem:[#allocation4] sm:$0xff]
          %v2765 = vld [vmem:[#allocation4 + $0x8] sm:$0xff]
          %v2766 = vadd.f32 %v2764, %v2765
          %2767 = vadd.xlane.f32.xlu0 %v2766
          %v2768 = vpop.xlane.xlu0 %2767
          %v2769 = vrot.slane %v2768, 4
          %v2770 = vadd.f32 %v2768, %v2769
          %v2771 = vrot.slane %v2770, 2
          %v2772 = vadd.f32 %v2770, %v2771
          %v2773 = vrot.slane %v2772, 1
          %v2774 = vadd.f32 %v2772, %v2773
          %s2775 = vtos %v2774
          %s2776 = smul.f32 %s2775, 0.5
          %vm2777 = vcmp.eq.s32.totalorder %v2739, 0
          %vm2778 = vcmp.eq.s32.totalorder %v2739, 1
          %vm2779 = vcmp.eq.s32.totalorder %v2739, 2
          %v2780 = vstv %s2776
          %v2781 = vsel %vm2779, %v2780, 0.0
          %v2782 = vstv %s2763
          %v2783 = vsel %vm2778, %v2782, %v2781
          %v2784 = vstv %s2751
          %v2785 = vsel %vm2777, %v2784, %v2783
          %2786 = vst [vmem:[%s237] sm:$0xff] %v2785
        $region59: #{_combined_loss_impl.7} parent=46 // pred_fallthru
          _
        %p2787 = scmp.lt.s32.totalorder %s17, 1
        %s2788 = scalar_select %p2787, %s17, 1
        %s2789 = smul.addr %s2788, 8
        %s2790 = scalar_lea.vmem %s2, %s2789
        // Predicated region
        $region60: #{_combined_loss_impl.7} parent=46 // pred_check
          %p2791 = pneg %p90
        $region61: #{_combined_loss_impl.7} parent=46 // pred_check_branch
          %2793 = sbr.rel (%p2791) target = $region63
        $region62: #{_combined_loss_impl.7} parent=46 // pred_region
          _
        $region63: #{_combined_loss_impl.7} parent=46 // pred_fallthru
          _
      $region47: #{_combined_loss_impl.7} parent=5 // pred_fallthru
        _
      %p2794 = scmp.le.s32.totalorder 2, %s8
      // Predicated region
      $region64: #{_combined_loss_impl.7} parent=5 // pred_check
        %p2795 = pneg %p2794
      $region65: #{_combined_loss_impl.7} parent=5 // pred_check_branch
        %2797 = sbr.rel (%p2795) target = $region67
      $region66: #{_combined_loss_impl.7} parent=5 // pred_region
        %s2798 = ssub.s32 %s8, 2
        // Predicated region
        $region68: #{_combined_loss_impl.7} parent=66 // pred_check
          %p2799 = pneg %p96
        $region69: #{_combined_loss_impl.7} parent=66 // pred_check_branch
          %2801 = sbr.rel (%p2799) target = $region71
        $region70: #{_combined_loss_impl.7} parent=66 // pred_region
          %p2802 = scmp.lt.s32.totalorder %s19, 1
          %s2803 = scalar_select %p2802, %s19, 1
          %s2804 = smul.addr %s2803, 8
          %s2805 = scalar_lea.vmem %s2, %s2804
        $region71: #{_combined_loss_impl.7} parent=66 // pred_fallthru
          _
      $region67: #{_combined_loss_impl.7} parent=5 // pred_fallthru
        _
    $region6: #{_combined_loss_impl.7} parent=1 // loop_footer
      %s12 = sadd.s32 1, %s8
    $region7: #{_combined_loss_impl.7} parent=1 // loop_footer_branch
      %7 = sbr.rel target = $region3
    $region8: #{_combined_loss_impl.7} parent=1 // loop_exit
      _

</llo_original>
